<compile_context>
chip_gen: v7x
topology: tpu7x:2x2x1
jax: 0.10.0
libtpu: 0.0.40
codegen_flags: <defaults>
</compile_context>

<pallas_src>
import functools

import jax
import jax.numpy as jnp
from jax.experimental import pallas as pl
from jax.experimental.pallas import tpu as pltpu


def _round_up(x, m):
    return (x + m - 1) // m * m


# ---------------------------------------------------------------------------
# Pallas kernel: stride-1 KHxKW conv as tap-accumulated MXU matmuls,
# fused with folded-BN bias, optional residual add and optional ReLU.
# ---------------------------------------------------------------------------
def _conv_tap_kernel(x_ref, w_ref, b_ref, *rest, tap_offsets, m, relu):
    if len(rest) == 2:
        res_ref, o_ref = rest
    else:
        (o_ref,) = rest
        res_ref = None

    acc = None
    for t, d in enumerate(tap_offsets):
        a = x_ref[0, d:d + m, :]                      # (m, Cin) bf16 window
        part = jnp.dot(a, w_ref[t], preferred_element_type=jnp.float32)
        acc = part if acc is None else acc + part

    out = acc + b_ref[...]                            # folded-BN bias
    if res_ref is not None:
        out = out + res_ref[...]                      # fused residual add
    if relu:
        out = jnp.maximum(out, 0.0)
    o_ref[...] = out


def conv_bn_act(x, w_taps, bias, *, ksize, out_hw, residual=None, relu=True,
                acc_bytes_target=512 * 1024):
    """Fused stride-1 VALID conv + BN bias (+ residual) (+ ReLU), NHWC.

    x:        (N, HX, WX0, Cin) float, already zero-padded spatially so that
              HX >= Ho + KH - 1 and WX0 >= Wo + KW - 1.
    w_taps:   (KH*KW, Cin, Cout) float32, BN scale already folded in.
    bias:     (Cout,) float32 folded BN bias.
    residual: (N, Ho, Wo, Cout) float32 or None.
    Returns   (N, Ho, Wo, Cout) float32.
    """
    kh, kw = ksize
    ho, wo = out_hw
    n, hx, wx0, cin = x.shape
    t, cin_w, cout = w_taps.shape
    assert t == kh * kw and cin_w == cin

    cpad = _round_up(cout, 128)          # lane-dense output stores
    cin_p = _round_up(cin, 8)            # sublane-aligned contraction dim
    wxp = _round_up(wx0, 8)              # row width used inside the kernel

    # rows-per-tile: large matmul M, but keep the (m, cpad) f32 accumulator small.
    row_target = max(256, min(2048, acc_bytes_target // (cpad * 4)))
    th = max(1, min(ho, row_target // wxp))
    n_ht = pl.cdiv(ho, th)
    ho_pad = n_ht * th
    m_tile = th * wxp
    lx = (th + kh) * wxp                 # tile rows incl. halo + wrap-guard row

    # pad the activation (bf16 for the MXU) and build overlapping row-tiles.
    hx_need = ho_pad + kh
    xp = jnp.pad(x.astype(jnp.bfloat16),
                 ((0, 0), (0, max(0, hx_need - hx)), (0, wxp - wx0),
                  (0, cin_p - cin)))
    row_idx = jnp.arange(n_ht)[:, None] * th + jnp.arange(th + kh)[None, :]
    xt = jnp.take(xp, row_idx, axis=1)             # (N, n_ht, th+kh, wxp, cin_p)
    xt = xt.reshape(n * n_ht, lx, cin_p)

    w_p = jnp.pad(w_taps, ((0, 0), (0, cin_p - cin), (0, cpad - cout)))
    w_p = w_p.astype(jnp.bfloat16)
    b_p = jnp.pad(bias.astype(jnp.float32), (0, cpad - cout)).reshape(1, cpad)

    in_specs = [
        pl.BlockSpec((1, lx, cin_p), lambda g: (g, 0, 0)),
        pl.BlockSpec((t, cin_p, cpad), lambda g: (0, 0, 0)),   # weights resident
        pl.BlockSpec((1, cpad), lambda g: (0, 0)),
    ]
    args = [xt, w_p, b_p]
    if residual is not None:
        r = jnp.pad(residual.astype(jnp.float32),
                    ((0, 0), (0, ho_pad - ho), (0, wxp - wo), (0, cpad - cout)))
        r = r.reshape(n * ho_pad * wxp, cpad)
        in_specs.append(pl.BlockSpec((m_tile, cpad), lambda g: (g, 0)))
        args.append(r)

    tap_offsets = tuple(i * wxp + j for i in range(kh) for j in range(kw))
    kernel = functools.partial(_conv_tap_kernel, tap_offsets=tap_offsets,
                               m=m_tile, relu=relu)

    out = pl.pallas_call(
        kernel,
        out_shape=jax.ShapeDtypeStruct((n * ho_pad * wxp, cpad), jnp.float32),
        grid=(n * n_ht,),
        in_specs=in_specs,
        out_specs=pl.BlockSpec((m_tile, cpad), lambda g: (g, 0)),
        compiler_params=pltpu.CompilerParams(
            dimension_semantics=("parallel",),
            vmem_limit_bytes=48 * 1024 * 1024),
    )(*args)

    out = out.reshape(n, ho_pad, wxp, cpad)
    return out[:, :ho, :wo, :cout]


# ---------------------------------------------------------------------------
# JAX glue: BN folding, stride-s -> stride-1 rewrite, BasicBlock forward
# ---------------------------------------------------------------------------
def fold_bn(bn):
    scale = bn["gamma"] / jnp.sqrt(bn["var"] + bn["eps"])
    bias = bn["beta"] - bn["mean"] * scale
    return scale.astype(jnp.float32), bias.astype(jnp.float32)


def _space_to_depth_conv(x, w_oihw, stride):
    """Rewrite a 3x3 stride-s pad-1 conv as a stride-1 conv on phase-stacked x."""
    n, h, w, c = x.shape
    cout = w_oihw.shape[0]
    s = stride
    ho = (h + 2 - 3) // s + 1
    wo = (w + 2 - 3) // s + 1
    xp = jnp.pad(x, ((0, 0), (1, 1), (1, 1), (0, 0)))
    hp, wp = h + 2, w + 2
    hp2, wp2 = _round_up(hp, s), _round_up(wp, s)
    xp = jnp.pad(xp, ((0, 0), (0, hp2 - hp), (0, wp2 - wp), (0, 0)))
    x2 = xp.reshape(n, hp2 // s, s, wp2 // s, s, c)
    x2 = x2.transpose(0, 1, 3, 2, 4, 5).reshape(n, hp2 // s, wp2 // s, s * s * c)

    k2 = (3 - 1) // s + 1
    w_hwio = jnp.transpose(w_oihw, (2, 3, 1, 0))           # (3, 3, Cin, Cout)
    w2 = jnp.zeros((k2, k2, s, s, c, cout), jnp.float32)
    for dh in range(k2):
        for dw in range(k2):
            for ph in range(s):
                for pw in range(s):
                    r, q = s * dh + ph, s * dw + pw
                    if r < 3 and q < 3:
                        w2 = w2.at[dh, dw, ph, pw].set(w_hwio[r, q])
    w2 = w2.reshape(k2 * k2, s * s * c, cout)
    return x2, w2, (k2, k2), (ho, wo)


@functools.partial(jax.jit, static_argnames=("stride",))
def basic_block_forward(x_nchw, params, stride):
    # TODO(synk): for chained blocks keep activations NHWC and drop these
    # per-block NCHW<->NHWC transposes.
    x = jnp.transpose(x_nchw, (0, 2, 3, 1)).astype(jnp.float32)   # NHWC
    n, h, w, cin = x.shape
    planes = params["w1"].shape[0]

    s1, b1 = fold_bn(params["bn1"])
    s2, b2 = fold_bn(params["bn2"])

    # ---- conv1 (3x3, stride) + bn1 + relu --------------------------------
    if stride == 1:
        x1 = jnp.pad(x, ((0, 0), (1, 1), (1, 1), (0, 0)))
        w1 = jnp.transpose(params["w1"], (2, 3, 1, 0)).reshape(9, cin, planes)
        k1, hw1 = (3, 3), (h, w)
    else:
        x1, w1, k1, hw1 = _space_to_depth_conv(x, params["w1"], stride)
    w1 = w1 * s1[None, None, :]                       # fold BN scale into weights
    out1 = conv_bn_act(x1, w1, b1, ksize=k1, out_hw=hw1, relu=True)
    ho, wo = hw1

    # ---- shortcut ---------------------------------------------------------
    if stride != 1 or cin != planes:
        xs = x[:, ::stride, ::stride, :]
        ws = jnp.transpose(params["ws"].reshape(planes, cin), (1, 0))[None]
        ss, bs = fold_bn(params["bns"])
        ws = ws * ss[None, None, :]
        shortcut = conv_bn_act(xs, ws, bs, ksize=(1, 1), out_hw=(ho, wo),
                               relu=False)
    else:
        shortcut = x

    # ---- conv2 (3x3, stride 1) + bn2 + residual add + relu (fully fused) --
    x2 = jnp.pad(out1, ((0, 0), (1, 1), (1, 1), (0, 0)))
    w2 = jnp.transpose(params["w2"], (2, 3, 1, 0)).reshape(9, planes, planes)
    w2 = w2 * s2[None, None, :]
    out = conv_bn_act(x2, w2, b2, ksize=(3, 3), out_hw=(ho, wo),
                      residual=shortcut, relu=True)

    return jnp.transpose(out, (0, 3, 1, 2))           # back to NCHW


# ---------------------------------------------------------------------------
# Pure-JAX reference (lax.conv, f32) for correctness check
# ---------------------------------------------------------------------------
def ref_forward(x_nchw, params, stride):
    def conv(x, w, s, pad):
        return jax.lax.conv_general_dilated(
            x, w, (s, s), pad, dimension_numbers=("NCHW", "OIHW", "NCHW"))

    def bn(x, p):
        sc = p["gamma"] / jnp.sqrt(p["var"] + p["eps"])
        bi = p["beta"] - p["mean"] * sc
        return x * sc[None, :, None, None] + bi[None, :, None, None]

    out = jax.nn.relu(bn(conv(x_nchw, params["w1"], stride, ((1, 1), (1, 1))),
                         params["bn1"]))
    out = bn(conv(out, params["w2"], 1, ((1, 1), (1, 1))), params["bn2"])
    if stride != 1 or x_nchw.shape[1] != params["w1"].shape[0]:
        sc = bn(conv(x_nchw, params["ws"], stride, ((0, 0), (0, 0))),
                params["bns"])
    else:
        sc = x_nchw
    return jax.nn.relu(out + sc)


if __name__ == "__main__":
    key = jax.random.PRNGKey(0)

    def bn_params(k, c):
        k1, k2, k3, k4 = jax.random.split(k, 4)
        return {
            "gamma": jax.random.uniform(k1, (c,), jnp.float32, 0.5, 1.5),
            "beta": jax.random.normal(k2, (c,), jnp.float32) * 0.1,
            "mean": jax.random.normal(k3, (c,), jnp.float32) * 0.1,
            "var": jax.random.uniform(k4, (c,), jnp.float32, 0.5, 1.5),
            "eps": jnp.float32(1e-5),
        }

    def make_params(k, in_planes, planes, with_shortcut):
        ks = jax.random.split(k, 6)
        p = {
            "w1": jax.random.normal(ks[0], (planes, in_planes, 3, 3),
                                    jnp.float32) * 0.1,
            "bn1": bn_params(ks[1], planes),
            "w2": jax.random.normal(ks[2], (planes, planes, 3, 3),
                                    jnp.float32) * 0.1,
            "bn2": bn_params(ks[3], planes),
        }
        if with_shortcut:
            p["ws"] = jax.random.normal(ks[4], (planes, in_planes, 1, 1),
                                        jnp.float32) * 0.1
            p["bns"] = bn_params(ks[5], planes)
        return p

    cases = [
        # (N, in_planes, planes, H, W, stride)
        (2, 4, 8, 16, 16, 2),   # downsampling block (projection shortcut)
        (2, 8, 8, 16, 16, 1),   # identity-shortcut block
    ]
    for i, (nb, cin, cpl, hh, ww, st) in enumerate(cases):
        kx, kp = jax.random.split(jax.random.fold_in(key, i))
        params = make_params(kp, cin, cpl, st != 1 or cin != cpl)
        x = jax.random.normal(kx, (nb, cin, hh, ww), jnp.float32)

        out = jax.block_until_ready(basic_block_forward(x, params, st))
        ref = ref_forward(x, params, st)
        assert out.shape == ref.shape == (nb, cpl, hh // st, ww // st)
        # bf16 MXU inputs with f32 accumulation -> bf16-level tolerance vs f32 ref.
        assert jnp.allclose(out, ref, atol=5e-2, rtol=5e-2), (
            f"case {i}: mismatch, max abs err {jnp.max(jnp.abs(out - ref))}")

    print("KERNEL_OK")
</pallas_src>

<mosaic_0001>
module attributes {stable_mosaic.version = 11 : i64} {
  func.func @_conv_tap_kernel(%arg0: i32, %arg1: memref<1x160x16xbf16, #tpu.memory_space<vmem>>, %arg2: memref<4x16x128xbf16, #tpu.memory_space<vmem>>, %arg3: memref<1x128xf32, #tpu.memory_space<vmem>>, %arg4: memref<128x128xf32, #tpu.memory_space<vmem>>) attributes {dimension_semantics = [#tpu.dimension_semantics<parallel>], iteration_bounds = array<i64: 2>, scalar_prefetch = 0 : i64, scratch_operands = 0 : i64, tpu.core_type = #tpu.core_type<tc>, window_params = [{transform_indices = @transform_0, window_bounds = array<i64: 1, 160, 16>}, {pipeline_mode = #tpu.pipeline_mode<synchronous>, transform_indices = @transform_1, window_bounds = array<i64: 4, 16, 128>}, {pipeline_mode = #tpu.pipeline_mode<synchronous>, transform_indices = @transform_2, window_bounds = array<i64: 1, 128>}, {transform_indices = @transform_3, window_bounds = array<i64: 128, 128>}]} {
    %c0 = arith.constant 0 : index
    %c0_0 = arith.constant 0 : index
    %c0_1 = arith.constant 0 : index
    %0 = vector.load %arg1[%c0, %c0_0, %c0_1] : memref<1x160x16xbf16, #tpu.memory_space<vmem>>, vector<1x128x16xbf16>
    %1 = vector.shape_cast %0 : vector<1x128x16xbf16> to vector<128x16xbf16>
    %c0_2 = arith.constant 0 : index
    %c0_3 = arith.constant 0 : index
    %c0_4 = arith.constant 0 : index
    %2 = vector.load %arg2[%c0_2, %c0_3, %c0_4] : memref<4x16x128xbf16, #tpu.memory_space<vmem>>, vector<1x16x128xbf16>
    %3 = vector.shape_cast %2 : vector<1x16x128xbf16> to vector<16x128xbf16>
    %cst = arith.constant dense<0.000000e+00> : vector<128x128xf32>
    %4 = tpu.matmul %1, %3, %cst {dimension_numbers = #tpu.dot_dimension_numbers<[1], [0], [0], [1], [0, 0, 1, 1], [], []>} : vector<128x16xbf16>, vector<16x128xbf16>, vector<128x128xf32> -> vector<128x128xf32>
    %c0_5 = arith.constant 0 : index
    %c1 = arith.constant 1 : index
    %c0_6 = arith.constant 0 : index
    %5 = vector.load %arg1[%c0_5, %c1, %c0_6] : memref<1x160x16xbf16, #tpu.memory_space<vmem>>, vector<1x128x16xbf16>
    %6 = vector.shape_cast %5 : vector<1x128x16xbf16> to vector<128x16xbf16>
    %c1_7 = arith.constant 1 : index
    %c0_8 = arith.constant 0 : index
    %c0_9 = arith.constant 0 : index
    %7 = vector.load %arg2[%c1_7, %c0_8, %c0_9] : memref<4x16x128xbf16, #tpu.memory_space<vmem>>, vector<1x16x128xbf16>
    %8 = vector.shape_cast %7 : vector<1x16x128xbf16> to vector<16x128xbf16>
    %cst_10 = arith.constant dense<0.000000e+00> : vector<128x128xf32>
    %9 = tpu.matmul %6, %8, %cst_10 {dimension_numbers = #tpu.dot_dimension_numbers<[1], [0], [0], [1], [0, 0, 1, 1], [], []>} : vector<128x16xbf16>, vector<16x128xbf16>, vector<128x128xf32> -> vector<128x128xf32>
    %10 = arith.addf %4, %9 : vector<128x128xf32>
    %c0_11 = arith.constant 0 : index
    %c16 = arith.constant 16 : index
    %c0_12 = arith.constant 0 : index
    %11 = vector.load %arg1[%c0_11, %c16, %c0_12] : memref<1x160x16xbf16, #tpu.memory_space<vmem>>, vector<1x128x16xbf16>
    %12 = vector.shape_cast %11 : vector<1x128x16xbf16> to vector<128x16xbf16>
    %c2 = arith.constant 2 : index
    %c0_13 = arith.constant 0 : index
    %c0_14 = arith.constant 0 : index
    %13 = vector.load %arg2[%c2, %c0_13, %c0_14] : memref<4x16x128xbf16, #tpu.memory_space<vmem>>, vector<1x16x128xbf16>
    %14 = vector.shape_cast %13 : vector<1x16x128xbf16> to vector<16x128xbf16>
    %cst_15 = arith.constant dense<0.000000e+00> : vector<128x128xf32>
    %15 = tpu.matmul %12, %14, %cst_15 {dimension_numbers = #tpu.dot_dimension_numbers<[1], [0], [0], [1], [0, 0, 1, 1], [], []>} : vector<128x16xbf16>, vector<16x128xbf16>, vector<128x128xf32> -> vector<128x128xf32>
    %16 = arith.addf %10, %15 : vector<128x128xf32>
    %c0_16 = arith.constant 0 : index
    %c17 = arith.constant 17 : index
    %c0_17 = arith.constant 0 : index
    %17 = vector.load %arg1[%c0_16, %c17, %c0_17] : memref<1x160x16xbf16, #tpu.memory_space<vmem>>, vector<1x128x16xbf16>
    %18 = vector.shape_cast %17 : vector<1x128x16xbf16> to vector<128x16xbf16>
    %c3 = arith.constant 3 : index
    %c0_18 = arith.constant 0 : index
    %c0_19 = arith.constant 0 : index
    %19 = vector.load %arg2[%c3, %c0_18, %c0_19] : memref<4x16x128xbf16, #tpu.memory_space<vmem>>, vector<1x16x128xbf16>
    %20 = vector.shape_cast %19 : vector<1x16x128xbf16> to vector<16x128xbf16>
    %cst_20 = arith.constant dense<0.000000e+00> : vector<128x128xf32>
    %21 = tpu.matmul %18, %20, %cst_20 {dimension_numbers = #tpu.dot_dimension_numbers<[1], [0], [0], [1], [0, 0, 1, 1], [], []>} : vector<128x16xbf16>, vector<16x128xbf16>, vector<128x128xf32> -> vector<128x128xf32>
    %22 = arith.addf %16, %21 : vector<128x128xf32>
    %c0_21 = arith.constant 0 : index
    %c0_22 = arith.constant 0 : index
    %23 = vector.load %arg3[%c0_21, %c0_22] : memref<1x128xf32, #tpu.memory_space<vmem>>, vector<1x128xf32>
    %24 = vector.broadcast %23 : vector<1x128xf32> to vector<128x128xf32>
    %25 = arith.addf %22, %24 : vector<128x128xf32>
    %cst_23 = arith.constant 0.000000e+00 : f32
    %26 = vector.broadcast %cst_23 : f32 to vector<128x128xf32>
    %27 = arith.maximumf %25, %26 : vector<128x128xf32>
    %c0_24 = arith.constant 0 : index
    %c0_25 = arith.constant 0 : index
    %28 = vector.load %arg4[%c0_24, %c0_25] : memref<128x128xf32, #tpu.memory_space<vmem>>, vector<128x128xf32>
    tpu.vector_store %arg4[%c0_24, %c0_25], %27 {strides = array<i32>} : memref<128x128xf32, #tpu.memory_space<vmem>>, vector<128x128xf32>,
    return
  }
  func.func @transform_0(%arg0: i32) -> (i32, i32, i32) {
    %c0_i32 = arith.constant 0 : i32
    %c0_i32_0 = arith.constant 0 : i32
    %c0_i32_1 = arith.constant 0 : i32
    return %arg0, %c0_i32, %c0_i32_0 : i32, i32, i32
  }
  func.func @transform_1(%arg0: i32) -> (i32, i32, i32) {
    %c0_i32 = arith.constant 0 : i32
    %c0_i32_0 = arith.constant 0 : i32
    %c0_i32_1 = arith.constant 0 : i32
    %c0_i32_2 = arith.constant 0 : i32
    return %c0_i32, %c0_i32_0, %c0_i32_1 : i32, i32, i32
  }
  func.func @transform_2(%arg0: i32) -> (i32, i32) {
    %c0_i32 = arith.constant 0 : i32
    %c0_i32_0 = arith.constant 0 : i32
    %c0_i32_1 = arith.constant 0 : i32
    return %c0_i32, %c0_i32_0 : i32, i32
  }
  func.func @transform_3(%arg0: i32) -> (i32, i32) {
    %c0_i32 = arith.constant 0 : i32
    %c0_i32_0 = arith.constant 0 : i32
    return %arg0, %c0_i32 : i32, i32
  }
}

module attributes {stable_mosaic.version = 11 : i64} {
  func.func @_conv_tap_kernel(%arg0: i32, %arg1: memref<1x72x8xbf16, #tpu.memory_space<vmem>>, %arg2: memref<1x8x128xbf16, #tpu.memory_space<vmem>>, %arg3: memref<1x128xf32, #tpu.memory_space<vmem>>, %arg4: memref<64x128xf32, #tpu.memory_space<vmem>>) attributes {dimension_semantics = [#tpu.dimension_semantics<parallel>], iteration_bounds = array<i64: 2>, scalar_prefetch = 0 : i64, scratch_operands = 0 : i64, tpu.core_type = #tpu.core_type<tc>, window_params = [{transform_indices = @transform_0, window_bounds = array<i64: 1, 72, 8>}, {pipeline_mode = #tpu.pipeline_mode<synchronous>, transform_indices = @transform_1, window_bounds = array<i64: 1, 8, 128>}, {pipeline_mode = #tpu.pipeline_mode<synchronous>, transform_indices = @transform_2, window_bounds = array<i64: 1, 128>}, {transform_indices = @transform_3, window_bounds = array<i64: 64, 128>}]} {
    %c0 = arith.constant 0 : index
    %c0_0 = arith.constant 0 : index
    %c0_1 = arith.constant 0 : index
    %0 = vector.load %arg1[%c0, %c0_0, %c0_1] : memref<1x72x8xbf16, #tpu.memory_space<vmem>>, vector<1x64x8xbf16>
    %1 = vector.shape_cast %0 : vector<1x64x8xbf16> to vector<64x8xbf16>
    %c0_2 = arith.constant 0 : index
    %c0_3 = arith.constant 0 : index
    %c0_4 = arith.constant 0 : index
    %2 = vector.load %arg2[%c0_2, %c0_3, %c0_4] : memref<1x8x128xbf16, #tpu.memory_space<vmem>>, vector<1x8x128xbf16>
    %3 = vector.shape_cast %2 : vector<1x8x128xbf16> to vector<8x128xbf16>
    %cst = arith.constant dense<0.000000e+00> : vector<64x128xf32>
    %4 = tpu.matmul %1, %3, %cst {dimension_numbers = #tpu.dot_dimension_numbers<[1], [0], [0], [1], [0, 0, 1, 1], [], []>} : vector<64x8xbf16>, vector<8x128xbf16>, vector<64x128xf32> -> vector<64x128xf32>
    %c0_5 = arith.constant 0 : index
    %c0_6 = arith.constant 0 : index
    %5 = vector.load %arg3[%c0_5, %c0_6] : memref<1x128xf32, #tpu.memory_space<vmem>>, vector<1x128xf32>
    %6 = vector.broadcast %5 : vector<1x128xf32> to vector<64x128xf32>
    %7 = arith.addf %4, %6 : vector<64x128xf32>
    %c0_7 = arith.constant 0 : index
    %c0_8 = arith.constant 0 : index
    %8 = vector.load %arg4[%c0_7, %c0_8] : memref<64x128xf32, #tpu.memory_space<vmem>>, vector<64x128xf32>
    tpu.vector_store %arg4[%c0_7, %c0_8], %7 {strides = array<i32>} : memref<64x128xf32, #tpu.memory_space<vmem>>, vector<64x128xf32>,
    return
  }
  func.func @transform_0(%arg0: i32) -> (i32, i32, i32) {
    %c0_i32 = arith.constant 0 : i32
    %c0_i32_0 = arith.constant 0 : i32
    %c0_i32_1 = arith.constant 0 : i32
    return %arg0, %c0_i32, %c0_i32_0 : i32, i32, i32
  }
  func.func @transform_1(%arg0: i32) -> (i32, i32, i32) {
    %c0_i32 = arith.constant 0 : i32
    %c0_i32_0 = arith.constant 0 : i32
    %c0_i32_1 = arith.constant 0 : i32
    %c0_i32_2 = arith.constant 0 : i32
    return %c0_i32, %c0_i32_0, %c0_i32_1 : i32, i32, i32
  }
  func.func @transform_2(%arg0: i32) -> (i32, i32) {
    %c0_i32 = arith.constant 0 : i32
    %c0_i32_0 = arith.constant 0 : i32
    %c0_i32_1 = arith.constant 0 : i32
    return %c0_i32, %c0_i32_0 : i32, i32
  }
  func.func @transform_3(%arg0: i32) -> (i32, i32) {
    %c0_i32 = arith.constant 0 : i32
    %c0_i32_0 = arith.constant 0 : i32
    return %arg0, %c0_i32 : i32, i32
  }
}

module attributes {stable_mosaic.version = 11 : i64} {
  func.func @_conv_tap_kernel(%arg0: i32, %arg1: memref<1x176x8xbf16, #tpu.memory_space<vmem>>, %arg2: memref<9x8x128xbf16, #tpu.memory_space<vmem>>, %arg3: memref<1x128xf32, #tpu.memory_space<vmem>>, %arg4: memref<128x128xf32, #tpu.memory_space<vmem>>, %arg5: memref<128x128xf32, #tpu.memory_space<vmem>>) attributes {dimension_semantics = [#tpu.dimension_semantics<parallel>], iteration_bounds = array<i64: 2>, scalar_prefetch = 0 : i64, scratch_operands = 0 : i64, tpu.core_type = #tpu.core_type<tc>, window_params = [{transform_indices = @transform_0, window_bounds = array<i64: 1, 176, 8>}, {pipeline_mode = #tpu.pipeline_mode<synchronous>, transform_indices = @transform_1, window_bounds = array<i64: 9, 8, 128>}, {pipeline_mode = #tpu.pipeline_mode<synchronous>, transform_indices = @transform_2, window_bounds = array<i64: 1, 128>}, {transform_indices = @transform_3, window_bounds = array<i64: 128, 128>}, {transform_indices = @transform_4, window_bounds = array<i64: 128, 128>}]} {
    %c0 = arith.constant 0 : index
    %c0_0 = arith.constant 0 : index
    %c0_1 = arith.constant 0 : index
    %0 = vector.load %arg1[%c0, %c0_0, %c0_1] : memref<1x176x8xbf16, #tpu.memory_space<vmem>>, vector<1x128x8xbf16>
    %1 = vector.shape_cast %0 : vector<1x128x8xbf16> to vector<128x8xbf16>
    %c0_2 = arith.constant 0 : index
    %c0_3 = arith.constant 0 : index
    %c0_4 = arith.constant 0 : index
    %2 = vector.load %arg2[%c0_2, %c0_3, %c0_4] : memref<9x8x128xbf16, #tpu.memory_space<vmem>>, vector<1x8x128xbf16>
    %3 = vector.shape_cast %2 : vector<1x8x128xbf16> to vector<8x128xbf16>
    %cst = arith.constant dense<0.000000e+00> : vector<128x128xf32>
    %4 = tpu.matmul %1, %3, %cst {dimension_numbers = #tpu.dot_dimension_numbers<[1], [0], [0], [1], [0, 0, 1, 1], [], []>} : vector<128x8xbf16>, vector<8x128xbf16>, vector<128x128xf32> -> vector<128x128xf32>
    %c0_5 = arith.constant 0 : index
    %c1 = arith.constant 1 : index
    %c0_6 = arith.constant 0 : index
    %5 = vector.load %arg1[%c0_5, %c1, %c0_6] : memref<1x176x8xbf16, #tpu.memory_space<vmem>>, vector<1x128x8xbf16>
    %6 = vector.shape_cast %5 : vector<1x128x8xbf16> to vector<128x8xbf16>
    %c1_7 = arith.constant 1 : index
    %c0_8 = arith.constant 0 : index
    %c0_9 = arith.constant 0 : index
    %7 = vector.load %arg2[%c1_7, %c0_8, %c0_9] : memref<9x8x128xbf16, #tpu.memory_space<vmem>>, vector<1x8x128xbf16>
    %8 = vector.shape_cast %7 : vector<1x8x128xbf16> to vector<8x128xbf16>
    %cst_10 = arith.constant dense<0.000000e+00> : vector<128x128xf32>
    %9 = tpu.matmul %6, %8, %cst_10 {dimension_numbers = #tpu.dot_dimension_numbers<[1], [0], [0], [1], [0, 0, 1, 1], [], []>} : vector<128x8xbf16>, vector<8x128xbf16>, vector<128x128xf32> -> vector<128x128xf32>
    %10 = arith.addf %4, %9 : vector<128x128xf32>
    %c0_11 = arith.constant 0 : index
    %c2 = arith.constant 2 : index
    %c0_12 = arith.constant 0 : index
    %11 = vector.load %arg1[%c0_11, %c2, %c0_12] : memref<1x176x8xbf16, #tpu.memory_space<vmem>>, vector<1x128x8xbf16>
    %12 = vector.shape_cast %11 : vector<1x128x8xbf16> to vector<128x8xbf16>
    %c2_13 = arith.constant 2 : index
    %c0_14 = arith.constant 0 : index
    %c0_15 = arith.constant 0 : index
    %13 = vector.load %arg2[%c2_13, %c0_14, %c0_15] : memref<9x8x128xbf16, #tpu.memory_space<vmem>>, vector<1x8x128xbf16>
    %14 = vector.shape_cast %13 : vector<1x8x128xbf16> to vector<8x128xbf16>
    %cst_16 = arith.constant dense<0.000000e+00> : vector<128x128xf32>
    %15 = tpu.matmul %12, %14, %cst_16 {dimension_numbers = #tpu.dot_dimension_numbers<[1], [0], [0], [1], [0, 0, 1, 1], [], []>} : vector<128x8xbf16>, vector<8x128xbf16>, vector<128x128xf32> -> vector<128x128xf32>
    %16 = arith.addf %10, %15 : vector<128x128xf32>
    %c0_17 = arith.constant 0 : index
    %c16 = arith.constant 16 : index
    %c0_18 = arith.constant 0 : index
    %17 = vector.load %arg1[%c0_17, %c16, %c0_18] : memref<1x176x8xbf16, #tpu.memory_space<vmem>>, vector<1x128x8xbf16>
    %18 = vector.shape_cast %17 : vector<1x128x8xbf16> to vector<128x8xbf16>
    %c3 = arith.constant 3 : index
    %c0_19 = arith.constant 0 : index
    %c0_20 = arith.constant 0 : index
    %19 = vector.load %arg2[%c3, %c0_19, %c0_20] : memref<9x8x128xbf16, #tpu.memory_space<vmem>>, vector<1x8x128xbf16>
    %20 = vector.shape_cast %19 : vector<1x8x128xbf16> to vector<8x128xbf16>
    %cst_21 = arith.constant dense<0.000000e+00> : vector<128x128xf32>
    %21 = tpu.matmul %18, %20, %cst_21 {dimension_numbers = #tpu.dot_dimension_numbers<[1], [0], [0], [1], [0, 0, 1, 1], [], []>} : vector<128x8xbf16>, vector<8x128xbf16>, vector<128x128xf32> -> vector<128x128xf32>
    %22 = arith.addf %16, %21 : vector<128x128xf32>
    %c0_22 = arith.constant 0 : index
    %c17 = arith.constant 17 : index
    %c0_23 = arith.constant 0 : index
    %23 = vector.load %arg1[%c0_22, %c17, %c0_23] : memref<1x176x8xbf16, #tpu.memory_space<vmem>>, vector<1x128x8xbf16>
    %24 = vector.shape_cast %23 : vector<1x128x8xbf16> to vector<128x8xbf16>
    %c4 = arith.constant 4 : index
    %c0_24 = arith.constant 0 : index
    %c0_25 = arith.constant 0 : index
    %25 = vector.load %arg2[%c4, %c0_24, %c0_25] : memref<9x8x128xbf16, #tpu.memory_space<vmem>>, vector<1x8x128xbf16>
    %26 = vector.shape_cast %25 : vector<1x8x128xbf16> to vector<8x128xbf16>
    %cst_26 = arith.constant dense<0.000000e+00> : vector<128x128xf32>
    %27 = tpu.matmul %24, %26, %cst_26 {dimension_numbers = #tpu.dot_dimension_numbers<[1], [0], [0], [1], [0, 0, 1, 1], [], []>} : vector<128x8xbf16>, vector<8x128xbf16>, vector<128x128xf32> -> vector<128x128xf32>
    %28 = arith.addf %22, %27 : vector<128x128xf32>
    %c0_27 = arith.constant 0 : index
    %c18 = arith.constant 18 : index
    %c0_28 = arith.constant 0 : index
    %29 = vector.load %arg1[%c0_27, %c18, %c0_28] : memref<1x176x8xbf16, #tpu.memory_space<vmem>>, vector<1x128x8xbf16>
    %30 = vector.shape_cast %29 : vector<1x128x8xbf16> to vector<128x8xbf16>
    %c5 = arith.constant 5 : index
    %c0_29 = arith.constant 0 : index
    %c0_30 = arith.constant 0 : index
    %31 = vector.load %arg2[%c5, %c0_29, %c0_30] : memref<9x8x128xbf16, #tpu.memory_space<vmem>>, vector<1x8x128xbf16>
    %32 = vector.shape_cast %31 : vector<1x8x128xbf16> to vector<8x128xbf16>
    %cst_31 = arith.constant dense<0.000000e+00> : vector<128x128xf32>
    %33 = tpu.matmul %30, %32, %cst_31 {dimension_numbers = #tpu.dot_dimension_numbers<[1], [0], [0], [1], [0, 0, 1, 1], [], []>} : vector<128x8xbf16>, vector<8x128xbf16>, vector<128x128xf32> -> vector<128x128xf32>
    %34 = arith.addf %28, %33 : vector<128x128xf32>
    %c0_32 = arith.constant 0 : index
    %c32 = arith.constant 32 : index
    %c0_33 = arith.constant 0 : index
    %35 = vector.load %arg1[%c0_32, %c32, %c0_33] : memref<1x176x8xbf16, #tpu.memory_space<vmem>>, vector<1x128x8xbf16>
    %36 = vector.shape_cast %35 : vector<1x128x8xbf16> to vector<128x8xbf16>
    %c6 = arith.constant 6 : index
    %c0_34 = arith.constant 0 : index
    %c0_35 = arith.constant 0 : index
    %37 = vector.load %arg2[%c6, %c0_34, %c0_35] : memref<9x8x128xbf16, #tpu.memory_space<vmem>>, vector<1x8x128xbf16>
    %38 = vector.shape_cast %37 : vector<1x8x128xbf16> to vector<8x128xbf16>
    %cst_36 = arith.constant dense<0.000000e+00> : vector<128x128xf32>
    %39 = tpu.matmul %36, %38, %cst_36 {dimension_numbers = #tpu.dot_dimension_numbers<[1], [0], [0], [1], [0, 0, 1, 1], [], []>} : vector<128x8xbf16>, vector<8x128xbf16>, vector<128x128xf32> -> vector<128x128xf32>
    %40 = arith.addf %34, %39 : vector<128x128xf32>
    %c0_37 = arith.constant 0 : index
    %c33 = arith.constant 33 : index
    %c0_38 = arith.constant 0 : index
    %41 = vector.load %arg1[%c0_37, %c33, %c0_38] : memref<1x176x8xbf16, #tpu.memory_space<vmem>>, vector<1x128x8xbf16>
    %42 = vector.shape_cast %41 : vector<1x128x8xbf16> to vector<128x8xbf16>
    %c7 = arith.constant 7 : index
    %c0_39 = arith.constant 0 : index
    %c0_40 = arith.constant 0 : index
    %43 = vector.load %arg2[%c7, %c0_39, %c0_40] : memref<9x8x128xbf16, #tpu.memory_space<vmem>>, vector<1x8x128xbf16>
    %44 = vector.shape_cast %43 : vector<1x8x128xbf16> to vector<8x128xbf16>
    %cst_41 = arith.constant dense<0.000000e+00> : vector<128x128xf32>
    %45 = tpu.matmul %42, %44, %cst_41 {dimension_numbers = #tpu.dot_dimension_numbers<[1], [0], [0], [1], [0, 0, 1, 1], [], []>} : vector<128x8xbf16>, vector<8x128xbf16>, vector<128x128xf32> -> vector<128x128xf32>
    %46 = arith.addf %40, %45 : vector<128x128xf32>
    %c0_42 = arith.constant 0 : index
    %c34 = arith.constant 34 : index
    %c0_43 = arith.constant 0 : index
    %47 = vector.load %arg1[%c0_42, %c34, %c0_43] : memref<1x176x8xbf16, #tpu.memory_space<vmem>>, vector<1x128x8xbf16>
    %48 = vector.shape_cast %47 : vector<1x128x8xbf16> to vector<128x8xbf16>
    %c8 = arith.constant 8 : index
    %c0_44 = arith.constant 0 : index
    %c0_45 = arith.constant 0 : index
    %49 = vector.load %arg2[%c8, %c0_44, %c0_45] : memref<9x8x128xbf16, #tpu.memory_space<vmem>>, vector<1x8x128xbf16>
    %50 = vector.shape_cast %49 : vector<1x8x128xbf16> to vector<8x128xbf16>
    %cst_46 = arith.constant dense<0.000000e+00> : vector<128x128xf32>
    %51 = tpu.matmul %48, %50, %cst_46 {dimension_numbers = #tpu.dot_dimension_numbers<[1], [0], [0], [1], [0, 0, 1, 1], [], []>} : vector<128x8xbf16>, vector<8x128xbf16>, vector<128x128xf32> -> vector<128x128xf32>
    %52 = arith.addf %46, %51 : vector<128x128xf32>
    %c0_47 = arith.constant 0 : index
    %c0_48 = arith.constant 0 : index
    %53 = vector.load %arg3[%c0_47, %c0_48] : memref<1x128xf32, #tpu.memory_space<vmem>>, vector<1x128xf32>
    %54 = vector.broadcast %53 : vector<1x128xf32> to vector<128x128xf32>
    %55 = arith.addf %52, %54 : vector<128x128xf32>
    %c0_49 = arith.constant 0 : index
    %c0_50 = arith.constant 0 : index
    %56 = vector.load %arg4[%c0_49, %c0_50] : memref<128x128xf32, #tpu.memory_space<vmem>>, vector<128x128xf32>
    %57 = arith.addf %55, %56 : vector<128x128xf32>
    %cst_51 = arith.constant 0.000000e+00 : f32
    %58 = vector.broadcast %cst_51 : f32 to vector<128x128xf32>
    %59 = arith.maximumf %57, %58 : vector<128x128xf32>
    %c0_52 = arith.constant 0 : index
    %c0_53 = arith.constant 0 : index
    %60 = vector.load %arg5[%c0_52, %c0_53] : memref<128x128xf32, #tpu.memory_space<vmem>>, vector<128x128xf32>
    tpu.vector_store %arg5[%c0_52, %c0_53], %59 {strides = array<i32>} : memref<128x128xf32, #tpu.memory_space<vmem>>, vector<128x128xf32>,
    return
  }
  func.func @transform_0(%arg0: i32) -> (i32, i32, i32) {
    %c0_i32 = arith.constant 0 : i32
    %c0_i32_0 = arith.constant 0 : i32
    %c0_i32_1 = arith.constant 0 : i32
    return %arg0, %c0_i32, %c0_i32_0 : i32, i32, i32
  }
  func.func @transform_1(%arg0: i32) -> (i32, i32, i32) {
    %c0_i32 = arith.constant 0 : i32
    %c0_i32_0 = arith.constant 0 : i32
    %c0_i32_1 = arith.constant 0 : i32
    %c0_i32_2 = arith.constant 0 : i32
    return %c0_i32, %c0_i32_0, %c0_i32_1 : i32, i32, i32
  }
  func.func @transform_2(%arg0: i32) -> (i32, i32) {
    %c0_i32 = arith.constant 0 : i32
    %c0_i32_0 = arith.constant 0 : i32
    %c0_i32_1 = arith.constant 0 : i32
    return %c0_i32, %c0_i32_0 : i32, i32
  }
  func.func @transform_3(%arg0: i32) -> (i32, i32) {
    %c0_i32 = arith.constant 0 : i32
    %c0_i32_0 = arith.constant 0 : i32
    return %arg0, %c0_i32 : i32, i32
  }
  func.func @transform_4(%arg0: i32) -> (i32, i32) {
    %c0_i32 = arith.constant 0 : i32
    %c0_i32_0 = arith.constant 0 : i32
    return %arg0, %c0_i32 : i32, i32
  }
}

</mosaic_0001>

<llo_original>
// kernel: basic_block_forward.4
$region0: #{basic_block_forward.4}
  #allocation0 [shape = 'u32[]', space=smem, size = 0x4, offset = 0x4, fixed_abs, tag = 'smem constant byte address 0x4 - core index']
  #allocation1 [shape = 'u32[144,128]{1,0:T(1,128)}', space=vmem, size = 0x12000, scoped, tag = 'internal scratch']
  %s0 = inlined_call_operand.vmem [shape: bf16[2,72,8], index: 0, kind: input, shape index: {}]
  %s1 = inlined_call_operand.vmem [shape: bf16[1,8,128], index: 1, kind: input, shape index: {}]
  %s2 = inlined_call_operand.vmem [shape: f32[1,128], index: 2, kind: input, shape index: {}]
  %s3 = inlined_call_operand.vmem [shape: f32[128,128], index: 3, kind: output, shape index: {}]
  %s4 = sld [smem:[#allocation0]]
  $region45: #{basic_block_forward.4} parent=0
    _
  %s6 = ssub.s32 1, %s4
  %s7 = scalar_select 0, %s6, %s4
  loop: start=0, step=1, limit=4
  $region2: #{basic_block_forward.4} parent=0 // loop_pre_header
    _
  $region3: #{basic_block_forward.4} parent=0 // loop_header
    %s9 = sphi 0, %s13
    %p10 = scmp.ge.s32.totalorder %s9, 4
    %s19 = sphi 0, %s21
    %s22 = sphi 0, %s19
    %s23 = sphi 0, %s22
    %s39 = sphi 0, %s23
    %s43 = sphi 0, %s43
    %s45 = sphi 0, %s43
    %s46 = sphi 0, %s45
    %s60 = sphi 0, %s46
    %s64 = sphi 0, %s64
    %s66 = sphi 0, %s64
    %s67 = sphi 0, %s66
    %s81 = sphi 0, %s67
    %s87 = sphi 0, %s89
    %s90 = sphi 0, %s87
    %s91 = sphi 0, %s90
    %s107 = sphi 0, %s91
  $region4: #{basic_block_forward.4} parent=0 // loop_header_branch
    %12 = sbr.rel (%p10) target = $region8
  $region5: #{basic_block_forward.4} parent=0 // loop_body
    %s14 = ssub.s32 %s9, 1
    %s15 = ssub.s32 %s9, 2
    %s16 = sadd.s32 %s9, 1
    %s17 = ssub.s32 %s9, %s16
    %p18 = scmp.eq.s32.totalorder %s17, 0
    %s20 = sadd.s32 %s19, 1
    %s21 = scalar_select %p18, %s19, %s20
    %p24 = pneg %p18
    %p25 = scmp.eq.s32.totalorder %s9, 1
    %p26 = por %p24, %p25
    %p27 = scmp.ne.s32.totalorder %s19, %s22
    %p28 = scmp.eq.s32.totalorder %s9, 0
    %p29 = por %p27, %p28
    %p30 = scmp.ne.s32.totalorder %s19, %s22
    %p31 = scmp.eq.s32.totalorder %s14, 1
    %p32 = por %p30, %p31
    %p33 = scmp.ne.s32.totalorder %s22, %s23
    %p34 = scmp.eq.s32.totalorder %s14, 0
    %p35 = por %p33, %p34
    %p36 = scmp.ne.s32.totalorder %s22, %s23
    %p37 = scmp.eq.s32.totalorder %s15, 1
    %p38 = por %p36, %p37
    %p40 = scmp.ne.s32.totalorder %s23, %s39
    %p41 = scmp.eq.s32.totalorder %s15, 0
    %p42 = por %p40, %p41
    %s44 = sadd.s32 %s43, 1
    %p47 = scmp.eq.s32.totalorder %s9, 1
    %p48 = scmp.ne.s32.totalorder %s43, %s45
    %p49 = scmp.eq.s32.totalorder %s9, 0
    %p50 = por %p48, %p49
    %p51 = scmp.ne.s32.totalorder %s43, %s45
    %p52 = scmp.eq.s32.totalorder %s14, 1
    %p53 = por %p51, %p52
    %p54 = scmp.ne.s32.totalorder %s45, %s46
    %p55 = scmp.eq.s32.totalorder %s14, 0
    %p56 = por %p54, %p55
    %p57 = scmp.ne.s32.totalorder %s45, %s46
    %p58 = scmp.eq.s32.totalorder %s15, 1
    %p59 = por %p57, %p58
    %p61 = scmp.ne.s32.totalorder %s46, %s60
    %p62 = scmp.eq.s32.totalorder %s15, 0
    %p63 = por %p61, %p62
    %s65 = sadd.s32 %s64, 1
    %p68 = scmp.eq.s32.totalorder %s9, 1
    %p69 = scmp.ne.s32.totalorder %s64, %s66
    %p70 = scmp.eq.s32.totalorder %s9, 0
    %p71 = por %p69, %p70
    %p72 = scmp.ne.s32.totalorder %s64, %s66
    %p73 = scmp.eq.s32.totalorder %s14, 1
    %p74 = por %p72, %p73
    %p75 = scmp.ne.s32.totalorder %s66, %s67
    %p76 = scmp.eq.s32.totalorder %s14, 0
    %p77 = por %p75, %p76
    %p78 = scmp.ne.s32.totalorder %s66, %s67
    %p79 = scmp.eq.s32.totalorder %s15, 1
    %p80 = por %p78, %p79
    %p82 = scmp.ne.s32.totalorder %s67, %s81
    %p83 = scmp.eq.s32.totalorder %s15, 0
    %p84 = por %p82, %p83
    %s85 = ssub.s32 %s9, %s16
    %p86 = scmp.eq.s32.totalorder %s85, 0
    %s88 = sadd.s32 %s87, 1
    %s89 = scalar_select %p86, %s87, %s88
    %p92 = pneg %p86
    %p93 = scmp.eq.s32.totalorder %s9, 1
    %p94 = por %p92, %p93
    %p95 = scmp.ne.s32.totalorder %s87, %s90
    %p96 = scmp.eq.s32.totalorder %s9, 0
    %p97 = por %p95, %p96
    %p98 = scmp.ne.s32.totalorder %s87, %s90
    %p99 = scmp.eq.s32.totalorder %s14, 1
    %p100 = por %p98, %p99
    %p101 = scmp.ne.s32.totalorder %s90, %s91
    %p102 = scmp.eq.s32.totalorder %s14, 0
    %p103 = por %p101, %p102
    %p104 = scmp.ne.s32.totalorder %s90, %s91
    %p105 = scmp.eq.s32.totalorder %s15, 1
    %p106 = por %p104, %p105
    %p108 = scmp.ne.s32.totalorder %s91, %s107
    %p109 = scmp.eq.s32.totalorder %s15, 0
    %p110 = por %p108, %p109
    %p111 = scmp.le.s32.totalorder 1, %s9
    %p112 = scmp.lt.s32.totalorder %s9, 3
    %p113 = pnand %p111, %p112
    %p114 = pneg %p113
    // Predicated region
    $region9: #{basic_block_forward.4} parent=5 // pred_check
      _
    $region10: #{basic_block_forward.4} parent=5 // pred_check_branch
      %116 = sbr.rel (%p113) target = $region12
    $region11: #{basic_block_forward.4} parent=5 // pred_region
      %s117 = ssub.s32 %s9, 1
      // Predicated region
      $region13: #{basic_block_forward.4} parent=11 // pred_check
        %p118 = pneg %p56
      $region14: #{basic_block_forward.4} parent=11 // pred_check_branch
        %120 = sbr.rel (%p118) target = $region16
      $region15: #{basic_block_forward.4} parent=11 // pred_region
        _
      $region16: #{basic_block_forward.4} parent=11 // pred_fallthru
        _
      // Predicated region
      $region17: #{basic_block_forward.4} parent=11 // pred_check
        %p121 = pneg %p77
      $region18: #{basic_block_forward.4} parent=11 // pred_check_branch
        %123 = sbr.rel (%p121) target = $region20
      $region19: #{basic_block_forward.4} parent=11 // pred_region
        _
      $region20: #{basic_block_forward.4} parent=11 // pred_fallthru
        _
    $region12: #{basic_block_forward.4} parent=5 // pred_fallthru
      _
    %p124 = scmp.lt.s32.totalorder %s9, 2
    // Predicated region
    $region21: #{basic_block_forward.4} parent=5 // pred_check
      %p125 = pneg %p124
    $region22: #{basic_block_forward.4} parent=5 // pred_check_branch
      %127 = sbr.rel (%p125) target = $region24
    $region23: #{basic_block_forward.4} parent=5 // pred_region
      // Predicated region
      $region25: #{basic_block_forward.4} parent=23 // pred_check
        %p128 = pneg %p29
      $region26: #{basic_block_forward.4} parent=23 // pred_check_branch
        %130 = sbr.rel (%p128) target = $region28
      $region27: #{basic_block_forward.4} parent=23 // pred_region
        %p131 = scmp.lt.s32.totalorder %s9, 1
        %s132 = scalar_select %p131, %s9, 1
        %s133 = smul.addr %s132, 9
        %s134 = smul.addr %s133, 4
        %s135 = scalar_lea.vmem %s0, %s134
      $region28: #{basic_block_forward.4} parent=23 // pred_fallthru
        _
    $region24: #{basic_block_forward.4} parent=5 // pred_fallthru
      _
    %p136 = scmp.le.s32.totalorder 1, %s9
    %p137 = scmp.lt.s32.totalorder %s9, 3
    %p138 = pnand %p136, %p137
    %p139 = pneg %p138
    // Predicated region
    $region29: #{basic_block_forward.4} parent=5 // pred_check
      _
    $region30: #{basic_block_forward.4} parent=5 // pred_check_branch
      %141 = sbr.rel (%p138) target = $region32
    $region31: #{basic_block_forward.4} parent=5 // pred_region
      %s142 = ssub.s32 %s9, 1
      %p143 = scmp.lt.s32.totalorder %s14, 1
      %s144 = scalar_select %p143, %s14, 1
      %s145 = smul.addr %s144, 9
      %s146 = smul.addr %s145, 4
      %s147 = scalar_lea.vmem %s0, %s146
      %p148 = pneg %p35
      %p149 = pneg %p32
      %p150 = pneg %p56
      %p151 = pneg %p53
      %p152 = pneg %p77
      %p153 = pneg %p74
      %p154 = pneg %p103
      %p155 = pneg %p100
      %s156 = smul.u32 8, %s14
      %p157 = scmp.lt.s32.totalorder %s156, 15
      %s158 = scalar_select %p157, %s156, 15
      %s159 = smul.addr %s158, 8
      %s160 = scalar_lea.vmem %s3, %s159
      %p161 = scmp.lt.s32.totalorder %s14, 1
      %s162 = scalar_select %p161, %s14, 1
      %s163 = smul.addr %s162, 9
      %s164 = smul.addr %s163, 4
      %s165 = scalar_lea.vmem %s0, %s164
      %s166 = smul.u32 8, %s14
      %p167 = scmp.lt.s32.totalorder %s166, 15
      %s168 = scalar_select %p167, %s166, 15
      %s169 = smul.addr %s168, 8
      %s170 = scalar_lea.vmem %s3, %s169
      %s171 = smul.u32 8, %s14
      %v173 = vld [vmem:[%s165] sm:$0xf]
      %v174 = vld [vmem:[%s165 + $0x4] sm:$0xf]
      %v175 = vld [vmem:[%s165 + $0x8] sm:$0xf]
      %v176 = vld [vmem:[%s165 + $0xc] sm:$0xf]
      %v177 = vld [vmem:[%s165 + $0x10] sm:$0xf]
      %v178 = vld [vmem:[%s165 + $0x14] sm:$0xf]
      %v179 = vld [vmem:[%s165 + $0x18] sm:$0xf]
      %v180 = vld [vmem:[%s165 + $0x1c] sm:$0xf]
      %v181 = vld [vmem:[%s1] sm:$0xf]
      %v182 = vld [vmem:[%s2] sm:$0x1]
      %v184 = vlaneseq
      %v185 = vshrl.u32 %v184, 7
      %v186 = vsub.s32 0, %v185
      %v187 = vrot.slane %v182, %v186
      %v197 = vunpack.c.l.b16 %v173
      %v198 = vunpack.c.l.b16 %v174
      %v199 = vunpack.c.l.b16 %v175
      %v200 = vunpack.c.l.b16 %v176
      %v201 = vunpack.c.l.b16 %v177
      %v202 = vunpack.c.l.b16 %v178
      %v203 = vunpack.c.l.b16 %v179
      %v204 = vunpack.c.l.b16 %v180
      %v205 = vpack.c.b16 %v198, %v197
      %v206 = vpack.c.b16 %v200, %v199
      %v207 = vpack.c.b16 %v202, %v201
      %v208 = vpack.c.b16 %v204, %v203
      %vm209 = vcmask 64512
      %v211 = vsel %vm209, %v205, 0
      %v214 = vsel %vm209, %v206, 0
      %v217 = vsel %vm209, %v207, 0
      %v220 = vsel %vm209, %v208, 0
      %vm222 = vcmask 1043456
      %v224 = vsel %vm222, %v181, 0
      %226 = vmatprep.subr.bf16.mxu0 0
      %227 = vmatpush1.bf16.msra.mxu0 %v224
      %228 = vmatprep.subr.bf16.mxu0 0
      %229 = vmatpush1.bf16.msra.mxu0 0
      %230 = vmatprep.subr.bf16.mxu0 0
      %231 = vmatpush1.bf16.msra.mxu0 0
      %232 = vmatprep.subr.bf16.mxu0 0
      %233 = vmatpush1.bf16.msra.mxu0 0
      %234 = vmatprep.subr.bf16.mxu0 0
      %235 = vmatpush1.bf16.msra.mxu0 0
      %236 = vmatprep.subr.bf16.mxu0 0
      %237 = vmatpush1.bf16.msra.mxu0 0
      %238 = vmatprep.subr.bf16.mxu0 0
      %239 = vmatpush1.bf16.msra.mxu0 0
      %240 = vmatprep.subr.bf16.mxu0 0
      %241 = vmatpush1.bf16.msra.mxu0 0
      %242 = vmatprep.subr.bf16.mxu0 0
      %243 = vmatpush1.bf16.msra.mxu0 0
      %244 = vmatprep.subr.bf16.mxu0 0
      %245 = vmatpush1.bf16.msra.mxu0 0
      %246 = vmatprep.subr.bf16.mxu0 0
      %247 = vmatpush1.bf16.msra.mxu0 0
      %248 = vmatprep.subr.bf16.mxu0 0
      %249 = vmatpush1.bf16.msra.mxu0 0
      %250 = vmatprep.subr.bf16.mxu0 0
      %251 = vmatpush1.bf16.msra.mxu0 0
      %252 = vmatprep.subr.bf16.mxu0 0
      %253 = vmatpush1.bf16.msra.mxu0 0
      %254 = vmatprep.subr.bf16.mxu0 0
      %255 = vmatpush1.bf16.msra.mxu0 0
      %256 = vmatprep.subr.bf16.mxu0 0
      %257 = vmatpush1.bf16.msra.mxu0 0
      %258 = vmatprep.mubr.bf16.mxu0 0
      %259 = vmatmul.mubr.bf16.gmra.mrb[0].mxu0 %v211
      %v260 = vpop.f32.mrb[0].mxu0
      %v261 = vadd.f32 %v187, %v260
      %v262 = vpop.f32.mrb[0].mxu0
      %v263 = vpop.f32.mrb[0].mxu0
      %v264 = vadd.f32 %v187, %v263
      %v265 = vpop.f32.mrb[0].mxu0
      %266 = vmatprep.mubr.bf16.mxu0 0
      %267 = vmatmul.mubr.bf16.gmra.mrb[0].mxu0 %v214
      %v268 = vpop.f32.mrb[0].mxu0
      %v269 = vadd.f32 %v187, %v268
      %v270 = vpop.f32.mrb[0].mxu0
      %v271 = vpop.f32.mrb[0].mxu0
      %v272 = vadd.f32 %v187, %v271
      %v273 = vpop.f32.mrb[0].mxu0
      %274 = vmatprep.mubr.bf16.mxu0 0
      %275 = vmatmul.mubr.bf16.gmra.mrb[0].mxu0 %v217
      %v276 = vpop.f32.mrb[0].mxu0
      %v277 = vadd.f32 %v187, %v276
      %v278 = vpop.f32.mrb[0].mxu0
      %v279 = vpop.f32.mrb[0].mxu0
      %v280 = vadd.f32 %v187, %v279
      %v281 = vpop.f32.mrb[0].mxu0
      %282 = vmatprep.mubr.bf16.mxu0 0
      %283 = vmatmul.mubr.bf16.gmra.mrb[0].mxu0 %v220
      %v284 = vpop.f32.mrb[0].mxu0
      %v285 = vadd.f32 %v187, %v284
      %v286 = vpop.f32.mrb[0].mxu0
      %v287 = vpop.f32.mrb[0].mxu0
      %v288 = vadd.f32 %v187, %v287
      %v289 = vpop.f32.mrb[0].mxu0
      %290 = vdwg.mxu0
      %291 = vst [vmem:[%s170] sm:$0xff] %v261
      %292 = vst [vmem:[%s170 + $0x8] sm:$0xff] %v264
      %293 = vst [vmem:[%s170 + $0x10] sm:$0xff] %v269
      %294 = vst [vmem:[%s170 + $0x18] sm:$0xff] %v272
      %295 = vst [vmem:[%s170 + $0x20] sm:$0xff] %v277
      %296 = vst [vmem:[%s170 + $0x28] sm:$0xff] %v280
      %297 = vst [vmem:[%s170 + $0x30] sm:$0xff] %v285
      %298 = vst [vmem:[%s170 + $0x38] sm:$0xff] %v288
      %s299 = smul.u32 8, %s14
      %p300 = scmp.lt.s32.totalorder %s299, 15
      %s301 = scalar_select %p300, %s299, 15
      %s302 = smul.addr %s301, 8
      %s303 = scalar_lea.vmem %s3, %s302
      // Predicated region
      $region33: #{basic_block_forward.4} parent=31 // pred_check
        %p304 = pneg %p100
      $region34: #{basic_block_forward.4} parent=31 // pred_check_branch
        %306 = sbr.rel (%p304) target = $region36
      $region35: #{basic_block_forward.4} parent=31 // pred_region
        %s307 = smul.u32 8, %s14
      $region36: #{basic_block_forward.4} parent=31 // pred_fallthru
        _
    $region32: #{basic_block_forward.4} parent=5 // pred_fallthru
      _
    %p308 = scmp.le.s32.totalorder 2, %s9
    // Predicated region
    $region37: #{basic_block_forward.4} parent=5 // pred_check
      %p309 = pneg %p308
    $region38: #{basic_block_forward.4} parent=5 // pred_check_branch
      %311 = sbr.rel (%p309) target = $region40
    $region39: #{basic_block_forward.4} parent=5 // pred_region
      %s312 = ssub.s32 %s9, 2
      // Predicated region
      $region41: #{basic_block_forward.4} parent=39 // pred_check
        %p313 = pneg %p106
      $region42: #{basic_block_forward.4} parent=39 // pred_check_branch
        %315 = sbr.rel (%p313) target = $region44
      $region43: #{basic_block_forward.4} parent=39 // pred_region
        %s316 = smul.u32 8, %s15
        %p317 = scmp.lt.s32.totalorder %s316, 15
        %s318 = scalar_select %p317, %s316, 15
        %s319 = smul.addr %s318, 8
        %s320 = scalar_lea.vmem %s3, %s319
      $region44: #{basic_block_forward.4} parent=39 // pred_fallthru
        _
    $region40: #{basic_block_forward.4} parent=5 // pred_fallthru
      _
  $region6: #{basic_block_forward.4} parent=0 // loop_footer
    %s13 = sadd.s32 1, %s9
  $region7: #{basic_block_forward.4} parent=0 // loop_footer_branch
    %8 = sbr.rel target = $region3
  $region8: #{basic_block_forward.4} parent=0 // loop_exit
    _

// kernel: basic_block_forward.3
$region0: #{basic_block_forward.3}
  #allocation0 [shape = 'u32[]', space=smem, size = 0x4, offset = 0x4, fixed_abs, tag = 'smem constant byte address 0x4 - core index']
  #allocation1 [shape = 'u32[144,128]{1,0:T(1,128)}', space=vmem, size = 0x12000, scoped, tag = 'internal scratch']
  %s0 = inlined_call_operand.vmem [shape: bf16[2,160,16], index: 0, kind: input, shape index: {}]
  %s1 = inlined_call_operand.vmem [shape: bf16[4,16,128], index: 1, kind: input, shape index: {}]
  %s2 = inlined_call_operand.vmem [shape: f32[1,128], index: 2, kind: input, shape index: {}]
  %s3 = inlined_call_operand.vmem [shape: f32[256,128], index: 3, kind: output, shape index: {}]
  %s4 = sld [smem:[#allocation0]]
  $region45: #{basic_block_forward.3} parent=0
    _
  %s6 = ssub.s32 1, %s4
  %s7 = scalar_select 0, %s6, %s4
  loop: start=0, step=1, limit=4
  $region2: #{basic_block_forward.3} parent=0 // loop_pre_header
    _
  $region3: #{basic_block_forward.3} parent=0 // loop_header
    %s9 = sphi 0, %s13
    %p10 = scmp.ge.s32.totalorder %s9, 4
    %s19 = sphi 0, %s21
    %s22 = sphi 0, %s19
    %s23 = sphi 0, %s22
    %s39 = sphi 0, %s23
    %s43 = sphi 0, %s43
    %s45 = sphi 0, %s43
    %s46 = sphi 0, %s45
    %s60 = sphi 0, %s46
    %s64 = sphi 0, %s64
    %s66 = sphi 0, %s64
    %s67 = sphi 0, %s66
    %s81 = sphi 0, %s67
    %s87 = sphi 0, %s89
    %s90 = sphi 0, %s87
    %s91 = sphi 0, %s90
    %s107 = sphi 0, %s91
  $region4: #{basic_block_forward.3} parent=0 // loop_header_branch
    %12 = sbr.rel (%p10) target = $region8
  $region5: #{basic_block_forward.3} parent=0 // loop_body
    %s14 = ssub.s32 %s9, 1
    %s15 = ssub.s32 %s9, 2
    %s16 = sadd.s32 %s9, 1
    %s17 = ssub.s32 %s9, %s16
    %p18 = scmp.eq.s32.totalorder %s17, 0
    %s20 = sadd.s32 %s19, 1
    %s21 = scalar_select %p18, %s19, %s20
    %p24 = pneg %p18
    %p25 = scmp.eq.s32.totalorder %s9, 1
    %p26 = por %p24, %p25
    %p27 = scmp.ne.s32.totalorder %s19, %s22
    %p28 = scmp.eq.s32.totalorder %s9, 0
    %p29 = por %p27, %p28
    %p30 = scmp.ne.s32.totalorder %s19, %s22
    %p31 = scmp.eq.s32.totalorder %s14, 1
    %p32 = por %p30, %p31
    %p33 = scmp.ne.s32.totalorder %s22, %s23
    %p34 = scmp.eq.s32.totalorder %s14, 0
    %p35 = por %p33, %p34
    %p36 = scmp.ne.s32.totalorder %s22, %s23
    %p37 = scmp.eq.s32.totalorder %s15, 1
    %p38 = por %p36, %p37
    %p40 = scmp.ne.s32.totalorder %s23, %s39
    %p41 = scmp.eq.s32.totalorder %s15, 0
    %p42 = por %p40, %p41
    %s44 = sadd.s32 %s43, 1
    %p47 = scmp.eq.s32.totalorder %s9, 1
    %p48 = scmp.ne.s32.totalorder %s43, %s45
    %p49 = scmp.eq.s32.totalorder %s9, 0
    %p50 = por %p48, %p49
    %p51 = scmp.ne.s32.totalorder %s43, %s45
    %p52 = scmp.eq.s32.totalorder %s14, 1
    %p53 = por %p51, %p52
    %p54 = scmp.ne.s32.totalorder %s45, %s46
    %p55 = scmp.eq.s32.totalorder %s14, 0
    %p56 = por %p54, %p55
    %p57 = scmp.ne.s32.totalorder %s45, %s46
    %p58 = scmp.eq.s32.totalorder %s15, 1
    %p59 = por %p57, %p58
    %p61 = scmp.ne.s32.totalorder %s46, %s60
    %p62 = scmp.eq.s32.totalorder %s15, 0
    %p63 = por %p61, %p62
    %s65 = sadd.s32 %s64, 1
    %p68 = scmp.eq.s32.totalorder %s9, 1
    %p69 = scmp.ne.s32.totalorder %s64, %s66
    %p70 = scmp.eq.s32.totalorder %s9, 0
    %p71 = por %p69, %p70
    %p72 = scmp.ne.s32.totalorder %s64, %s66
    %p73 = scmp.eq.s32.totalorder %s14, 1
    %p74 = por %p72, %p73
    %p75 = scmp.ne.s32.totalorder %s66, %s67
    %p76 = scmp.eq.s32.totalorder %s14, 0
    %p77 = por %p75, %p76
    %p78 = scmp.ne.s32.totalorder %s66, %s67
    %p79 = scmp.eq.s32.totalorder %s15, 1
    %p80 = por %p78, %p79
    %p82 = scmp.ne.s32.totalorder %s67, %s81
    %p83 = scmp.eq.s32.totalorder %s15, 0
    %p84 = por %p82, %p83
    %s85 = ssub.s32 %s9, %s16
    %p86 = scmp.eq.s32.totalorder %s85, 0
    %s88 = sadd.s32 %s87, 1
    %s89 = scalar_select %p86, %s87, %s88
    %p92 = pneg %p86
    %p93 = scmp.eq.s32.totalorder %s9, 1
    %p94 = por %p92, %p93
    %p95 = scmp.ne.s32.totalorder %s87, %s90
    %p96 = scmp.eq.s32.totalorder %s9, 0
    %p97 = por %p95, %p96
    %p98 = scmp.ne.s32.totalorder %s87, %s90
    %p99 = scmp.eq.s32.totalorder %s14, 1
    %p100 = por %p98, %p99
    %p101 = scmp.ne.s32.totalorder %s90, %s91
    %p102 = scmp.eq.s32.totalorder %s14, 0
    %p103 = por %p101, %p102
    %p104 = scmp.ne.s32.totalorder %s90, %s91
    %p105 = scmp.eq.s32.totalorder %s15, 1
    %p106 = por %p104, %p105
    %p108 = scmp.ne.s32.totalorder %s91, %s107
    %p109 = scmp.eq.s32.totalorder %s15, 0
    %p110 = por %p108, %p109
    %p111 = scmp.le.s32.totalorder 1, %s9
    %p112 = scmp.lt.s32.totalorder %s9, 3
    %p113 = pnand %p111, %p112
    %p114 = pneg %p113
    // Predicated region
    $region9: #{basic_block_forward.3} parent=5 // pred_check
      _
    $region10: #{basic_block_forward.3} parent=5 // pred_check_branch
      %116 = sbr.rel (%p113) target = $region12
    $region11: #{basic_block_forward.3} parent=5 // pred_region
      %s117 = ssub.s32 %s9, 1
      // Predicated region
      $region13: #{basic_block_forward.3} parent=11 // pred_check
        %p118 = pneg %p56
      $region14: #{basic_block_forward.3} parent=11 // pred_check_branch
        %120 = sbr.rel (%p118) target = $region16
      $region15: #{basic_block_forward.3} parent=11 // pred_region
        _
      $region16: #{basic_block_forward.3} parent=11 // pred_fallthru
        _
      // Predicated region
      $region17: #{basic_block_forward.3} parent=11 // pred_check
        %p121 = pneg %p77
      $region18: #{basic_block_forward.3} parent=11 // pred_check_branch
        %123 = sbr.rel (%p121) target = $region20
      $region19: #{basic_block_forward.3} parent=11 // pred_region
        _
      $region20: #{basic_block_forward.3} parent=11 // pred_fallthru
        _
    $region12: #{basic_block_forward.3} parent=5 // pred_fallthru
      _
    %p124 = scmp.lt.s32.totalorder %s9, 2
    // Predicated region
    $region21: #{basic_block_forward.3} parent=5 // pred_check
      %p125 = pneg %p124
    $region22: #{basic_block_forward.3} parent=5 // pred_check_branch
      %127 = sbr.rel (%p125) target = $region24
    $region23: #{basic_block_forward.3} parent=5 // pred_region
      // Predicated region
      $region25: #{basic_block_forward.3} parent=23 // pred_check
        %p128 = pneg %p29
      $region26: #{basic_block_forward.3} parent=23 // pred_check_branch
        %130 = sbr.rel (%p128) target = $region28
      $region27: #{basic_block_forward.3} parent=23 // pred_region
        %p131 = scmp.lt.s32.totalorder %s9, 1
        %s132 = scalar_select %p131, %s9, 1
        %s133 = smul.addr %s132, 20
        %s134 = smul.addr %s133, 4
        %s135 = scalar_lea.vmem %s0, %s134
      $region28: #{basic_block_forward.3} parent=23 // pred_fallthru
        _
    $region24: #{basic_block_forward.3} parent=5 // pred_fallthru
      _
    %p136 = scmp.le.s32.totalorder 1, %s9
    %p137 = scmp.lt.s32.totalorder %s9, 3
    %p138 = pnand %p136, %p137
    %p139 = pneg %p138
    // Predicated region
    $region29: #{basic_block_forward.3} parent=5 // pred_check
      _
    $region30: #{basic_block_forward.3} parent=5 // pred_check_branch
      %141 = sbr.rel (%p138) target = $region32
    $region31: #{basic_block_forward.3} parent=5 // pred_region
      %s142 = ssub.s32 %s9, 1
      %p143 = scmp.lt.s32.totalorder %s14, 1
      %s144 = scalar_select %p143, %s14, 1
      %s145 = smul.addr %s144, 20
      %s146 = smul.addr %s145, 4
      %s147 = scalar_lea.vmem %s0, %s146
      %p148 = pneg %p35
      %p149 = pneg %p32
      %p150 = pneg %p56
      %p151 = pneg %p53
      %p152 = pneg %p77
      %p153 = pneg %p74
      %p154 = pneg %p103
      %p155 = pneg %p100
      %s156 = smul.u32 16, %s14
      %p157 = scmp.lt.s32.totalorder %s156, 31
      %s158 = scalar_select %p157, %s156, 31
      %s159 = smul.addr %s158, 8
      %s160 = scalar_lea.vmem %s3, %s159
      %p161 = scmp.lt.s32.totalorder %s14, 1
      %s162 = scalar_select %p161, %s14, 1
      %s163 = smul.addr %s162, 20
      %s164 = smul.addr %s163, 4
      %s165 = scalar_lea.vmem %s0, %s164
      %s166 = smul.u32 16, %s14
      %p167 = scmp.lt.s32.totalorder %s166, 31
      %s168 = scalar_select %p167, %s166, 31
      %s169 = smul.addr %s168, 8
      %s170 = scalar_lea.vmem %s3, %s169
      %s171 = smul.u32 16, %s14
      %v173 = vld [vmem:[%s165] sm:$0xf]
      %v174 = vld [vmem:[%s165 + $0x4] sm:$0xf]
      %v175 = vld [vmem:[%s165 + $0x8] sm:$0xf]
      %v176 = vld [vmem:[%s165 + $0xc] sm:$0xf]
      %v177 = vld [vmem:[%s165 + $0x10] sm:$0xf]
      %v178 = vld [vmem:[%s165 + $0x14] sm:$0xf]
      %v179 = vld [vmem:[%s165 + $0x18] sm:$0xf]
      %v180 = vld [vmem:[%s165 + $0x1c] sm:$0xf]
      %v181 = vld [vmem:[%s165 + $0x20] sm:$0xf]
      %v182 = vld [vmem:[%s165 + $0x24] sm:$0xf]
      %v183 = vld [vmem:[%s165 + $0x28] sm:$0xf]
      %v184 = vld [vmem:[%s165 + $0x2c] sm:$0xf]
      %v185 = vld [vmem:[%s165 + $0x30] sm:$0xf]
      %v186 = vld [vmem:[%s165 + $0x34] sm:$0xf]
      %v187 = vld [vmem:[%s165 + $0x38] sm:$0xf]
      %v188 = vld [vmem:[%s165 + $0x3c] sm:$0xf]
      %v189 = vld [vmem:[%s1] sm:$0xf]
      %v190 = vld [vmem:[%s1 + $0x4] sm:$0xf]
      %v191 = vld [vmem:[%s165 + $0x40] sm:$0x1]
      %s192 = scalar_lea.vmem %s1, 8
      %v193 = vld [vmem:[%s192] sm:$0xf]
      %v194 = vld [vmem:[%s192 + $0x4] sm:$0xf]
      %v212 = vunpack.c.l.b16 %v173
      %v213 = vunpack.c.l.b16 %v174
      %v214 = vunpack.c.l.b16 %v175
      %v215 = vunpack.c.l.b16 %v176
      %v216 = vunpack.c.l.b16 %v177
      %v217 = vunpack.c.l.b16 %v178
      %v218 = vunpack.c.l.b16 %v179
      %v219 = vunpack.c.l.b16 %v180
      %v220 = vunpack.c.l.b16 %v181
      %v221 = vunpack.c.l.b16 %v182
      %v222 = vunpack.c.l.b16 %v183
      %v223 = vunpack.c.l.b16 %v184
      %v224 = vunpack.c.l.b16 %v185
      %v225 = vunpack.c.l.b16 %v186
      %v226 = vunpack.c.l.b16 %v187
      %v227 = vunpack.c.l.b16 %v188
      %v228 = vunpack.c.l.b16 %v191
      %v229 = vpack.c.b16 %v213, %v212
      %v230 = vpack.c.b16 %v215, %v214
      %v231 = vpack.c.b16 %v217, %v216
      %v232 = vpack.c.b16 %v219, %v218
      %v233 = vpack.c.b16 %v221, %v220
      %v234 = vpack.c.b16 %v223, %v222
      %v235 = vpack.c.b16 %v225, %v224
      %v236 = vpack.c.b16 %v227, %v226
      %v237 = vpack.c.b16 %v228, %v228
      %vm238 = vsmask.f32 7424
      %v240 = vshrl.u32 %v229, 16
      %v242 = vshll.u32 %v229, 16
      %v244 = vrot.slane %v242, 1
      %v245 = vor.u32 %v240, %v244
      %v247 = vshll.u32 %v230, 16
      %v249 = vrot.slane %v247, 1
      %v250 = vsel %vm238, %v245, %v249
      %v251 = vshrl.u32 %v230, 16
      %v253 = vor.u32 %v251, %v249
      %v255 = vshll.u32 %v231, 16
      %v257 = vrot.slane %v255, 1
      %v258 = vsel %vm238, %v253, %v257
      %v259 = vshrl.u32 %v231, 16
      %v261 = vor.u32 %v259, %v257
      %v263 = vshll.u32 %v232, 16
      %v265 = vrot.slane %v263, 1
      %v266 = vsel %vm238, %v261, %v265
      %v267 = vshrl.u32 %v232, 16
      %v269 = vor.u32 %v267, %v265
      %v271 = vshll.u32 %v233, 16
      %v273 = vrot.slane %v271, 1
      %v274 = vsel %vm238, %v269, %v273
      %v275 = vshrl.u32 %v233, 16
      %v277 = vor.u32 %v275, %v273
      %v279 = vshll.u32 %v234, 16
      %v281 = vrot.slane %v279, 1
      %v282 = vsel %vm238, %v277, %v281
      %v283 = vshrl.u32 %v234, 16
      %v285 = vor.u32 %v283, %v281
      %v287 = vshll.u32 %v235, 16
      %v289 = vrot.slane %v287, 1
      %v290 = vsel %vm238, %v285, %v289
      %v291 = vshrl.u32 %v235, 16
      %v293 = vor.u32 %v291, %v289
      %v295 = vshll.u32 %v236, 16
      %v297 = vrot.slane %v295, 1
      %v298 = vsel %vm238, %v293, %v297
      %v299 = vshrl.u32 %v236, 16
      %v301 = vor.u32 %v299, %v297
      %v303 = vshll.u32 %v237, 16
      %v305 = vrot.slane %v303, 1
      %v306 = vsel %vm238, %v301, %v305
      %v309 = vunpack.c.l.b16 %v193
      %v310 = vunpack.c.l.b16 %v194
      %v311 = vpack.c.b16 %v310, %v309
      %vm313 = vcmask 130048
      %v315 = vsel %vm313, %v250, 0
      %v318 = vsel %vm313, %v258, 0
      %v321 = vsel %vm313, %v266, 0
      %v324 = vsel %vm313, %v274, 0
      %v327 = vsel %vm313, %v282, 0
      %v330 = vsel %vm313, %v290, 0
      %v333 = vsel %vm313, %v298, 0
      %v336 = vsel %vm313, %v306, 0
      %338 = vmatprep.subr.bf16.mxu0 0
      %339 = vmatpush1.bf16.msra.mxu0 %v311
      %340 = vmatprep.subr.bf16.mxu0 0
      %341 = vmatpush1.bf16.msra.mxu0 0
      %342 = vmatprep.subr.bf16.mxu0 0
      %343 = vmatpush1.bf16.msra.mxu0 0
      %344 = vmatprep.subr.bf16.mxu0 0
      %345 = vmatpush1.bf16.msra.mxu0 0
      %346 = vmatprep.subr.bf16.mxu0 0
      %347 = vmatpush1.bf16.msra.mxu0 0
      %348 = vmatprep.subr.bf16.mxu0 0
      %349 = vmatpush1.bf16.msra.mxu0 0
      %350 = vmatprep.subr.bf16.mxu0 0
      %351 = vmatpush1.bf16.msra.mxu0 0
      %352 = vmatprep.subr.bf16.mxu0 0
      %353 = vmatpush1.bf16.msra.mxu0 0
      %354 = vmatprep.subr.bf16.mxu0 0
      %355 = vmatpush1.bf16.msra.mxu0 0
      %356 = vmatprep.subr.bf16.mxu0 0
      %357 = vmatpush1.bf16.msra.mxu0 0
      %358 = vmatprep.subr.bf16.mxu0 0
      %359 = vmatpush1.bf16.msra.mxu0 0
      %360 = vmatprep.subr.bf16.mxu0 0
      %361 = vmatpush1.bf16.msra.mxu0 0
      %362 = vmatprep.subr.bf16.mxu0 0
      %363 = vmatpush1.bf16.msra.mxu0 0
      %364 = vmatprep.subr.bf16.mxu0 0
      %365 = vmatpush1.bf16.msra.mxu0 0
      %366 = vmatprep.subr.bf16.mxu0 0
      %367 = vmatpush1.bf16.msra.mxu0 0
      %368 = vmatprep.subr.bf16.mxu0 0
      %369 = vmatpush1.bf16.msra.mxu0 0
      %370 = vmatprep.mubr.bf16.mxu0 0
      %371 = vmatmul.mubr.bf16.gmra.mrb[0].mxu0 %v315
      %v372 = vpop.f32.mrb[0].mxu0
      %v373 = vadd.f32 0.0, %v372
      %v374 = vpop.f32.mrb[0].mxu0
      %v375 = vpop.f32.mrb[0].mxu0
      %v376 = vadd.f32 0.0, %v375
      %v377 = vpop.f32.mrb[0].mxu0
      %378 = vmatprep.mubr.bf16.mxu0 0
      %379 = vmatmul.mubr.bf16.gmra.mrb[0].mxu0 %v318
      %v380 = vpop.f32.mrb[0].mxu0
      %v381 = vadd.f32 0.0, %v380
      %v382 = vpop.f32.mrb[0].mxu0
      %v383 = vpop.f32.mrb[0].mxu0
      %v384 = vadd.f32 0.0, %v383
      %v385 = vpop.f32.mrb[0].mxu0
      %386 = vmatprep.mubr.bf16.mxu0 0
      %387 = vmatmul.mubr.bf16.gmra.mrb[0].mxu0 %v321
      %v388 = vpop.f32.mrb[0].mxu0
      %v389 = vadd.f32 0.0, %v388
      %v390 = vpop.f32.mrb[0].mxu0
      %v391 = vpop.f32.mrb[0].mxu0
      %v392 = vadd.f32 0.0, %v391
      %v393 = vpop.f32.mrb[0].mxu0
      %394 = vmatprep.mubr.bf16.mxu0 0
      %395 = vmatmul.mubr.bf16.gmra.mrb[0].mxu0 %v324
      %v396 = vpop.f32.mrb[0].mxu0
      %v397 = vadd.f32 0.0, %v396
      %v398 = vpop.f32.mrb[0].mxu0
      %v399 = vpop.f32.mrb[0].mxu0
      %v400 = vadd.f32 0.0, %v399
      %v401 = vpop.f32.mrb[0].mxu0
      %402 = vmatprep.mubr.bf16.mxu0 0
      %403 = vmatmul.mubr.bf16.gmra.mrb[0].mxu0 %v327
      %v404 = vpop.f32.mrb[0].mxu0
      %v405 = vadd.f32 0.0, %v404
      %v406 = vpop.f32.mrb[0].mxu0
      %v407 = vpop.f32.mrb[0].mxu0
      %v408 = vadd.f32 0.0, %v407
      %v409 = vpop.f32.mrb[0].mxu0
      %410 = vmatprep.mubr.bf16.mxu0 0
      %411 = vmatmul.mubr.bf16.gmra.mrb[0].mxu0 %v330
      %v412 = vpop.f32.mrb[0].mxu0
      %v413 = vadd.f32 0.0, %v412
      %v414 = vpop.f32.mrb[0].mxu0
      %v415 = vpop.f32.mrb[0].mxu0
      %v416 = vadd.f32 0.0, %v415
      %v417 = vpop.f32.mrb[0].mxu0
      %418 = vmatprep.mubr.bf16.mxu0 0
      %419 = vmatmul.mubr.bf16.gmra.mrb[0].mxu0 %v333
      %v420 = vpop.f32.mrb[0].mxu0
      %v421 = vadd.f32 0.0, %v420
      %v422 = vpop.f32.mrb[0].mxu0
      %v423 = vpop.f32.mrb[0].mxu0
      %v424 = vadd.f32 0.0, %v423
      %v425 = vpop.f32.mrb[0].mxu0
      %426 = vmatprep.mubr.bf16.mxu0 0
      %427 = vmatmul.mubr.bf16.gmra.mrb[0].mxu0 %v336
      %v428 = vpop.f32.mrb[0].mxu0
      %v429 = vadd.f32 0.0, %v428
      %v430 = vpop.f32.mrb[0].mxu0
      %v431 = vpop.f32.mrb[0].mxu0
      %v432 = vadd.f32 0.0, %v431
      %v433 = vpop.f32.mrb[0].mxu0
      %434 = vdwg.mxu0
      %v437 = vunpack.c.l.b16 %v189
      %v438 = vunpack.c.l.b16 %v190
      %v439 = vpack.c.b16 %v438, %v437
      %v441 = vsel %vm313, %v229, 0
      %v443 = vsel %vm313, %v230, 0
      %v445 = vsel %vm313, %v231, 0
      %v447 = vsel %vm313, %v232, 0
      %v449 = vsel %vm313, %v233, 0
      %v451 = vsel %vm313, %v234, 0
      %v453 = vsel %vm313, %v235, 0
      %v455 = vsel %vm313, %v236, 0
      %457 = vmatprep.subr.bf16.mxu0 0
      %458 = vmatpush1.bf16.msra.mxu0 %v439
      %459 = vmatprep.subr.bf16.mxu0 0
      %460 = vmatpush1.bf16.msra.mxu0 0
      %461 = vmatprep.subr.bf16.mxu0 0
      %462 = vmatpush1.bf16.msra.mxu0 0
      %463 = vmatprep.subr.bf16.mxu0 0
      %464 = vmatpush1.bf16.msra.mxu0 0
      %465 = vmatprep.subr.bf16.mxu0 0
      %466 = vmatpush1.bf16.msra.mxu0 0
      %467 = vmatprep.subr.bf16.mxu0 0
      %468 = vmatpush1.bf16.msra.mxu0 0
      %469 = vmatprep.subr.bf16.mxu0 0
      %470 = vmatpush1.bf16.msra.mxu0 0
      %471 = vmatprep.subr.bf16.mxu0 0
      %472 = vmatpush1.bf16.msra.mxu0 0
      %473 = vmatprep.subr.bf16.mxu0 0
      %474 = vmatpush1.bf16.msra.mxu0 0
      %475 = vmatprep.subr.bf16.mxu0 0
      %476 = vmatpush1.bf16.msra.mxu0 0
      %477 = vmatprep.subr.bf16.mxu0 0
      %478 = vmatpush1.bf16.msra.mxu0 0
      %479 = vmatprep.subr.bf16.mxu0 0
      %480 = vmatpush1.bf16.msra.mxu0 0
      %481 = vmatprep.subr.bf16.mxu0 0
      %482 = vmatpush1.bf16.msra.mxu0 0
      %483 = vmatprep.subr.bf16.mxu0 0
      %484 = vmatpush1.bf16.msra.mxu0 0
      %485 = vmatprep.subr.bf16.mxu0 0
      %486 = vmatpush1.bf16.msra.mxu0 0
      %487 = vmatprep.subr.bf16.mxu0 0
      %488 = vmatpush1.bf16.msra.mxu0 0
      %489 = vmatprep.mubr.bf16.mxu0 0
      %490 = vmatmul.mubr.bf16.gmra.mrb[0].mxu0 %v441
      %v491 = vpop.f32.mrb[0].mxu0
      %v492 = vadd.f32 %v373, %v491
      %v493 = vpop.f32.mrb[0].mxu0
      %v494 = vpop.f32.mrb[0].mxu0
      %v495 = vadd.f32 %v376, %v494
      %v496 = vpop.f32.mrb[0].mxu0
      %497 = vmatprep.mubr.bf16.mxu0 0
      %498 = vmatmul.mubr.bf16.gmra.mrb[0].mxu0 %v443
      %v499 = vpop.f32.mrb[0].mxu0
      %v500 = vadd.f32 %v381, %v499
      %v501 = vpop.f32.mrb[0].mxu0
      %v502 = vpop.f32.mrb[0].mxu0
      %v503 = vadd.f32 %v384, %v502
      %v504 = vpop.f32.mrb[0].mxu0
      %505 = vmatprep.mubr.bf16.mxu0 0
      %506 = vmatmul.mubr.bf16.gmra.mrb[0].mxu0 %v445
      %v507 = vpop.f32.mrb[0].mxu0
      %v508 = vadd.f32 %v389, %v507
      %v509 = vpop.f32.mrb[0].mxu0
      %v510 = vpop.f32.mrb[0].mxu0
      %v511 = vadd.f32 %v392, %v510
      %v512 = vpop.f32.mrb[0].mxu0
      %513 = vmatprep.mubr.bf16.mxu0 0
      %514 = vmatmul.mubr.bf16.gmra.mrb[0].mxu0 %v447
      %v515 = vpop.f32.mrb[0].mxu0
      %v516 = vadd.f32 %v397, %v515
      %v517 = vpop.f32.mrb[0].mxu0
      %v518 = vpop.f32.mrb[0].mxu0
      %v519 = vadd.f32 %v400, %v518
      %v520 = vpop.f32.mrb[0].mxu0
      %521 = vmatprep.mubr.bf16.mxu0 0
      %522 = vmatmul.mubr.bf16.gmra.mrb[0].mxu0 %v449
      %v523 = vpop.f32.mrb[0].mxu0
      %v524 = vadd.f32 %v405, %v523
      %v525 = vpop.f32.mrb[0].mxu0
      %v526 = vpop.f32.mrb[0].mxu0
      %v527 = vadd.f32 %v408, %v526
      %v528 = vpop.f32.mrb[0].mxu0
      %529 = vmatprep.mubr.bf16.mxu0 0
      %530 = vmatmul.mubr.bf16.gmra.mrb[0].mxu0 %v451
      %v531 = vpop.f32.mrb[0].mxu0
      %v532 = vadd.f32 %v413, %v531
      %v533 = vpop.f32.mrb[0].mxu0
      %v534 = vpop.f32.mrb[0].mxu0
      %v535 = vadd.f32 %v416, %v534
      %v536 = vpop.f32.mrb[0].mxu0
      %537 = vmatprep.mubr.bf16.mxu0 0
      %538 = vmatmul.mubr.bf16.gmra.mrb[0].mxu0 %v453
      %v539 = vpop.f32.mrb[0].mxu0
      %v540 = vadd.f32 %v421, %v539
      %v541 = vpop.f32.mrb[0].mxu0
      %v542 = vpop.f32.mrb[0].mxu0
      %v543 = vadd.f32 %v424, %v542
      %v544 = vpop.f32.mrb[0].mxu0
      %545 = vmatprep.mubr.bf16.mxu0 0
      %546 = vmatmul.mubr.bf16.gmra.mrb[0].mxu0 %v455
      %v547 = vpop.f32.mrb[0].mxu0
      %v548 = vadd.f32 %v429, %v547
      %v549 = vpop.f32.mrb[0].mxu0
      %v550 = vpop.f32.mrb[0].mxu0
      %v551 = vadd.f32 %v432, %v550
      %v552 = vpop.f32.mrb[0].mxu0
      %553 = vdwg.mxu0
      %v554 = vld [vmem:[%s165 + $0x8] sm:$0xf]
      %v555 = vld [vmem:[%s165 + $0xc] sm:$0xf]
      %v556 = vld [vmem:[%s165 + $0x10] sm:$0xf]
      %v557 = vld [vmem:[%s165 + $0x14] sm:$0xf]
      %v558 = vld [vmem:[%s165 + $0x18] sm:$0xf]
      %v559 = vld [vmem:[%s165 + $0x1c] sm:$0xf]
      %v560 = vld [vmem:[%s165 + $0x20] sm:$0xf]
      %v561 = vld [vmem:[%s165 + $0x24] sm:$0xf]
      %v562 = vld [vmem:[%s165 + $0x28] sm:$0xf]
      %v563 = vld [vmem:[%s165 + $0x2c] sm:$0xf]
      %v564 = vld [vmem:[%s165 + $0x30] sm:$0xf]
      %v565 = vld [vmem:[%s165 + $0x34] sm:$0xf]
      %v566 = vld [vmem:[%s165 + $0x38] sm:$0xf]
      %v567 = vld [vmem:[%s165 + $0x3c] sm:$0xf]
      %v568 = vld [vmem:[%s165 + $0x40] sm:$0xf]
      %v569 = vld [vmem:[%s165 + $0x44] sm:$0xf]
      %s570 = scalar_lea.vmem %s1, 16
      %v571 = vld [vmem:[%s570] sm:$0xf]
      %v572 = vld [vmem:[%s570 + $0x4] sm:$0xf]
      %v589 = vunpack.c.l.b16 %v554
      %v590 = vunpack.c.l.b16 %v555
      %v591 = vunpack.c.l.b16 %v556
      %v592 = vunpack.c.l.b16 %v557
      %v593 = vunpack.c.l.b16 %v558
      %v594 = vunpack.c.l.b16 %v559
      %v595 = vunpack.c.l.b16 %v560
      %v596 = vunpack.c.l.b16 %v561
      %v597 = vunpack.c.l.b16 %v562
      %v598 = vunpack.c.l.b16 %v563
      %v599 = vunpack.c.l.b16 %v564
      %v600 = vunpack.c.l.b16 %v565
      %v601 = vunpack.c.l.b16 %v566
      %v602 = vunpack.c.l.b16 %v567
      %v603 = vunpack.c.l.b16 %v568
      %v604 = vunpack.c.l.b16 %v569
      %v605 = vpack.c.b16 %v590, %v589
      %v606 = vpack.c.b16 %v592, %v591
      %v607 = vpack.c.b16 %v594, %v593
      %v608 = vpack.c.b16 %v596, %v595
      %v609 = vpack.c.b16 %v598, %v597
      %v610 = vpack.c.b16 %v600, %v599
      %v611 = vpack.c.b16 %v602, %v601
      %v612 = vpack.c.b16 %v604, %v603
      %v615 = vunpack.c.l.b16 %v571
      %v616 = vunpack.c.l.b16 %v572
      %v617 = vpack.c.b16 %v616, %v615
      %v620 = vsel %vm313, %v605, 0
      %v623 = vsel %vm313, %v606, 0
      %v626 = vsel %vm313, %v607, 0
      %v629 = vsel %vm313, %v608, 0
      %v632 = vsel %vm313, %v609, 0
      %v635 = vsel %vm313, %v610, 0
      %v638 = vsel %vm313, %v611, 0
      %v641 = vsel %vm313, %v612, 0
      %643 = vmatprep.subr.bf16.mxu0 0
      %644 = vmatpush1.bf16.msra.mxu0 %v617
      %645 = vmatprep.subr.bf16.mxu0 0
      %646 = vmatpush1.bf16.msra.mxu0 0
      %647 = vmatprep.subr.bf16.mxu0 0
      %648 = vmatpush1.bf16.msra.mxu0 0
      %649 = vmatprep.subr.bf16.mxu0 0
      %650 = vmatpush1.bf16.msra.mxu0 0
      %651 = vmatprep.subr.bf16.mxu0 0
      %652 = vmatpush1.bf16.msra.mxu0 0
      %653 = vmatprep.subr.bf16.mxu0 0
      %654 = vmatpush1.bf16.msra.mxu0 0
      %655 = vmatprep.subr.bf16.mxu0 0
      %656 = vmatpush1.bf16.msra.mxu0 0
      %657 = vmatprep.subr.bf16.mxu0 0
      %658 = vmatpush1.bf16.msra.mxu0 0
      %659 = vmatprep.subr.bf16.mxu0 0
      %660 = vmatpush1.bf16.msra.mxu0 0
      %661 = vmatprep.subr.bf16.mxu0 0
      %662 = vmatpush1.bf16.msra.mxu0 0
      %663 = vmatprep.subr.bf16.mxu0 0
      %664 = vmatpush1.bf16.msra.mxu0 0
      %665 = vmatprep.subr.bf16.mxu0 0
      %666 = vmatpush1.bf16.msra.mxu0 0
      %667 = vmatprep.subr.bf16.mxu0 0
      %668 = vmatpush1.bf16.msra.mxu0 0
      %669 = vmatprep.subr.bf16.mxu0 0
      %670 = vmatpush1.bf16.msra.mxu0 0
      %671 = vmatprep.subr.bf16.mxu0 0
      %672 = vmatpush1.bf16.msra.mxu0 0
      %673 = vmatprep.subr.bf16.mxu0 0
      %674 = vmatpush1.bf16.msra.mxu0 0
      %675 = vmatprep.mubr.bf16.mxu0 0
      %676 = vmatmul.mubr.bf16.gmra.mrb[0].mxu0 %v620
      %v677 = vpop.f32.mrb[0].mxu0
      %v678 = vadd.f32 0.0, %v677
      %v679 = vpop.f32.mrb[0].mxu0
      %v680 = vpop.f32.mrb[0].mxu0
      %v681 = vadd.f32 0.0, %v680
      %v682 = vpop.f32.mrb[0].mxu0
      %683 = vmatprep.mubr.bf16.mxu0 0
      %684 = vmatmul.mubr.bf16.gmra.mrb[0].mxu0 %v623
      %v685 = vpop.f32.mrb[0].mxu0
      %v686 = vadd.f32 0.0, %v685
      %v687 = vpop.f32.mrb[0].mxu0
      %v688 = vpop.f32.mrb[0].mxu0
      %v689 = vadd.f32 0.0, %v688
      %v690 = vpop.f32.mrb[0].mxu0
      %691 = vmatprep.mubr.bf16.mxu0 0
      %692 = vmatmul.mubr.bf16.gmra.mrb[0].mxu0 %v626
      %v693 = vpop.f32.mrb[0].mxu0
      %v694 = vadd.f32 0.0, %v693
      %v695 = vpop.f32.mrb[0].mxu0
      %v696 = vpop.f32.mrb[0].mxu0
      %v697 = vadd.f32 0.0, %v696
      %v698 = vpop.f32.mrb[0].mxu0
      %699 = vmatprep.mubr.bf16.mxu0 0
      %700 = vmatmul.mubr.bf16.gmra.mrb[0].mxu0 %v629
      %v701 = vpop.f32.mrb[0].mxu0
      %v702 = vadd.f32 0.0, %v701
      %v703 = vpop.f32.mrb[0].mxu0
      %v704 = vpop.f32.mrb[0].mxu0
      %v705 = vadd.f32 0.0, %v704
      %v706 = vpop.f32.mrb[0].mxu0
      %707 = vmatprep.mubr.bf16.mxu0 0
      %708 = vmatmul.mubr.bf16.gmra.mrb[0].mxu0 %v632
      %v709 = vpop.f32.mrb[0].mxu0
      %v710 = vadd.f32 0.0, %v709
      %v711 = vpop.f32.mrb[0].mxu0
      %v712 = vpop.f32.mrb[0].mxu0
      %v713 = vadd.f32 0.0, %v712
      %v714 = vpop.f32.mrb[0].mxu0
      %715 = vmatprep.mubr.bf16.mxu0 0
      %716 = vmatmul.mubr.bf16.gmra.mrb[0].mxu0 %v635
      %v717 = vpop.f32.mrb[0].mxu0
      %v718 = vadd.f32 0.0, %v717
      %v719 = vpop.f32.mrb[0].mxu0
      %v720 = vpop.f32.mrb[0].mxu0
      %v721 = vadd.f32 0.0, %v720
      %v722 = vpop.f32.mrb[0].mxu0
      %723 = vmatprep.mubr.bf16.mxu0 0
      %724 = vmatmul.mubr.bf16.gmra.mrb[0].mxu0 %v638
      %v725 = vpop.f32.mrb[0].mxu0
      %v726 = vadd.f32 0.0, %v725
      %v727 = vpop.f32.mrb[0].mxu0
      %v728 = vpop.f32.mrb[0].mxu0
      %v729 = vadd.f32 0.0, %v728
      %v730 = vpop.f32.mrb[0].mxu0
      %731 = vmatprep.mubr.bf16.mxu0 0
      %732 = vmatmul.mubr.bf16.gmra.mrb[0].mxu0 %v641
      %v733 = vpop.f32.mrb[0].mxu0
      %v734 = vadd.f32 0.0, %v733
      %v735 = vpop.f32.mrb[0].mxu0
      %v736 = vpop.f32.mrb[0].mxu0
      %v737 = vadd.f32 0.0, %v736
      %v738 = vpop.f32.mrb[0].mxu0
      %739 = vdwg.mxu0
      %v740 = vadd.f32 %v492, %v678
      %v741 = vadd.f32 %v495, %v681
      %v742 = vadd.f32 %v500, %v686
      %v743 = vadd.f32 %v503, %v689
      %v744 = vadd.f32 %v508, %v694
      %v745 = vadd.f32 %v511, %v697
      %v746 = vadd.f32 %v516, %v702
      %v747 = vadd.f32 %v519, %v705
      %v748 = vadd.f32 %v524, %v710
      %v749 = vadd.f32 %v527, %v713
      %v750 = vadd.f32 %v532, %v718
      %v751 = vadd.f32 %v535, %v721
      %v752 = vadd.f32 %v540, %v726
      %v753 = vadd.f32 %v543, %v729
      %v754 = vadd.f32 %v548, %v734
      %v755 = vadd.f32 %v551, %v737
      %v756 = vld [vmem:[%s165 + $0x8] sm:$0xf]
      %v757 = vld [vmem:[%s165 + $0xc] sm:$0xf]
      %v758 = vld [vmem:[%s165 + $0x10] sm:$0xf]
      %v759 = vld [vmem:[%s165 + $0x14] sm:$0xf]
      %v760 = vld [vmem:[%s165 + $0x18] sm:$0xf]
      %v761 = vld [vmem:[%s165 + $0x1c] sm:$0xf]
      %v762 = vld [vmem:[%s165 + $0x20] sm:$0xf]
      %v763 = vld [vmem:[%s165 + $0x24] sm:$0xf]
      %v764 = vld [vmem:[%s165 + $0x28] sm:$0xf]
      %v765 = vld [vmem:[%s165 + $0x2c] sm:$0xf]
      %v766 = vld [vmem:[%s165 + $0x30] sm:$0xf]
      %v767 = vld [vmem:[%s165 + $0x34] sm:$0xf]
      %v768 = vld [vmem:[%s165 + $0x38] sm:$0xf]
      %v769 = vld [vmem:[%s165 + $0x3c] sm:$0xf]
      %v770 = vld [vmem:[%s165 + $0x40] sm:$0xf]
      %v771 = vld [vmem:[%s165 + $0x44] sm:$0xf]
      %v772 = vld [vmem:[%s165 + $0x48] sm:$0x1]
      %s773 = scalar_lea.vmem %s1, 24
      %v774 = vld [vmem:[%s773] sm:$0xf]
      %v775 = vld [vmem:[%s773 + $0x4] sm:$0xf]
      %v793 = vunpack.c.l.b16 %v756
      %v794 = vunpack.c.l.b16 %v757
      %v795 = vunpack.c.l.b16 %v758
      %v796 = vunpack.c.l.b16 %v759
      %v797 = vunpack.c.l.b16 %v760
      %v798 = vunpack.c.l.b16 %v761
      %v799 = vunpack.c.l.b16 %v762
      %v800 = vunpack.c.l.b16 %v763
      %v801 = vunpack.c.l.b16 %v764
      %v802 = vunpack.c.l.b16 %v765
      %v803 = vunpack.c.l.b16 %v766
      %v804 = vunpack.c.l.b16 %v767
      %v805 = vunpack.c.l.b16 %v768
      %v806 = vunpack.c.l.b16 %v769
      %v807 = vunpack.c.l.b16 %v770
      %v808 = vunpack.c.l.b16 %v771
      %v809 = vunpack.c.l.b16 %v772
      %v810 = vpack.c.b16 %v794, %v793
      %v811 = vpack.c.b16 %v796, %v795
      %v812 = vpack.c.b16 %v798, %v797
      %v813 = vpack.c.b16 %v800, %v799
      %v814 = vpack.c.b16 %v802, %v801
      %v815 = vpack.c.b16 %v804, %v803
      %v816 = vpack.c.b16 %v806, %v805
      %v817 = vpack.c.b16 %v808, %v807
      %v818 = vpack.c.b16 %v809, %v809
      %v820 = vshrl.u32 %v810, 16
      %v822 = vshll.u32 %v810, 16
      %v824 = vrot.slane %v822, 1
      %v825 = vor.u32 %v820, %v824
      %v827 = vshll.u32 %v811, 16
      %v829 = vrot.slane %v827, 1
      %v830 = vsel %vm238, %v825, %v829
      %v831 = vshrl.u32 %v811, 16
      %v833 = vor.u32 %v831, %v829
      %v835 = vshll.u32 %v812, 16
      %v837 = vrot.slane %v835, 1
      %v838 = vsel %vm238, %v833, %v837
      %v839 = vshrl.u32 %v812, 16
      %v841 = vor.u32 %v839, %v837
      %v843 = vshll.u32 %v813, 16
      %v845 = vrot.slane %v843, 1
      %v846 = vsel %vm238, %v841, %v845
      %v847 = vshrl.u32 %v813, 16
      %v849 = vor.u32 %v847, %v845
      %v851 = vshll.u32 %v814, 16
      %v853 = vrot.slane %v851, 1
      %v854 = vsel %vm238, %v849, %v853
      %v855 = vshrl.u32 %v814, 16
      %v857 = vor.u32 %v855, %v853
      %v859 = vshll.u32 %v815, 16
      %v861 = vrot.slane %v859, 1
      %v862 = vsel %vm238, %v857, %v861
      %v863 = vshrl.u32 %v815, 16
      %v865 = vor.u32 %v863, %v861
      %v867 = vshll.u32 %v816, 16
      %v869 = vrot.slane %v867, 1
      %v870 = vsel %vm238, %v865, %v869
      %v871 = vshrl.u32 %v816, 16
      %v873 = vor.u32 %v871, %v869
      %v875 = vshll.u32 %v817, 16
      %v877 = vrot.slane %v875, 1
      %v878 = vsel %vm238, %v873, %v877
      %v879 = vshrl.u32 %v817, 16
      %v881 = vor.u32 %v879, %v877
      %v883 = vshll.u32 %v818, 16
      %v885 = vrot.slane %v883, 1
      %v886 = vsel %vm238, %v881, %v885
      %v889 = vunpack.c.l.b16 %v774
      %v890 = vunpack.c.l.b16 %v775
      %v891 = vpack.c.b16 %v890, %v889
      %v894 = vsel %vm313, %v830, 0
      %v897 = vsel %vm313, %v838, 0
      %v900 = vsel %vm313, %v846, 0
      %v903 = vsel %vm313, %v854, 0
      %v906 = vsel %vm313, %v862, 0
      %v909 = vsel %vm313, %v870, 0
      %v912 = vsel %vm313, %v878, 0
      %v915 = vsel %vm313, %v886, 0
      %917 = vmatprep.subr.bf16.mxu0 0
      %918 = vmatpush1.bf16.msra.mxu0 %v891
      %919 = vmatprep.subr.bf16.mxu0 0
      %920 = vmatpush1.bf16.msra.mxu0 0
      %921 = vmatprep.subr.bf16.mxu0 0
      %922 = vmatpush1.bf16.msra.mxu0 0
      %923 = vmatprep.subr.bf16.mxu0 0
      %924 = vmatpush1.bf16.msra.mxu0 0
      %925 = vmatprep.subr.bf16.mxu0 0
      %926 = vmatpush1.bf16.msra.mxu0 0
      %927 = vmatprep.subr.bf16.mxu0 0
      %928 = vmatpush1.bf16.msra.mxu0 0
      %929 = vmatprep.subr.bf16.mxu0 0
      %930 = vmatpush1.bf16.msra.mxu0 0
      %931 = vmatprep.subr.bf16.mxu0 0
      %932 = vmatpush1.bf16.msra.mxu0 0
      %933 = vmatprep.subr.bf16.mxu0 0
      %934 = vmatpush1.bf16.msra.mxu0 0
      %935 = vmatprep.subr.bf16.mxu0 0
      %936 = vmatpush1.bf16.msra.mxu0 0
      %937 = vmatprep.subr.bf16.mxu0 0
      %938 = vmatpush1.bf16.msra.mxu0 0
      %939 = vmatprep.subr.bf16.mxu0 0
      %940 = vmatpush1.bf16.msra.mxu0 0
      %941 = vmatprep.subr.bf16.mxu0 0
      %942 = vmatpush1.bf16.msra.mxu0 0
      %943 = vmatprep.subr.bf16.mxu0 0
      %944 = vmatpush1.bf16.msra.mxu0 0
      %945 = vmatprep.subr.bf16.mxu0 0
      %946 = vmatpush1.bf16.msra.mxu0 0
      %947 = vmatprep.subr.bf16.mxu0 0
      %948 = vmatpush1.bf16.msra.mxu0 0
      %949 = vmatprep.mubr.bf16.mxu0 0
      %950 = vmatmul.mubr.bf16.gmra.mrb[0].mxu0 %v894
      %v951 = vpop.f32.mrb[0].mxu0
      %v952 = vadd.f32 0.0, %v951
      %v953 = vpop.f32.mrb[0].mxu0
      %v954 = vpop.f32.mrb[0].mxu0
      %v955 = vadd.f32 0.0, %v954
      %v956 = vpop.f32.mrb[0].mxu0
      %957 = vmatprep.mubr.bf16.mxu0 0
      %958 = vmatmul.mubr.bf16.gmra.mrb[0].mxu0 %v897
      %v959 = vpop.f32.mrb[0].mxu0
      %v960 = vadd.f32 0.0, %v959
      %v961 = vpop.f32.mrb[0].mxu0
      %v962 = vpop.f32.mrb[0].mxu0
      %v963 = vadd.f32 0.0, %v962
      %v964 = vpop.f32.mrb[0].mxu0
      %965 = vmatprep.mubr.bf16.mxu0 0
      %966 = vmatmul.mubr.bf16.gmra.mrb[0].mxu0 %v900
      %v967 = vpop.f32.mrb[0].mxu0
      %v968 = vadd.f32 0.0, %v967
      %v969 = vpop.f32.mrb[0].mxu0
      %v970 = vpop.f32.mrb[0].mxu0
      %v971 = vadd.f32 0.0, %v970
      %v972 = vpop.f32.mrb[0].mxu0
      %973 = vmatprep.mubr.bf16.mxu0 0
      %974 = vmatmul.mubr.bf16.gmra.mrb[0].mxu0 %v903
      %v975 = vpop.f32.mrb[0].mxu0
      %v976 = vadd.f32 0.0, %v975
      %v977 = vpop.f32.mrb[0].mxu0
      %v978 = vpop.f32.mrb[0].mxu0
      %v979 = vadd.f32 0.0, %v978
      %v980 = vpop.f32.mrb[0].mxu0
      %981 = vmatprep.mubr.bf16.mxu0 0
      %982 = vmatmul.mubr.bf16.gmra.mrb[0].mxu0 %v906
      %v983 = vpop.f32.mrb[0].mxu0
      %v984 = vadd.f32 0.0, %v983
      %v985 = vpop.f32.mrb[0].mxu0
      %v986 = vpop.f32.mrb[0].mxu0
      %v987 = vadd.f32 0.0, %v986
      %v988 = vpop.f32.mrb[0].mxu0
      %989 = vmatprep.mubr.bf16.mxu0 0
      %990 = vmatmul.mubr.bf16.gmra.mrb[0].mxu0 %v909
      %v991 = vpop.f32.mrb[0].mxu0
      %v992 = vadd.f32 0.0, %v991
      %v993 = vpop.f32.mrb[0].mxu0
      %v994 = vpop.f32.mrb[0].mxu0
      %v995 = vadd.f32 0.0, %v994
      %v996 = vpop.f32.mrb[0].mxu0
      %997 = vmatprep.mubr.bf16.mxu0 0
      %998 = vmatmul.mubr.bf16.gmra.mrb[0].mxu0 %v912
      %v999 = vpop.f32.mrb[0].mxu0
      %v1000 = vadd.f32 0.0, %v999
      %v1001 = vpop.f32.mrb[0].mxu0
      %v1002 = vpop.f32.mrb[0].mxu0
      %v1003 = vadd.f32 0.0, %v1002
      %v1004 = vpop.f32.mrb[0].mxu0
      %1005 = vmatprep.mubr.bf16.mxu0 0
      %1006 = vmatmul.mubr.bf16.gmra.mrb[0].mxu0 %v915
      %v1007 = vpop.f32.mrb[0].mxu0
      %v1008 = vadd.f32 0.0, %v1007
      %v1009 = vpop.f32.mrb[0].mxu0
      %v1010 = vpop.f32.mrb[0].mxu0
      %v1011 = vadd.f32 0.0, %v1010
      %v1012 = vpop.f32.mrb[0].mxu0
      %1013 = vdwg.mxu0
      %v1014 = vadd.f32 %v740, %v952
      %v1015 = vadd.f32 %v741, %v955
      %v1016 = vadd.f32 %v742, %v960
      %v1017 = vadd.f32 %v743, %v963
      %v1018 = vadd.f32 %v744, %v968
      %v1019 = vadd.f32 %v745, %v971
      %v1020 = vadd.f32 %v746, %v976
      %v1021 = vadd.f32 %v747, %v979
      %v1022 = vadd.f32 %v748, %v984
      %v1023 = vadd.f32 %v749, %v987
      %v1024 = vadd.f32 %v750, %v992
      %v1025 = vadd.f32 %v751, %v995
      %v1026 = vadd.f32 %v752, %v1000
      %v1027 = vadd.f32 %v753, %v1003
      %v1028 = vadd.f32 %v754, %v1008
      %v1029 = vadd.f32 %v755, %v1011
      %v1030 = vld [vmem:[%s2] sm:$0x1]
      %v1032 = vlaneseq
      %v1033 = vshrl.u32 %v1032, 7
      %v1034 = vsub.s32 0, %v1033
      %v1035 = vrot.slane %v1030, %v1034
      %v1037 = vadd.f32 %v1014, %v1035
      %v1038 = vadd.f32 %v1015, %v1035
      %v1039 = vadd.f32 %v1016, %v1035
      %v1040 = vadd.f32 %v1017, %v1035
      %v1041 = vadd.f32 %v1018, %v1035
      %v1042 = vadd.f32 %v1019, %v1035
      %v1043 = vadd.f32 %v1020, %v1035
      %v1044 = vadd.f32 %v1021, %v1035
      %v1045 = vadd.f32 %v1022, %v1035
      %v1046 = vadd.f32 %v1023, %v1035
      %v1047 = vadd.f32 %v1024, %v1035
      %v1048 = vadd.f32 %v1025, %v1035
      %v1049 = vadd.f32 %v1026, %v1035
      %v1050 = vadd.f32 %v1027, %v1035
      %v1051 = vadd.f32 %v1028, %v1035
      %v1052 = vadd.f32 %v1029, %v1035
      %v1053 = vmax.f32 %v1037, 0.0
      %v1054 = vmax.f32 %v1038, 0.0
      %v1055 = vmax.f32 %v1039, 0.0
      %v1056 = vmax.f32 %v1040, 0.0
      %v1057 = vmax.f32 %v1041, 0.0
      %v1058 = vmax.f32 %v1042, 0.0
      %v1059 = vmax.f32 %v1043, 0.0
      %v1060 = vmax.f32 %v1044, 0.0
      %v1061 = vmax.f32 %v1045, 0.0
      %v1062 = vmax.f32 %v1046, 0.0
      %v1063 = vmax.f32 %v1047, 0.0
      %v1064 = vmax.f32 %v1048, 0.0
      %v1065 = vmax.f32 %v1049, 0.0
      %v1066 = vmax.f32 %v1050, 0.0
      %v1067 = vmax.f32 %v1051, 0.0
      %v1068 = vmax.f32 %v1052, 0.0
      %1069 = vst [vmem:[%s170] sm:$0xff] %v1053
      %1070 = vst [vmem:[%s170 + $0x8] sm:$0xff] %v1054
      %1071 = vst [vmem:[%s170 + $0x10] sm:$0xff] %v1055
      %1072 = vst [vmem:[%s170 + $0x18] sm:$0xff] %v1056
      %1073 = vst [vmem:[%s170 + $0x20] sm:$0xff] %v1057
      %1074 = vst [vmem:[%s170 + $0x28] sm:$0xff] %v1058
      %1075 = vst [vmem:[%s170 + $0x30] sm:$0xff] %v1059
      %1076 = vst [vmem:[%s170 + $0x38] sm:$0xff] %v1060
      %1077 = vst [vmem:[%s170 + $0x40] sm:$0xff] %v1061
      %1078 = vst [vmem:[%s170 + $0x48] sm:$0xff] %v1062
      %1079 = vst [vmem:[%s170 + $0x50] sm:$0xff] %v1063
      %1080 = vst [vmem:[%s170 + $0x58] sm:$0xff] %v1064
      %1081 = vst [vmem:[%s170 + $0x60] sm:$0xff] %v1065
      %1082 = vst [vmem:[%s170 + $0x68] sm:$0xff] %v1066
      %1083 = vst [vmem:[%s170 + $0x70] sm:$0xff] %v1067
      %1084 = vst [vmem:[%s170 + $0x78] sm:$0xff] %v1068
      %s1085 = smul.u32 16, %s14
      %p1086 = scmp.lt.s32.totalorder %s1085, 31
      %s1087 = scalar_select %p1086, %s1085, 31
      %s1088 = smul.addr %s1087, 8
      %s1089 = scalar_lea.vmem %s3, %s1088
      // Predicated region
      $region33: #{basic_block_forward.3} parent=31 // pred_check
        %p1090 = pneg %p100
      $region34: #{basic_block_forward.3} parent=31 // pred_check_branch
        %1092 = sbr.rel (%p1090) target = $region36
      $region35: #{basic_block_forward.3} parent=31 // pred_region
        %s1093 = smul.u32 16, %s14
      $region36: #{basic_block_forward.3} parent=31 // pred_fallthru
        _
    $region32: #{basic_block_forward.3} parent=5 // pred_fallthru
      _
    %p1094 = scmp.le.s32.totalorder 2, %s9
    // Predicated region
    $region37: #{basic_block_forward.3} parent=5 // pred_check
      %p1095 = pneg %p1094
    $region38: #{basic_block_forward.3} parent=5 // pred_check_branch
      %1097 = sbr.rel (%p1095) target = $region40
    $region39: #{basic_block_forward.3} parent=5 // pred_region
      %s1098 = ssub.s32 %s9, 2
      // Predicated region
      $region41: #{basic_block_forward.3} parent=39 // pred_check
        %p1099 = pneg %p106
      $region42: #{basic_block_forward.3} parent=39 // pred_check_branch
        %1101 = sbr.rel (%p1099) target = $region44
      $region43: #{basic_block_forward.3} parent=39 // pred_region
        %s1102 = smul.u32 16, %s15
        %p1103 = scmp.lt.s32.totalorder %s1102, 31
        %s1104 = scalar_select %p1103, %s1102, 31
        %s1105 = smul.addr %s1104, 8
        %s1106 = scalar_lea.vmem %s3, %s1105
      $region44: #{basic_block_forward.3} parent=39 // pred_fallthru
        _
    $region40: #{basic_block_forward.3} parent=5 // pred_fallthru
      _
  $region6: #{basic_block_forward.3} parent=0 // loop_footer
    %s13 = sadd.s32 1, %s9
  $region7: #{basic_block_forward.3} parent=0 // loop_footer_branch
    %8 = sbr.rel target = $region3
  $region8: #{basic_block_forward.3} parent=0 // loop_exit
    _

// kernel: basic_block_forward.5
$region0: #{basic_block_forward.5}
  #allocation0 [shape = 'u32[]', space=smem, size = 0x4, offset = 0x4, fixed_abs, tag = 'smem constant byte address 0x4 - core index']
  #allocation1 [shape = 'u32[144,128]{1,0:T(1,128)}', space=vmem, size = 0x12000, scoped, tag = 'internal scratch']
  %s0 = inlined_call_operand.vmem [shape: bf16[2,176,8], index: 0, kind: input, shape index: {}]
  %s1 = inlined_call_operand.vmem [shape: bf16[9,8,128], index: 1, kind: input, shape index: {}]
  %s2 = inlined_call_operand.vmem [shape: f32[1,128], index: 2, kind: input, shape index: {}]
  %s3 = inlined_call_operand.vmem [shape: f32[256,128], index: 3, kind: input, shape index: {}]
  %s4 = inlined_call_operand.vmem [shape: f32[256,128], index: 4, kind: output, shape index: {}]
  %s5 = sld [smem:[#allocation0]]
  $region49: #{basic_block_forward.5} parent=0
    _
  %s7 = ssub.s32 1, %s5
  %s8 = scalar_select 0, %s7, %s5
  loop: start=0, step=1, limit=4
  $region2: #{basic_block_forward.5} parent=0 // loop_pre_header
    _
  $region3: #{basic_block_forward.5} parent=0 // loop_header
    %s10 = sphi 0, %s14
    %p11 = scmp.ge.s32.totalorder %s10, 4
    %s20 = sphi 0, %s22
    %s23 = sphi 0, %s20
    %s24 = sphi 0, %s23
    %s40 = sphi 0, %s24
    %s44 = sphi 0, %s44
    %s46 = sphi 0, %s44
    %s47 = sphi 0, %s46
    %s61 = sphi 0, %s47
    %s65 = sphi 0, %s65
    %s67 = sphi 0, %s65
    %s68 = sphi 0, %s67
    %s82 = sphi 0, %s68
    %s88 = sphi 0, %s90
    %s91 = sphi 0, %s88
    %s92 = sphi 0, %s91
    %s108 = sphi 0, %s92
    %s114 = sphi 0, %s116
    %s117 = sphi 0, %s114
    %s118 = sphi 0, %s117
    %s134 = sphi 0, %s118
  $region4: #{basic_block_forward.5} parent=0 // loop_header_branch
    %13 = sbr.rel (%p11) target = $region8
  $region5: #{basic_block_forward.5} parent=0 // loop_body
    %s15 = ssub.s32 %s10, 1
    %s16 = ssub.s32 %s10, 2
    %s17 = sadd.s32 %s10, 1
    %s18 = ssub.s32 %s10, %s17
    %p19 = scmp.eq.s32.totalorder %s18, 0
    %s21 = sadd.s32 %s20, 1
    %s22 = scalar_select %p19, %s20, %s21
    %p25 = pneg %p19
    %p26 = scmp.eq.s32.totalorder %s10, 1
    %p27 = por %p25, %p26
    %p28 = scmp.ne.s32.totalorder %s20, %s23
    %p29 = scmp.eq.s32.totalorder %s10, 0
    %p30 = por %p28, %p29
    %p31 = scmp.ne.s32.totalorder %s20, %s23
    %p32 = scmp.eq.s32.totalorder %s15, 1
    %p33 = por %p31, %p32
    %p34 = scmp.ne.s32.totalorder %s23, %s24
    %p35 = scmp.eq.s32.totalorder %s15, 0
    %p36 = por %p34, %p35
    %p37 = scmp.ne.s32.totalorder %s23, %s24
    %p38 = scmp.eq.s32.totalorder %s16, 1
    %p39 = por %p37, %p38
    %p41 = scmp.ne.s32.totalorder %s24, %s40
    %p42 = scmp.eq.s32.totalorder %s16, 0
    %p43 = por %p41, %p42
    %s45 = sadd.s32 %s44, 1
    %p48 = scmp.eq.s32.totalorder %s10, 1
    %p49 = scmp.ne.s32.totalorder %s44, %s46
    %p50 = scmp.eq.s32.totalorder %s10, 0
    %p51 = por %p49, %p50
    %p52 = scmp.ne.s32.totalorder %s44, %s46
    %p53 = scmp.eq.s32.totalorder %s15, 1
    %p54 = por %p52, %p53
    %p55 = scmp.ne.s32.totalorder %s46, %s47
    %p56 = scmp.eq.s32.totalorder %s15, 0
    %p57 = por %p55, %p56
    %p58 = scmp.ne.s32.totalorder %s46, %s47
    %p59 = scmp.eq.s32.totalorder %s16, 1
    %p60 = por %p58, %p59
    %p62 = scmp.ne.s32.totalorder %s47, %s61
    %p63 = scmp.eq.s32.totalorder %s16, 0
    %p64 = por %p62, %p63
    %s66 = sadd.s32 %s65, 1
    %p69 = scmp.eq.s32.totalorder %s10, 1
    %p70 = scmp.ne.s32.totalorder %s65, %s67
    %p71 = scmp.eq.s32.totalorder %s10, 0
    %p72 = por %p70, %p71
    %p73 = scmp.ne.s32.totalorder %s65, %s67
    %p74 = scmp.eq.s32.totalorder %s15, 1
    %p75 = por %p73, %p74
    %p76 = scmp.ne.s32.totalorder %s67, %s68
    %p77 = scmp.eq.s32.totalorder %s15, 0
    %p78 = por %p76, %p77
    %p79 = scmp.ne.s32.totalorder %s67, %s68
    %p80 = scmp.eq.s32.totalorder %s16, 1
    %p81 = por %p79, %p80
    %p83 = scmp.ne.s32.totalorder %s68, %s82
    %p84 = scmp.eq.s32.totalorder %s16, 0
    %p85 = por %p83, %p84
    %s86 = ssub.s32 %s10, %s17
    %p87 = scmp.eq.s32.totalorder %s86, 0
    %s89 = sadd.s32 %s88, 1
    %s90 = scalar_select %p87, %s88, %s89
    %p93 = pneg %p87
    %p94 = scmp.eq.s32.totalorder %s10, 1
    %p95 = por %p93, %p94
    %p96 = scmp.ne.s32.totalorder %s88, %s91
    %p97 = scmp.eq.s32.totalorder %s10, 0
    %p98 = por %p96, %p97
    %p99 = scmp.ne.s32.totalorder %s88, %s91
    %p100 = scmp.eq.s32.totalorder %s15, 1
    %p101 = por %p99, %p100
    %p102 = scmp.ne.s32.totalorder %s91, %s92
    %p103 = scmp.eq.s32.totalorder %s15, 0
    %p104 = por %p102, %p103
    %p105 = scmp.ne.s32.totalorder %s91, %s92
    %p106 = scmp.eq.s32.totalorder %s16, 1
    %p107 = por %p105, %p106
    %p109 = scmp.ne.s32.totalorder %s92, %s108
    %p110 = scmp.eq.s32.totalorder %s16, 0
    %p111 = por %p109, %p110
    %s112 = ssub.s32 %s10, %s17
    %p113 = scmp.eq.s32.totalorder %s112, 0
    %s115 = sadd.s32 %s114, 1
    %s116 = scalar_select %p113, %s114, %s115
    %p119 = pneg %p113
    %p120 = scmp.eq.s32.totalorder %s10, 1
    %p121 = por %p119, %p120
    %p122 = scmp.ne.s32.totalorder %s114, %s117
    %p123 = scmp.eq.s32.totalorder %s10, 0
    %p124 = por %p122, %p123
    %p125 = scmp.ne.s32.totalorder %s114, %s117
    %p126 = scmp.eq.s32.totalorder %s15, 1
    %p127 = por %p125, %p126
    %p128 = scmp.ne.s32.totalorder %s117, %s118
    %p129 = scmp.eq.s32.totalorder %s15, 0
    %p130 = por %p128, %p129
    %p131 = scmp.ne.s32.totalorder %s117, %s118
    %p132 = scmp.eq.s32.totalorder %s16, 1
    %p133 = por %p131, %p132
    %p135 = scmp.ne.s32.totalorder %s118, %s134
    %p136 = scmp.eq.s32.totalorder %s16, 0
    %p137 = por %p135, %p136
    %p138 = scmp.le.s32.totalorder 1, %s10
    %p139 = scmp.lt.s32.totalorder %s10, 3
    %p140 = pnand %p138, %p139
    %p141 = pneg %p140
    // Predicated region
    $region9: #{basic_block_forward.5} parent=5 // pred_check
      _
    $region10: #{basic_block_forward.5} parent=5 // pred_check_branch
      %143 = sbr.rel (%p140) target = $region12
    $region11: #{basic_block_forward.5} parent=5 // pred_region
      %s144 = ssub.s32 %s10, 1
      // Predicated region
      $region13: #{basic_block_forward.5} parent=11 // pred_check
        %p145 = pneg %p57
      $region14: #{basic_block_forward.5} parent=11 // pred_check_branch
        %147 = sbr.rel (%p145) target = $region16
      $region15: #{basic_block_forward.5} parent=11 // pred_region
        _
      $region16: #{basic_block_forward.5} parent=11 // pred_fallthru
        _
      // Predicated region
      $region17: #{basic_block_forward.5} parent=11 // pred_check
        %p148 = pneg %p78
      $region18: #{basic_block_forward.5} parent=11 // pred_check_branch
        %150 = sbr.rel (%p148) target = $region20
      $region19: #{basic_block_forward.5} parent=11 // pred_region
        _
      $region20: #{basic_block_forward.5} parent=11 // pred_fallthru
        _
    $region12: #{basic_block_forward.5} parent=5 // pred_fallthru
      _
    %p151 = scmp.lt.s32.totalorder %s10, 2
    // Predicated region
    $region21: #{basic_block_forward.5} parent=5 // pred_check
      %p152 = pneg %p151
    $region22: #{basic_block_forward.5} parent=5 // pred_check_branch
      %154 = sbr.rel (%p152) target = $region24
    $region23: #{basic_block_forward.5} parent=5 // pred_region
      // Predicated region
      $region25: #{basic_block_forward.5} parent=23 // pred_check
        %p155 = pneg %p30
      $region26: #{basic_block_forward.5} parent=23 // pred_check_branch
        %157 = sbr.rel (%p155) target = $region28
      $region27: #{basic_block_forward.5} parent=23 // pred_region
        %p158 = scmp.lt.s32.totalorder %s10, 1
        %s159 = scalar_select %p158, %s10, 1
        %s160 = smul.addr %s159, 22
        %s161 = smul.addr %s160, 4
        %s162 = scalar_lea.vmem %s0, %s161
      $region28: #{basic_block_forward.5} parent=23 // pred_fallthru
        _
      // Predicated region
      $region29: #{basic_block_forward.5} parent=23 // pred_check
        %p163 = pneg %p98
      $region30: #{basic_block_forward.5} parent=23 // pred_check_branch
        %165 = sbr.rel (%p163) target = $region32
      $region31: #{basic_block_forward.5} parent=23 // pred_region
        %s166 = smul.u32 16, %s10
        %p167 = scmp.lt.s32.totalorder %s166, 31
        %s168 = scalar_select %p167, %s166, 31
        %s169 = smul.addr %s168, 8
        %s170 = scalar_lea.vmem %s3, %s169
        %s171 = smul.u32 16, %s10
      $region32: #{basic_block_forward.5} parent=23 // pred_fallthru
        _
    $region24: #{basic_block_forward.5} parent=5 // pred_fallthru
      _
    %p172 = scmp.le.s32.totalorder 1, %s10
    %p173 = scmp.lt.s32.totalorder %s10, 3
    %p174 = pnand %p172, %p173
    %p175 = pneg %p174
    // Predicated region
    $region33: #{basic_block_forward.5} parent=5 // pred_check
      _
    $region34: #{basic_block_forward.5} parent=5 // pred_check_branch
      %177 = sbr.rel (%p174) target = $region36
    $region35: #{basic_block_forward.5} parent=5 // pred_region
      %s178 = ssub.s32 %s10, 1
      %p179 = scmp.lt.s32.totalorder %s15, 1
      %s180 = scalar_select %p179, %s15, 1
      %s181 = smul.addr %s180, 22
      %s182 = smul.addr %s181, 4
      %s183 = scalar_lea.vmem %s0, %s182
      %p184 = pneg %p36
      %p185 = pneg %p33
      %p186 = pneg %p57
      %p187 = pneg %p54
      %p188 = pneg %p78
      %p189 = pneg %p75
      %s190 = smul.u32 16, %s15
      %p191 = scmp.lt.s32.totalorder %s190, 31
      %s192 = scalar_select %p191, %s190, 31
      %s193 = smul.addr %s192, 8
      %s194 = scalar_lea.vmem %s3, %s193
      %p195 = pneg %p104
      %p196 = pneg %p101
      %p197 = pneg %p130
      %p198 = pneg %p127
      %s199 = smul.u32 16, %s15
      %p200 = scmp.lt.s32.totalorder %s199, 31
      %s201 = scalar_select %p200, %s199, 31
      %s202 = smul.addr %s201, 8
      %s203 = scalar_lea.vmem %s4, %s202
      %p204 = scmp.lt.s32.totalorder %s15, 1
      %s205 = scalar_select %p204, %s15, 1
      %s206 = smul.addr %s205, 22
      %s207 = smul.addr %s206, 4
      %s208 = scalar_lea.vmem %s0, %s207
      %s209 = smul.u32 16, %s15
      %p210 = scmp.lt.s32.totalorder %s209, 31
      %s211 = scalar_select %p210, %s209, 31
      %s212 = smul.addr %s211, 8
      %s213 = scalar_lea.vmem %s3, %s212
      %s214 = smul.u32 16, %s15
      %s215 = smul.u32 16, %s15
      %p216 = scmp.lt.s32.totalorder %s215, 31
      %s217 = scalar_select %p216, %s215, 31
      %s218 = smul.addr %s217, 8
      %s219 = scalar_lea.vmem %s4, %s218
      %s220 = smul.u32 16, %s15
      %v222 = vld [vmem:[%s208] sm:$0xf]
      %v223 = vld [vmem:[%s208 + $0x4] sm:$0xf]
      %v224 = vld [vmem:[%s208 + $0x8] sm:$0xf]
      %v225 = vld [vmem:[%s208 + $0xc] sm:$0xf]
      %v226 = vld [vmem:[%s208 + $0x10] sm:$0xf]
      %v227 = vld [vmem:[%s208 + $0x14] sm:$0xf]
      %v228 = vld [vmem:[%s208 + $0x18] sm:$0xf]
      %v229 = vld [vmem:[%s208 + $0x1c] sm:$0xf]
      %v230 = vld [vmem:[%s208 + $0x20] sm:$0xf]
      %v231 = vld [vmem:[%s208 + $0x24] sm:$0xf]
      %v232 = vld [vmem:[%s208 + $0x28] sm:$0xf]
      %v233 = vld [vmem:[%s208 + $0x2c] sm:$0xf]
      %v234 = vld [vmem:[%s208 + $0x30] sm:$0xf]
      %v235 = vld [vmem:[%s208 + $0x34] sm:$0xf]
      %v236 = vld [vmem:[%s208 + $0x38] sm:$0xf]
      %v237 = vld [vmem:[%s208 + $0x3c] sm:$0xf]
      %v238 = vld [vmem:[%s1] sm:$0xf]
      %v239 = vld [vmem:[%s208 + $0x40] sm:$0x1]
      %s240 = scalar_lea.vmem %s1, 4
      %v241 = vld [vmem:[%s240] sm:$0xf]
      %v259 = vunpack.c.l.b16 %v222
      %v260 = vunpack.c.l.b16 %v223
      %v261 = vunpack.c.l.b16 %v224
      %v262 = vunpack.c.l.b16 %v225
      %v263 = vunpack.c.l.b16 %v226
      %v264 = vunpack.c.l.b16 %v227
      %v265 = vunpack.c.l.b16 %v228
      %v266 = vunpack.c.l.b16 %v229
      %v267 = vunpack.c.l.b16 %v230
      %v268 = vunpack.c.l.b16 %v231
      %v269 = vunpack.c.l.b16 %v232
      %v270 = vunpack.c.l.b16 %v233
      %v271 = vunpack.c.l.b16 %v234
      %v272 = vunpack.c.l.b16 %v235
      %v273 = vunpack.c.l.b16 %v236
      %v274 = vunpack.c.l.b16 %v237
      %v275 = vunpack.c.l.b16 %v239
      %v276 = vpack.c.b16 %v260, %v259
      %v277 = vpack.c.b16 %v262, %v261
      %v278 = vpack.c.b16 %v264, %v263
      %v279 = vpack.c.b16 %v266, %v265
      %v280 = vpack.c.b16 %v268, %v267
      %v281 = vpack.c.b16 %v270, %v269
      %v282 = vpack.c.b16 %v272, %v271
      %v283 = vpack.c.b16 %v274, %v273
      %v284 = vpack.c.b16 %v275, %v275
      %vm285 = vsmask.f32 7424
      %v287 = vshrl.u32 %v276, 16
      %v289 = vshll.u32 %v276, 16
      %v291 = vrot.slane %v289, 1
      %v292 = vor.u32 %v287, %v291
      %v294 = vshll.u32 %v277, 16
      %v296 = vrot.slane %v294, 1
      %v297 = vsel %vm285, %v292, %v296
      %v298 = vshrl.u32 %v277, 16
      %v300 = vor.u32 %v298, %v296
      %v302 = vshll.u32 %v278, 16
      %v304 = vrot.slane %v302, 1
      %v305 = vsel %vm285, %v300, %v304
      %v306 = vshrl.u32 %v278, 16
      %v308 = vor.u32 %v306, %v304
      %v310 = vshll.u32 %v279, 16
      %v312 = vrot.slane %v310, 1
      %v313 = vsel %vm285, %v308, %v312
      %v314 = vshrl.u32 %v279, 16
      %v316 = vor.u32 %v314, %v312
      %v318 = vshll.u32 %v280, 16
      %v320 = vrot.slane %v318, 1
      %v321 = vsel %vm285, %v316, %v320
      %v322 = vshrl.u32 %v280, 16
      %v324 = vor.u32 %v322, %v320
      %v326 = vshll.u32 %v281, 16
      %v328 = vrot.slane %v326, 1
      %v329 = vsel %vm285, %v324, %v328
      %v330 = vshrl.u32 %v281, 16
      %v332 = vor.u32 %v330, %v328
      %v334 = vshll.u32 %v282, 16
      %v336 = vrot.slane %v334, 1
      %v337 = vsel %vm285, %v332, %v336
      %v338 = vshrl.u32 %v282, 16
      %v340 = vor.u32 %v338, %v336
      %v342 = vshll.u32 %v283, 16
      %v344 = vrot.slane %v342, 1
      %v345 = vsel %vm285, %v340, %v344
      %v346 = vshrl.u32 %v283, 16
      %v348 = vor.u32 %v346, %v344
      %v350 = vshll.u32 %v284, 16
      %v352 = vrot.slane %v350, 1
      %v353 = vsel %vm285, %v348, %v352
      %vm354 = vcmask 64512
      %v356 = vsel %vm354, %v297, 0
      %v359 = vsel %vm354, %v305, 0
      %v362 = vsel %vm354, %v313, 0
      %v365 = vsel %vm354, %v321, 0
      %v368 = vsel %vm354, %v329, 0
      %v371 = vsel %vm354, %v337, 0
      %v374 = vsel %vm354, %v345, 0
      %v377 = vsel %vm354, %v353, 0
      %vm379 = vcmask 1043456
      %v381 = vsel %vm379, %v241, 0
      %383 = vmatprep.subr.bf16.mxu0 0
      %384 = vmatpush1.bf16.msra.mxu0 %v381
      %385 = vmatprep.subr.bf16.mxu0 0
      %386 = vmatpush1.bf16.msra.mxu0 0
      %387 = vmatprep.subr.bf16.mxu0 0
      %388 = vmatpush1.bf16.msra.mxu0 0
      %389 = vmatprep.subr.bf16.mxu0 0
      %390 = vmatpush1.bf16.msra.mxu0 0
      %391 = vmatprep.subr.bf16.mxu0 0
      %392 = vmatpush1.bf16.msra.mxu0 0
      %393 = vmatprep.subr.bf16.mxu0 0
      %394 = vmatpush1.bf16.msra.mxu0 0
      %395 = vmatprep.subr.bf16.mxu0 0
      %396 = vmatpush1.bf16.msra.mxu0 0
      %397 = vmatprep.subr.bf16.mxu0 0
      %398 = vmatpush1.bf16.msra.mxu0 0
      %399 = vmatprep.subr.bf16.mxu0 0
      %400 = vmatpush1.bf16.msra.mxu0 0
      %401 = vmatprep.subr.bf16.mxu0 0
      %402 = vmatpush1.bf16.msra.mxu0 0
      %403 = vmatprep.subr.bf16.mxu0 0
      %404 = vmatpush1.bf16.msra.mxu0 0
      %405 = vmatprep.subr.bf16.mxu0 0
      %406 = vmatpush1.bf16.msra.mxu0 0
      %407 = vmatprep.subr.bf16.mxu0 0
      %408 = vmatpush1.bf16.msra.mxu0 0
      %409 = vmatprep.subr.bf16.mxu0 0
      %410 = vmatpush1.bf16.msra.mxu0 0
      %411 = vmatprep.subr.bf16.mxu0 0
      %412 = vmatpush1.bf16.msra.mxu0 0
      %413 = vmatprep.subr.bf16.mxu0 0
      %414 = vmatpush1.bf16.msra.mxu0 0
      %415 = vmatprep.mubr.bf16.mxu0 0
      %416 = vmatmul.mubr.bf16.gmra.mrb[0].mxu0 %v356
      %v417 = vpop.f32.mrb[0].mxu0
      %v418 = vadd.f32 0.0, %v417
      %v419 = vpop.f32.mrb[0].mxu0
      %v420 = vpop.f32.mrb[0].mxu0
      %v421 = vadd.f32 0.0, %v420
      %v422 = vpop.f32.mrb[0].mxu0
      %423 = vmatprep.mubr.bf16.mxu0 0
      %424 = vmatmul.mubr.bf16.gmra.mrb[0].mxu0 %v359
      %v425 = vpop.f32.mrb[0].mxu0
      %v426 = vadd.f32 0.0, %v425
      %v427 = vpop.f32.mrb[0].mxu0
      %v428 = vpop.f32.mrb[0].mxu0
      %v429 = vadd.f32 0.0, %v428
      %v430 = vpop.f32.mrb[0].mxu0
      %431 = vmatprep.mubr.bf16.mxu0 0
      %432 = vmatmul.mubr.bf16.gmra.mrb[0].mxu0 %v362
      %v433 = vpop.f32.mrb[0].mxu0
      %v434 = vadd.f32 0.0, %v433
      %v435 = vpop.f32.mrb[0].mxu0
      %v436 = vpop.f32.mrb[0].mxu0
      %v437 = vadd.f32 0.0, %v436
      %v438 = vpop.f32.mrb[0].mxu0
      %439 = vmatprep.mubr.bf16.mxu0 0
      %440 = vmatmul.mubr.bf16.gmra.mrb[0].mxu0 %v365
      %v441 = vpop.f32.mrb[0].mxu0
      %v442 = vadd.f32 0.0, %v441
      %v443 = vpop.f32.mrb[0].mxu0
      %v444 = vpop.f32.mrb[0].mxu0
      %v445 = vadd.f32 0.0, %v444
      %v446 = vpop.f32.mrb[0].mxu0
      %447 = vmatprep.mubr.bf16.mxu0 0
      %448 = vmatmul.mubr.bf16.gmra.mrb[0].mxu0 %v368
      %v449 = vpop.f32.mrb[0].mxu0
      %v450 = vadd.f32 0.0, %v449
      %v451 = vpop.f32.mrb[0].mxu0
      %v452 = vpop.f32.mrb[0].mxu0
      %v453 = vadd.f32 0.0, %v452
      %v454 = vpop.f32.mrb[0].mxu0
      %455 = vmatprep.mubr.bf16.mxu0 0
      %456 = vmatmul.mubr.bf16.gmra.mrb[0].mxu0 %v371
      %v457 = vpop.f32.mrb[0].mxu0
      %v458 = vadd.f32 0.0, %v457
      %v459 = vpop.f32.mrb[0].mxu0
      %v460 = vpop.f32.mrb[0].mxu0
      %v461 = vadd.f32 0.0, %v460
      %v462 = vpop.f32.mrb[0].mxu0
      %463 = vmatprep.mubr.bf16.mxu0 0
      %464 = vmatmul.mubr.bf16.gmra.mrb[0].mxu0 %v374
      %v465 = vpop.f32.mrb[0].mxu0
      %v466 = vadd.f32 0.0, %v465
      %v467 = vpop.f32.mrb[0].mxu0
      %v468 = vpop.f32.mrb[0].mxu0
      %v469 = vadd.f32 0.0, %v468
      %v470 = vpop.f32.mrb[0].mxu0
      %471 = vmatprep.mubr.bf16.mxu0 0
      %472 = vmatmul.mubr.bf16.gmra.mrb[0].mxu0 %v377
      %v473 = vpop.f32.mrb[0].mxu0
      %v474 = vadd.f32 0.0, %v473
      %v475 = vpop.f32.mrb[0].mxu0
      %v476 = vpop.f32.mrb[0].mxu0
      %v477 = vadd.f32 0.0, %v476
      %v478 = vpop.f32.mrb[0].mxu0
      %479 = vdwg.mxu0
      %v480 = vsel %vm354, %v276, 0
      %v482 = vsel %vm354, %v277, 0
      %v484 = vsel %vm354, %v278, 0
      %v486 = vsel %vm354, %v279, 0
      %v488 = vsel %vm354, %v280, 0
      %v490 = vsel %vm354, %v281, 0
      %v492 = vsel %vm354, %v282, 0
      %v494 = vsel %vm354, %v283, 0
      %v497 = vsel %vm379, %v238, 0
      %499 = vmatprep.subr.bf16.mxu0 0
      %500 = vmatpush1.bf16.msra.mxu0 %v497
      %501 = vmatprep.subr.bf16.mxu0 0
      %502 = vmatpush1.bf16.msra.mxu0 0
      %503 = vmatprep.subr.bf16.mxu0 0
      %504 = vmatpush1.bf16.msra.mxu0 0
      %505 = vmatprep.subr.bf16.mxu0 0
      %506 = vmatpush1.bf16.msra.mxu0 0
      %507 = vmatprep.subr.bf16.mxu0 0
      %508 = vmatpush1.bf16.msra.mxu0 0
      %509 = vmatprep.subr.bf16.mxu0 0
      %510 = vmatpush1.bf16.msra.mxu0 0
      %511 = vmatprep.subr.bf16.mxu0 0
      %512 = vmatpush1.bf16.msra.mxu0 0
      %513 = vmatprep.subr.bf16.mxu0 0
      %514 = vmatpush1.bf16.msra.mxu0 0
      %515 = vmatprep.subr.bf16.mxu0 0
      %516 = vmatpush1.bf16.msra.mxu0 0
      %517 = vmatprep.subr.bf16.mxu0 0
      %518 = vmatpush1.bf16.msra.mxu0 0
      %519 = vmatprep.subr.bf16.mxu0 0
      %520 = vmatpush1.bf16.msra.mxu0 0
      %521 = vmatprep.subr.bf16.mxu0 0
      %522 = vmatpush1.bf16.msra.mxu0 0
      %523 = vmatprep.subr.bf16.mxu0 0
      %524 = vmatpush1.bf16.msra.mxu0 0
      %525 = vmatprep.subr.bf16.mxu0 0
      %526 = vmatpush1.bf16.msra.mxu0 0
      %527 = vmatprep.subr.bf16.mxu0 0
      %528 = vmatpush1.bf16.msra.mxu0 0
      %529 = vmatprep.subr.bf16.mxu0 0
      %530 = vmatpush1.bf16.msra.mxu0 0
      %531 = vmatprep.mubr.bf16.mxu0 0
      %532 = vmatmul.mubr.bf16.gmra.mrb[0].mxu0 %v480
      %v533 = vpop.f32.mrb[0].mxu0
      %v534 = vadd.f32 %v418, %v533
      %v535 = vpop.f32.mrb[0].mxu0
      %v536 = vpop.f32.mrb[0].mxu0
      %v537 = vadd.f32 %v421, %v536
      %v538 = vpop.f32.mrb[0].mxu0
      %539 = vmatprep.mubr.bf16.mxu0 0
      %540 = vmatmul.mubr.bf16.gmra.mrb[0].mxu0 %v482
      %v541 = vpop.f32.mrb[0].mxu0
      %v542 = vadd.f32 %v426, %v541
      %v543 = vpop.f32.mrb[0].mxu0
      %v544 = vpop.f32.mrb[0].mxu0
      %v545 = vadd.f32 %v429, %v544
      %v546 = vpop.f32.mrb[0].mxu0
      %547 = vmatprep.mubr.bf16.mxu0 0
      %548 = vmatmul.mubr.bf16.gmra.mrb[0].mxu0 %v484
      %v549 = vpop.f32.mrb[0].mxu0
      %v550 = vadd.f32 %v434, %v549
      %v551 = vpop.f32.mrb[0].mxu0
      %v552 = vpop.f32.mrb[0].mxu0
      %v553 = vadd.f32 %v437, %v552
      %v554 = vpop.f32.mrb[0].mxu0
      %555 = vmatprep.mubr.bf16.mxu0 0
      %556 = vmatmul.mubr.bf16.gmra.mrb[0].mxu0 %v486
      %v557 = vpop.f32.mrb[0].mxu0
      %v558 = vadd.f32 %v442, %v557
      %v559 = vpop.f32.mrb[0].mxu0
      %v560 = vpop.f32.mrb[0].mxu0
      %v561 = vadd.f32 %v445, %v560
      %v562 = vpop.f32.mrb[0].mxu0
      %563 = vmatprep.mubr.bf16.mxu0 0
      %564 = vmatmul.mubr.bf16.gmra.mrb[0].mxu0 %v488
      %v565 = vpop.f32.mrb[0].mxu0
      %v566 = vadd.f32 %v450, %v565
      %v567 = vpop.f32.mrb[0].mxu0
      %v568 = vpop.f32.mrb[0].mxu0
      %v569 = vadd.f32 %v453, %v568
      %v570 = vpop.f32.mrb[0].mxu0
      %571 = vmatprep.mubr.bf16.mxu0 0
      %572 = vmatmul.mubr.bf16.gmra.mrb[0].mxu0 %v490
      %v573 = vpop.f32.mrb[0].mxu0
      %v574 = vadd.f32 %v458, %v573
      %v575 = vpop.f32.mrb[0].mxu0
      %v576 = vpop.f32.mrb[0].mxu0
      %v577 = vadd.f32 %v461, %v576
      %v578 = vpop.f32.mrb[0].mxu0
      %579 = vmatprep.mubr.bf16.mxu0 0
      %580 = vmatmul.mubr.bf16.gmra.mrb[0].mxu0 %v492
      %v581 = vpop.f32.mrb[0].mxu0
      %v582 = vadd.f32 %v466, %v581
      %v583 = vpop.f32.mrb[0].mxu0
      %v584 = vpop.f32.mrb[0].mxu0
      %v585 = vadd.f32 %v469, %v584
      %v586 = vpop.f32.mrb[0].mxu0
      %587 = vmatprep.mubr.bf16.mxu0 0
      %588 = vmatmul.mubr.bf16.gmra.mrb[0].mxu0 %v494
      %v589 = vpop.f32.mrb[0].mxu0
      %v590 = vadd.f32 %v474, %v589
      %v591 = vpop.f32.mrb[0].mxu0
      %v592 = vpop.f32.mrb[0].mxu0
      %v593 = vadd.f32 %v477, %v592
      %v594 = vpop.f32.mrb[0].mxu0
      %595 = vdwg.mxu0
      %v596 = vld [vmem:[%s208] sm:$0xe]
      %s597 = scalar_lea.vmem %s1, 8
      %v598 = vld [vmem:[%s597] sm:$0xf]
      %v600 = vunpack.c.l.b16 %v596
      %v601 = vpack.c.b16 %v260, %v600
      %vm602 = vcmask 1046528
      %v603 = vrot.slane %v601, 1
      %v604 = vrot.slane %v277, 1
      %v605 = vsel %vm602, %v603, %v604
      %v606 = vrot.slane %v278, 1
      %v607 = vsel %vm602, %v604, %v606
      %v608 = vrot.slane %v279, 1
      %v609 = vsel %vm602, %v606, %v608
      %v610 = vrot.slane %v280, 1
      %v611 = vsel %vm602, %v608, %v610
      %v612 = vrot.slane %v281, 1
      %v613 = vsel %vm602, %v610, %v612
      %v614 = vrot.slane %v282, 1
      %v615 = vsel %vm602, %v612, %v614
      %v616 = vrot.slane %v283, 1
      %v617 = vsel %vm602, %v614, %v616
      %v618 = vrot.slane %v284, 1
      %v619 = vsel %vm602, %v616, %v618
      %v621 = vsel %vm354, %v605, 0
      %v624 = vsel %vm354, %v607, 0
      %v627 = vsel %vm354, %v609, 0
      %v630 = vsel %vm354, %v611, 0
      %v633 = vsel %vm354, %v613, 0
      %v636 = vsel %vm354, %v615, 0
      %v639 = vsel %vm354, %v617, 0
      %v642 = vsel %vm354, %v619, 0
      %v645 = vsel %vm379, %v598, 0
      %647 = vmatprep.subr.bf16.mxu0 0
      %648 = vmatpush1.bf16.msra.mxu0 %v645
      %649 = vmatprep.subr.bf16.mxu0 0
      %650 = vmatpush1.bf16.msra.mxu0 0
      %651 = vmatprep.subr.bf16.mxu0 0
      %652 = vmatpush1.bf16.msra.mxu0 0
      %653 = vmatprep.subr.bf16.mxu0 0
      %654 = vmatpush1.bf16.msra.mxu0 0
      %655 = vmatprep.subr.bf16.mxu0 0
      %656 = vmatpush1.bf16.msra.mxu0 0
      %657 = vmatprep.subr.bf16.mxu0 0
      %658 = vmatpush1.bf16.msra.mxu0 0
      %659 = vmatprep.subr.bf16.mxu0 0
      %660 = vmatpush1.bf16.msra.mxu0 0
      %661 = vmatprep.subr.bf16.mxu0 0
      %662 = vmatpush1.bf16.msra.mxu0 0
      %663 = vmatprep.subr.bf16.mxu0 0
      %664 = vmatpush1.bf16.msra.mxu0 0
      %665 = vmatprep.subr.bf16.mxu0 0
      %666 = vmatpush1.bf16.msra.mxu0 0
      %667 = vmatprep.subr.bf16.mxu0 0
      %668 = vmatpush1.bf16.msra.mxu0 0
      %669 = vmatprep.subr.bf16.mxu0 0
      %670 = vmatpush1.bf16.msra.mxu0 0
      %671 = vmatprep.subr.bf16.mxu0 0
      %672 = vmatpush1.bf16.msra.mxu0 0
      %673 = vmatprep.subr.bf16.mxu0 0
      %674 = vmatpush1.bf16.msra.mxu0 0
      %675 = vmatprep.subr.bf16.mxu0 0
      %676 = vmatpush1.bf16.msra.mxu0 0
      %677 = vmatprep.subr.bf16.mxu0 0
      %678 = vmatpush1.bf16.msra.mxu0 0
      %679 = vmatprep.mubr.bf16.mxu0 0
      %680 = vmatmul.mubr.bf16.gmra.mrb[0].mxu0 %v621
      %v681 = vpop.f32.mrb[0].mxu0
      %v682 = vadd.f32 0.0, %v681
      %v683 = vpop.f32.mrb[0].mxu0
      %v684 = vpop.f32.mrb[0].mxu0
      %v685 = vadd.f32 0.0, %v684
      %v686 = vpop.f32.mrb[0].mxu0
      %687 = vmatprep.mubr.bf16.mxu0 0
      %688 = vmatmul.mubr.bf16.gmra.mrb[0].mxu0 %v624
      %v689 = vpop.f32.mrb[0].mxu0
      %v690 = vadd.f32 0.0, %v689
      %v691 = vpop.f32.mrb[0].mxu0
      %v692 = vpop.f32.mrb[0].mxu0
      %v693 = vadd.f32 0.0, %v692
      %v694 = vpop.f32.mrb[0].mxu0
      %695 = vmatprep.mubr.bf16.mxu0 0
      %696 = vmatmul.mubr.bf16.gmra.mrb[0].mxu0 %v627
      %v697 = vpop.f32.mrb[0].mxu0
      %v698 = vadd.f32 0.0, %v697
      %v699 = vpop.f32.mrb[0].mxu0
      %v700 = vpop.f32.mrb[0].mxu0
      %v701 = vadd.f32 0.0, %v700
      %v702 = vpop.f32.mrb[0].mxu0
      %703 = vmatprep.mubr.bf16.mxu0 0
      %704 = vmatmul.mubr.bf16.gmra.mrb[0].mxu0 %v630
      %v705 = vpop.f32.mrb[0].mxu0
      %v706 = vadd.f32 0.0, %v705
      %v707 = vpop.f32.mrb[0].mxu0
      %v708 = vpop.f32.mrb[0].mxu0
      %v709 = vadd.f32 0.0, %v708
      %v710 = vpop.f32.mrb[0].mxu0
      %711 = vmatprep.mubr.bf16.mxu0 0
      %712 = vmatmul.mubr.bf16.gmra.mrb[0].mxu0 %v633
      %v713 = vpop.f32.mrb[0].mxu0
      %v714 = vadd.f32 0.0, %v713
      %v715 = vpop.f32.mrb[0].mxu0
      %v716 = vpop.f32.mrb[0].mxu0
      %v717 = vadd.f32 0.0, %v716
      %v718 = vpop.f32.mrb[0].mxu0
      %719 = vmatprep.mubr.bf16.mxu0 0
      %720 = vmatmul.mubr.bf16.gmra.mrb[0].mxu0 %v636
      %v721 = vpop.f32.mrb[0].mxu0
      %v722 = vadd.f32 0.0, %v721
      %v723 = vpop.f32.mrb[0].mxu0
      %v724 = vpop.f32.mrb[0].mxu0
      %v725 = vadd.f32 0.0, %v724
      %v726 = vpop.f32.mrb[0].mxu0
      %727 = vmatprep.mubr.bf16.mxu0 0
      %728 = vmatmul.mubr.bf16.gmra.mrb[0].mxu0 %v639
      %v729 = vpop.f32.mrb[0].mxu0
      %v730 = vadd.f32 0.0, %v729
      %v731 = vpop.f32.mrb[0].mxu0
      %v732 = vpop.f32.mrb[0].mxu0
      %v733 = vadd.f32 0.0, %v732
      %v734 = vpop.f32.mrb[0].mxu0
      %735 = vmatprep.mubr.bf16.mxu0 0
      %736 = vmatmul.mubr.bf16.gmra.mrb[0].mxu0 %v642
      %v737 = vpop.f32.mrb[0].mxu0
      %v738 = vadd.f32 0.0, %v737
      %v739 = vpop.f32.mrb[0].mxu0
      %v740 = vpop.f32.mrb[0].mxu0
      %v741 = vadd.f32 0.0, %v740
      %v742 = vpop.f32.mrb[0].mxu0
      %743 = vdwg.mxu0
      %v744 = vadd.f32 %v534, %v682
      %v745 = vadd.f32 %v537, %v685
      %v746 = vadd.f32 %v542, %v690
      %v747 = vadd.f32 %v545, %v693
      %v748 = vadd.f32 %v550, %v698
      %v749 = vadd.f32 %v553, %v701
      %v750 = vadd.f32 %v558, %v706
      %v751 = vadd.f32 %v561, %v709
      %v752 = vadd.f32 %v566, %v714
      %v753 = vadd.f32 %v569, %v717
      %v754 = vadd.f32 %v574, %v722
      %v755 = vadd.f32 %v577, %v725
      %v756 = vadd.f32 %v582, %v730
      %v757 = vadd.f32 %v585, %v733
      %v758 = vadd.f32 %v590, %v738
      %v759 = vadd.f32 %v593, %v741
      %v760 = vld [vmem:[%s208 + $0x8] sm:$0xf]
      %v761 = vld [vmem:[%s208 + $0xc] sm:$0xf]
      %v762 = vld [vmem:[%s208 + $0x10] sm:$0xf]
      %v763 = vld [vmem:[%s208 + $0x14] sm:$0xf]
      %v764 = vld [vmem:[%s208 + $0x18] sm:$0xf]
      %v765 = vld [vmem:[%s208 + $0x1c] sm:$0xf]
      %v766 = vld [vmem:[%s208 + $0x20] sm:$0xf]
      %v767 = vld [vmem:[%s208 + $0x24] sm:$0xf]
      %v768 = vld [vmem:[%s208 + $0x28] sm:$0xf]
      %v769 = vld [vmem:[%s208 + $0x2c] sm:$0xf]
      %v770 = vld [vmem:[%s208 + $0x30] sm:$0xf]
      %v771 = vld [vmem:[%s208 + $0x34] sm:$0xf]
      %v772 = vld [vmem:[%s208 + $0x38] sm:$0xf]
      %v773 = vld [vmem:[%s208 + $0x3c] sm:$0xf]
      %v774 = vld [vmem:[%s208 + $0x40] sm:$0xf]
      %v775 = vld [vmem:[%s208 + $0x44] sm:$0xf]
      %s776 = scalar_lea.vmem %s1, 12
      %v777 = vld [vmem:[%s776] sm:$0xf]
      %v794 = vunpack.c.l.b16 %v760
      %v795 = vunpack.c.l.b16 %v761
      %v796 = vunpack.c.l.b16 %v762
      %v797 = vunpack.c.l.b16 %v763
      %v798 = vunpack.c.l.b16 %v764
      %v799 = vunpack.c.l.b16 %v765
      %v800 = vunpack.c.l.b16 %v766
      %v801 = vunpack.c.l.b16 %v767
      %v802 = vunpack.c.l.b16 %v768
      %v803 = vunpack.c.l.b16 %v769
      %v804 = vunpack.c.l.b16 %v770
      %v805 = vunpack.c.l.b16 %v771
      %v806 = vunpack.c.l.b16 %v772
      %v807 = vunpack.c.l.b16 %v773
      %v808 = vunpack.c.l.b16 %v774
      %v809 = vunpack.c.l.b16 %v775
      %v810 = vpack.c.b16 %v795, %v794
      %v811 = vpack.c.b16 %v797, %v796
      %v812 = vpack.c.b16 %v799, %v798
      %v813 = vpack.c.b16 %v801, %v800
      %v814 = vpack.c.b16 %v803, %v802
      %v815 = vpack.c.b16 %v805, %v804
      %v816 = vpack.c.b16 %v807, %v806
      %v817 = vpack.c.b16 %v809, %v808
      %v819 = vsel %vm354, %v810, 0
      %v822 = vsel %vm354, %v811, 0
      %v825 = vsel %vm354, %v812, 0
      %v828 = vsel %vm354, %v813, 0
      %v831 = vsel %vm354, %v814, 0
      %v834 = vsel %vm354, %v815, 0
      %v837 = vsel %vm354, %v816, 0
      %v840 = vsel %vm354, %v817, 0
      %v843 = vsel %vm379, %v777, 0
      %845 = vmatprep.subr.bf16.mxu0 0
      %846 = vmatpush1.bf16.msra.mxu0 %v843
      %847 = vmatprep.subr.bf16.mxu0 0
      %848 = vmatpush1.bf16.msra.mxu0 0
      %849 = vmatprep.subr.bf16.mxu0 0
      %850 = vmatpush1.bf16.msra.mxu0 0
      %851 = vmatprep.subr.bf16.mxu0 0
      %852 = vmatpush1.bf16.msra.mxu0 0
      %853 = vmatprep.subr.bf16.mxu0 0
      %854 = vmatpush1.bf16.msra.mxu0 0
      %855 = vmatprep.subr.bf16.mxu0 0
      %856 = vmatpush1.bf16.msra.mxu0 0
      %857 = vmatprep.subr.bf16.mxu0 0
      %858 = vmatpush1.bf16.msra.mxu0 0
      %859 = vmatprep.subr.bf16.mxu0 0
      %860 = vmatpush1.bf16.msra.mxu0 0
      %861 = vmatprep.subr.bf16.mxu0 0
      %862 = vmatpush1.bf16.msra.mxu0 0
      %863 = vmatprep.subr.bf16.mxu0 0
      %864 = vmatpush1.bf16.msra.mxu0 0
      %865 = vmatprep.subr.bf16.mxu0 0
      %866 = vmatpush1.bf16.msra.mxu0 0
      %867 = vmatprep.subr.bf16.mxu0 0
      %868 = vmatpush1.bf16.msra.mxu0 0
      %869 = vmatprep.subr.bf16.mxu0 0
      %870 = vmatpush1.bf16.msra.mxu0 0
      %871 = vmatprep.subr.bf16.mxu0 0
      %872 = vmatpush1.bf16.msra.mxu0 0
      %873 = vmatprep.subr.bf16.mxu0 0
      %874 = vmatpush1.bf16.msra.mxu0 0
      %875 = vmatprep.subr.bf16.mxu0 0
      %876 = vmatpush1.bf16.msra.mxu0 0
      %877 = vmatprep.mubr.bf16.mxu0 0
      %878 = vmatmul.mubr.bf16.gmra.mrb[0].mxu0 %v819
      %v879 = vpop.f32.mrb[0].mxu0
      %v880 = vadd.f32 0.0, %v879
      %v881 = vpop.f32.mrb[0].mxu0
      %v882 = vpop.f32.mrb[0].mxu0
      %v883 = vadd.f32 0.0, %v882
      %v884 = vpop.f32.mrb[0].mxu0
      %885 = vmatprep.mubr.bf16.mxu0 0
      %886 = vmatmul.mubr.bf16.gmra.mrb[0].mxu0 %v822
      %v887 = vpop.f32.mrb[0].mxu0
      %v888 = vadd.f32 0.0, %v887
      %v889 = vpop.f32.mrb[0].mxu0
      %v890 = vpop.f32.mrb[0].mxu0
      %v891 = vadd.f32 0.0, %v890
      %v892 = vpop.f32.mrb[0].mxu0
      %893 = vmatprep.mubr.bf16.mxu0 0
      %894 = vmatmul.mubr.bf16.gmra.mrb[0].mxu0 %v825
      %v895 = vpop.f32.mrb[0].mxu0
      %v896 = vadd.f32 0.0, %v895
      %v897 = vpop.f32.mrb[0].mxu0
      %v898 = vpop.f32.mrb[0].mxu0
      %v899 = vadd.f32 0.0, %v898
      %v900 = vpop.f32.mrb[0].mxu0
      %901 = vmatprep.mubr.bf16.mxu0 0
      %902 = vmatmul.mubr.bf16.gmra.mrb[0].mxu0 %v828
      %v903 = vpop.f32.mrb[0].mxu0
      %v904 = vadd.f32 0.0, %v903
      %v905 = vpop.f32.mrb[0].mxu0
      %v906 = vpop.f32.mrb[0].mxu0
      %v907 = vadd.f32 0.0, %v906
      %v908 = vpop.f32.mrb[0].mxu0
      %909 = vmatprep.mubr.bf16.mxu0 0
      %910 = vmatmul.mubr.bf16.gmra.mrb[0].mxu0 %v831
      %v911 = vpop.f32.mrb[0].mxu0
      %v912 = vadd.f32 0.0, %v911
      %v913 = vpop.f32.mrb[0].mxu0
      %v914 = vpop.f32.mrb[0].mxu0
      %v915 = vadd.f32 0.0, %v914
      %v916 = vpop.f32.mrb[0].mxu0
      %917 = vmatprep.mubr.bf16.mxu0 0
      %918 = vmatmul.mubr.bf16.gmra.mrb[0].mxu0 %v834
      %v919 = vpop.f32.mrb[0].mxu0
      %v920 = vadd.f32 0.0, %v919
      %v921 = vpop.f32.mrb[0].mxu0
      %v922 = vpop.f32.mrb[0].mxu0
      %v923 = vadd.f32 0.0, %v922
      %v924 = vpop.f32.mrb[0].mxu0
      %925 = vmatprep.mubr.bf16.mxu0 0
      %926 = vmatmul.mubr.bf16.gmra.mrb[0].mxu0 %v837
      %v927 = vpop.f32.mrb[0].mxu0
      %v928 = vadd.f32 0.0, %v927
      %v929 = vpop.f32.mrb[0].mxu0
      %v930 = vpop.f32.mrb[0].mxu0
      %v931 = vadd.f32 0.0, %v930
      %v932 = vpop.f32.mrb[0].mxu0
      %933 = vmatprep.mubr.bf16.mxu0 0
      %934 = vmatmul.mubr.bf16.gmra.mrb[0].mxu0 %v840
      %v935 = vpop.f32.mrb[0].mxu0
      %v936 = vadd.f32 0.0, %v935
      %v937 = vpop.f32.mrb[0].mxu0
      %v938 = vpop.f32.mrb[0].mxu0
      %v939 = vadd.f32 0.0, %v938
      %v940 = vpop.f32.mrb[0].mxu0
      %941 = vdwg.mxu0
      %v942 = vadd.f32 %v744, %v880
      %v943 = vadd.f32 %v745, %v883
      %v944 = vadd.f32 %v746, %v888
      %v945 = vadd.f32 %v747, %v891
      %v946 = vadd.f32 %v748, %v896
      %v947 = vadd.f32 %v749, %v899
      %v948 = vadd.f32 %v750, %v904
      %v949 = vadd.f32 %v751, %v907
      %v950 = vadd.f32 %v752, %v912
      %v951 = vadd.f32 %v753, %v915
      %v952 = vadd.f32 %v754, %v920
      %v953 = vadd.f32 %v755, %v923
      %v954 = vadd.f32 %v756, %v928
      %v955 = vadd.f32 %v757, %v931
      %v956 = vadd.f32 %v758, %v936
      %v957 = vadd.f32 %v759, %v939
      %v958 = vld [vmem:[%s208 + $0x8] sm:$0xf]
      %v959 = vld [vmem:[%s208 + $0xc] sm:$0xf]
      %v960 = vld [vmem:[%s208 + $0x10] sm:$0xf]
      %v961 = vld [vmem:[%s208 + $0x14] sm:$0xf]
      %v962 = vld [vmem:[%s208 + $0x18] sm:$0xf]
      %v963 = vld [vmem:[%s208 + $0x1c] sm:$0xf]
      %v964 = vld [vmem:[%s208 + $0x20] sm:$0xf]
      %v965 = vld [vmem:[%s208 + $0x24] sm:$0xf]
      %v966 = vld [vmem:[%s208 + $0x28] sm:$0xf]
      %v967 = vld [vmem:[%s208 + $0x2c] sm:$0xf]
      %v968 = vld [vmem:[%s208 + $0x30] sm:$0xf]
      %v969 = vld [vmem:[%s208 + $0x34] sm:$0xf]
      %v970 = vld [vmem:[%s208 + $0x38] sm:$0xf]
      %v971 = vld [vmem:[%s208 + $0x3c] sm:$0xf]
      %v972 = vld [vmem:[%s208 + $0x40] sm:$0xf]
      %v973 = vld [vmem:[%s208 + $0x44] sm:$0xf]
      %v974 = vld [vmem:[%s208 + $0x48] sm:$0x1]
      %s975 = scalar_lea.vmem %s1, 16
      %v976 = vld [vmem:[%s975] sm:$0xf]
      %v994 = vunpack.c.l.b16 %v958
      %v995 = vunpack.c.l.b16 %v959
      %v996 = vunpack.c.l.b16 %v960
      %v997 = vunpack.c.l.b16 %v961
      %v998 = vunpack.c.l.b16 %v962
      %v999 = vunpack.c.l.b16 %v963
      %v1000 = vunpack.c.l.b16 %v964
      %v1001 = vunpack.c.l.b16 %v965
      %v1002 = vunpack.c.l.b16 %v966
      %v1003 = vunpack.c.l.b16 %v967
      %v1004 = vunpack.c.l.b16 %v968
      %v1005 = vunpack.c.l.b16 %v969
      %v1006 = vunpack.c.l.b16 %v970
      %v1007 = vunpack.c.l.b16 %v971
      %v1008 = vunpack.c.l.b16 %v972
      %v1009 = vunpack.c.l.b16 %v973
      %v1010 = vunpack.c.l.b16 %v974
      %v1011 = vpack.c.b16 %v995, %v994
      %v1012 = vpack.c.b16 %v997, %v996
      %v1013 = vpack.c.b16 %v999, %v998
      %v1014 = vpack.c.b16 %v1001, %v1000
      %v1015 = vpack.c.b16 %v1003, %v1002
      %v1016 = vpack.c.b16 %v1005, %v1004
      %v1017 = vpack.c.b16 %v1007, %v1006
      %v1018 = vpack.c.b16 %v1009, %v1008
      %v1019 = vpack.c.b16 %v1010, %v1010
      %v1021 = vshrl.u32 %v1011, 16
      %v1023 = vshll.u32 %v1011, 16
      %v1025 = vrot.slane %v1023, 1
      %v1026 = vor.u32 %v1021, %v1025
      %v1028 = vshll.u32 %v1012, 16
      %v1030 = vrot.slane %v1028, 1
      %v1031 = vsel %vm285, %v1026, %v1030
      %v1032 = vshrl.u32 %v1012, 16
      %v1034 = vor.u32 %v1032, %v1030
      %v1036 = vshll.u32 %v1013, 16
      %v1038 = vrot.slane %v1036, 1
      %v1039 = vsel %vm285, %v1034, %v1038
      %v1040 = vshrl.u32 %v1013, 16
      %v1042 = vor.u32 %v1040, %v1038
      %v1044 = vshll.u32 %v1014, 16
      %v1046 = vrot.slane %v1044, 1
      %v1047 = vsel %vm285, %v1042, %v1046
      %v1048 = vshrl.u32 %v1014, 16
      %v1050 = vor.u32 %v1048, %v1046
      %v1052 = vshll.u32 %v1015, 16
      %v1054 = vrot.slane %v1052, 1
      %v1055 = vsel %vm285, %v1050, %v1054
      %v1056 = vshrl.u32 %v1015, 16
      %v1058 = vor.u32 %v1056, %v1054
      %v1060 = vshll.u32 %v1016, 16
      %v1062 = vrot.slane %v1060, 1
      %v1063 = vsel %vm285, %v1058, %v1062
      %v1064 = vshrl.u32 %v1016, 16
      %v1066 = vor.u32 %v1064, %v1062
      %v1068 = vshll.u32 %v1017, 16
      %v1070 = vrot.slane %v1068, 1
      %v1071 = vsel %vm285, %v1066, %v1070
      %v1072 = vshrl.u32 %v1017, 16
      %v1074 = vor.u32 %v1072, %v1070
      %v1076 = vshll.u32 %v1018, 16
      %v1078 = vrot.slane %v1076, 1
      %v1079 = vsel %vm285, %v1074, %v1078
      %v1080 = vshrl.u32 %v1018, 16
      %v1082 = vor.u32 %v1080, %v1078
      %v1084 = vshll.u32 %v1019, 16
      %v1086 = vrot.slane %v1084, 1
      %v1087 = vsel %vm285, %v1082, %v1086
      %v1089 = vsel %vm354, %v1031, 0
      %v1092 = vsel %vm354, %v1039, 0
      %v1095 = vsel %vm354, %v1047, 0
      %v1098 = vsel %vm354, %v1055, 0
      %v1101 = vsel %vm354, %v1063, 0
      %v1104 = vsel %vm354, %v1071, 0
      %v1107 = vsel %vm354, %v1079, 0
      %v1110 = vsel %vm354, %v1087, 0
      %v1113 = vsel %vm379, %v976, 0
      %1115 = vmatprep.subr.bf16.mxu0 0
      %1116 = vmatpush1.bf16.msra.mxu0 %v1113
      %1117 = vmatprep.subr.bf16.mxu0 0
      %1118 = vmatpush1.bf16.msra.mxu0 0
      %1119 = vmatprep.subr.bf16.mxu0 0
      %1120 = vmatpush1.bf16.msra.mxu0 0
      %1121 = vmatprep.subr.bf16.mxu0 0
      %1122 = vmatpush1.bf16.msra.mxu0 0
      %1123 = vmatprep.subr.bf16.mxu0 0
      %1124 = vmatpush1.bf16.msra.mxu0 0
      %1125 = vmatprep.subr.bf16.mxu0 0
      %1126 = vmatpush1.bf16.msra.mxu0 0
      %1127 = vmatprep.subr.bf16.mxu0 0
      %1128 = vmatpush1.bf16.msra.mxu0 0
      %1129 = vmatprep.subr.bf16.mxu0 0
      %1130 = vmatpush1.bf16.msra.mxu0 0
      %1131 = vmatprep.subr.bf16.mxu0 0
      %1132 = vmatpush1.bf16.msra.mxu0 0
      %1133 = vmatprep.subr.bf16.mxu0 0
      %1134 = vmatpush1.bf16.msra.mxu0 0
      %1135 = vmatprep.subr.bf16.mxu0 0
      %1136 = vmatpush1.bf16.msra.mxu0 0
      %1137 = vmatprep.subr.bf16.mxu0 0
      %1138 = vmatpush1.bf16.msra.mxu0 0
      %1139 = vmatprep.subr.bf16.mxu0 0
      %1140 = vmatpush1.bf16.msra.mxu0 0
      %1141 = vmatprep.subr.bf16.mxu0 0
      %1142 = vmatpush1.bf16.msra.mxu0 0
      %1143 = vmatprep.subr.bf16.mxu0 0
      %1144 = vmatpush1.bf16.msra.mxu0 0
      %1145 = vmatprep.subr.bf16.mxu0 0
      %1146 = vmatpush1.bf16.msra.mxu0 0
      %1147 = vmatprep.mubr.bf16.mxu0 0
      %1148 = vmatmul.mubr.bf16.gmra.mrb[0].mxu0 %v1089
      %v1149 = vpop.f32.mrb[0].mxu0
      %v1150 = vadd.f32 0.0, %v1149
      %v1151 = vpop.f32.mrb[0].mxu0
      %v1152 = vpop.f32.mrb[0].mxu0
      %v1153 = vadd.f32 0.0, %v1152
      %v1154 = vpop.f32.mrb[0].mxu0
      %1155 = vmatprep.mubr.bf16.mxu0 0
      %1156 = vmatmul.mubr.bf16.gmra.mrb[0].mxu0 %v1092
      %v1157 = vpop.f32.mrb[0].mxu0
      %v1158 = vadd.f32 0.0, %v1157
      %v1159 = vpop.f32.mrb[0].mxu0
      %v1160 = vpop.f32.mrb[0].mxu0
      %v1161 = vadd.f32 0.0, %v1160
      %v1162 = vpop.f32.mrb[0].mxu0
      %1163 = vmatprep.mubr.bf16.mxu0 0
      %1164 = vmatmul.mubr.bf16.gmra.mrb[0].mxu0 %v1095
      %v1165 = vpop.f32.mrb[0].mxu0
      %v1166 = vadd.f32 0.0, %v1165
      %v1167 = vpop.f32.mrb[0].mxu0
      %v1168 = vpop.f32.mrb[0].mxu0
      %v1169 = vadd.f32 0.0, %v1168
      %v1170 = vpop.f32.mrb[0].mxu0
      %1171 = vmatprep.mubr.bf16.mxu0 0
      %1172 = vmatmul.mubr.bf16.gmra.mrb[0].mxu0 %v1098
      %v1173 = vpop.f32.mrb[0].mxu0
      %v1174 = vadd.f32 0.0, %v1173
      %v1175 = vpop.f32.mrb[0].mxu0
      %v1176 = vpop.f32.mrb[0].mxu0
      %v1177 = vadd.f32 0.0, %v1176
      %v1178 = vpop.f32.mrb[0].mxu0
      %1179 = vmatprep.mubr.bf16.mxu0 0
      %1180 = vmatmul.mubr.bf16.gmra.mrb[0].mxu0 %v1101
      %v1181 = vpop.f32.mrb[0].mxu0
      %v1182 = vadd.f32 0.0, %v1181
      %v1183 = vpop.f32.mrb[0].mxu0
      %v1184 = vpop.f32.mrb[0].mxu0
      %v1185 = vadd.f32 0.0, %v1184
      %v1186 = vpop.f32.mrb[0].mxu0
      %1187 = vmatprep.mubr.bf16.mxu0 0
      %1188 = vmatmul.mubr.bf16.gmra.mrb[0].mxu0 %v1104
      %v1189 = vpop.f32.mrb[0].mxu0
      %v1190 = vadd.f32 0.0, %v1189
      %v1191 = vpop.f32.mrb[0].mxu0
      %v1192 = vpop.f32.mrb[0].mxu0
      %v1193 = vadd.f32 0.0, %v1192
      %v1194 = vpop.f32.mrb[0].mxu0
      %1195 = vmatprep.mubr.bf16.mxu0 0
      %1196 = vmatmul.mubr.bf16.gmra.mrb[0].mxu0 %v1107
      %v1197 = vpop.f32.mrb[0].mxu0
      %v1198 = vadd.f32 0.0, %v1197
      %v1199 = vpop.f32.mrb[0].mxu0
      %v1200 = vpop.f32.mrb[0].mxu0
      %v1201 = vadd.f32 0.0, %v1200
      %v1202 = vpop.f32.mrb[0].mxu0
      %1203 = vmatprep.mubr.bf16.mxu0 0
      %1204 = vmatmul.mubr.bf16.gmra.mrb[0].mxu0 %v1110
      %v1205 = vpop.f32.mrb[0].mxu0
      %v1206 = vadd.f32 0.0, %v1205
      %v1207 = vpop.f32.mrb[0].mxu0
      %v1208 = vpop.f32.mrb[0].mxu0
      %v1209 = vadd.f32 0.0, %v1208
      %v1210 = vpop.f32.mrb[0].mxu0
      %1211 = vdwg.mxu0
      %v1212 = vadd.f32 %v942, %v1150
      %v1213 = vadd.f32 %v943, %v1153
      %v1214 = vadd.f32 %v944, %v1158
      %v1215 = vadd.f32 %v945, %v1161
      %v1216 = vadd.f32 %v946, %v1166
      %v1217 = vadd.f32 %v947, %v1169
      %v1218 = vadd.f32 %v948, %v1174
      %v1219 = vadd.f32 %v949, %v1177
      %v1220 = vadd.f32 %v950, %v1182
      %v1221 = vadd.f32 %v951, %v1185
      %v1222 = vadd.f32 %v952, %v1190
      %v1223 = vadd.f32 %v953, %v1193
      %v1224 = vadd.f32 %v954, %v1198
      %v1225 = vadd.f32 %v955, %v1201
      %v1226 = vadd.f32 %v956, %v1206
      %v1227 = vadd.f32 %v957, %v1209
      %v1228 = vld [vmem:[%s208 + $0x8] sm:$0xe]
      %s1229 = scalar_lea.vmem %s1, 20
      %v1230 = vld [vmem:[%s1229] sm:$0xf]
      %v1232 = vunpack.c.l.b16 %v1228
      %v1233 = vpack.c.b16 %v995, %v1232
      %v1234 = vrot.slane %v1233, 1
      %v1235 = vrot.slane %v1012, 1
      %v1236 = vsel %vm602, %v1234, %v1235
      %v1237 = vrot.slane %v1013, 1
      %v1238 = vsel %vm602, %v1235, %v1237
      %v1239 = vrot.slane %v1014, 1
      %v1240 = vsel %vm602, %v1237, %v1239
      %v1241 = vrot.slane %v1015, 1
      %v1242 = vsel %vm602, %v1239, %v1241
      %v1243 = vrot.slane %v1016, 1
      %v1244 = vsel %vm602, %v1241, %v1243
      %v1245 = vrot.slane %v1017, 1
      %v1246 = vsel %vm602, %v1243, %v1245
      %v1247 = vrot.slane %v1018, 1
      %v1248 = vsel %vm602, %v1245, %v1247
      %v1249 = vrot.slane %v1019, 1
      %v1250 = vsel %vm602, %v1247, %v1249
      %v1252 = vsel %vm354, %v1236, 0
      %v1255 = vsel %vm354, %v1238, 0
      %v1258 = vsel %vm354, %v1240, 0
      %v1261 = vsel %vm354, %v1242, 0
      %v1264 = vsel %vm354, %v1244, 0
      %v1267 = vsel %vm354, %v1246, 0
      %v1270 = vsel %vm354, %v1248, 0
      %v1273 = vsel %vm354, %v1250, 0
      %v1276 = vsel %vm379, %v1230, 0
      %1278 = vmatprep.subr.bf16.mxu0 0
      %1279 = vmatpush1.bf16.msra.mxu0 %v1276
      %1280 = vmatprep.subr.bf16.mxu0 0
      %1281 = vmatpush1.bf16.msra.mxu0 0
      %1282 = vmatprep.subr.bf16.mxu0 0
      %1283 = vmatpush1.bf16.msra.mxu0 0
      %1284 = vmatprep.subr.bf16.mxu0 0
      %1285 = vmatpush1.bf16.msra.mxu0 0
      %1286 = vmatprep.subr.bf16.mxu0 0
      %1287 = vmatpush1.bf16.msra.mxu0 0
      %1288 = vmatprep.subr.bf16.mxu0 0
      %1289 = vmatpush1.bf16.msra.mxu0 0
      %1290 = vmatprep.subr.bf16.mxu0 0
      %1291 = vmatpush1.bf16.msra.mxu0 0
      %1292 = vmatprep.subr.bf16.mxu0 0
      %1293 = vmatpush1.bf16.msra.mxu0 0
      %1294 = vmatprep.subr.bf16.mxu0 0
      %1295 = vmatpush1.bf16.msra.mxu0 0
      %1296 = vmatprep.subr.bf16.mxu0 0
      %1297 = vmatpush1.bf16.msra.mxu0 0
      %1298 = vmatprep.subr.bf16.mxu0 0
      %1299 = vmatpush1.bf16.msra.mxu0 0
      %1300 = vmatprep.subr.bf16.mxu0 0
      %1301 = vmatpush1.bf16.msra.mxu0 0
      %1302 = vmatprep.subr.bf16.mxu0 0
      %1303 = vmatpush1.bf16.msra.mxu0 0
      %1304 = vmatprep.subr.bf16.mxu0 0
      %1305 = vmatpush1.bf16.msra.mxu0 0
      %1306 = vmatprep.subr.bf16.mxu0 0
      %1307 = vmatpush1.bf16.msra.mxu0 0
      %1308 = vmatprep.subr.bf16.mxu0 0
      %1309 = vmatpush1.bf16.msra.mxu0 0
      %1310 = vmatprep.mubr.bf16.mxu0 0
      %1311 = vmatmul.mubr.bf16.gmra.mrb[0].mxu0 %v1252
      %v1312 = vpop.f32.mrb[0].mxu0
      %v1313 = vadd.f32 0.0, %v1312
      %v1314 = vpop.f32.mrb[0].mxu0
      %v1315 = vpop.f32.mrb[0].mxu0
      %v1316 = vadd.f32 0.0, %v1315
      %v1317 = vpop.f32.mrb[0].mxu0
      %1318 = vmatprep.mubr.bf16.mxu0 0
      %1319 = vmatmul.mubr.bf16.gmra.mrb[0].mxu0 %v1255
      %v1320 = vpop.f32.mrb[0].mxu0
      %v1321 = vadd.f32 0.0, %v1320
      %v1322 = vpop.f32.mrb[0].mxu0
      %v1323 = vpop.f32.mrb[0].mxu0
      %v1324 = vadd.f32 0.0, %v1323
      %v1325 = vpop.f32.mrb[0].mxu0
      %1326 = vmatprep.mubr.bf16.mxu0 0
      %1327 = vmatmul.mubr.bf16.gmra.mrb[0].mxu0 %v1258
      %v1328 = vpop.f32.mrb[0].mxu0
      %v1329 = vadd.f32 0.0, %v1328
      %v1330 = vpop.f32.mrb[0].mxu0
      %v1331 = vpop.f32.mrb[0].mxu0
      %v1332 = vadd.f32 0.0, %v1331
      %v1333 = vpop.f32.mrb[0].mxu0
      %1334 = vmatprep.mubr.bf16.mxu0 0
      %1335 = vmatmul.mubr.bf16.gmra.mrb[0].mxu0 %v1261
      %v1336 = vpop.f32.mrb[0].mxu0
      %v1337 = vadd.f32 0.0, %v1336
      %v1338 = vpop.f32.mrb[0].mxu0
      %v1339 = vpop.f32.mrb[0].mxu0
      %v1340 = vadd.f32 0.0, %v1339
      %v1341 = vpop.f32.mrb[0].mxu0
      %1342 = vmatprep.mubr.bf16.mxu0 0
      %1343 = vmatmul.mubr.bf16.gmra.mrb[0].mxu0 %v1264
      %v1344 = vpop.f32.mrb[0].mxu0
      %v1345 = vadd.f32 0.0, %v1344
      %v1346 = vpop.f32.mrb[0].mxu0
      %v1347 = vpop.f32.mrb[0].mxu0
      %v1348 = vadd.f32 0.0, %v1347
      %v1349 = vpop.f32.mrb[0].mxu0
      %1350 = vmatprep.mubr.bf16.mxu0 0
      %1351 = vmatmul.mubr.bf16.gmra.mrb[0].mxu0 %v1267
      %v1352 = vpop.f32.mrb[0].mxu0
      %v1353 = vadd.f32 0.0, %v1352
      %v1354 = vpop.f32.mrb[0].mxu0
      %v1355 = vpop.f32.mrb[0].mxu0
      %v1356 = vadd.f32 0.0, %v1355
      %v1357 = vpop.f32.mrb[0].mxu0
      %1358 = vmatprep.mubr.bf16.mxu0 0
      %1359 = vmatmul.mubr.bf16.gmra.mrb[0].mxu0 %v1270
      %v1360 = vpop.f32.mrb[0].mxu0
      %v1361 = vadd.f32 0.0, %v1360
      %v1362 = vpop.f32.mrb[0].mxu0
      %v1363 = vpop.f32.mrb[0].mxu0
      %v1364 = vadd.f32 0.0, %v1363
      %v1365 = vpop.f32.mrb[0].mxu0
      %1366 = vmatprep.mubr.bf16.mxu0 0
      %1367 = vmatmul.mubr.bf16.gmra.mrb[0].mxu0 %v1273
      %v1368 = vpop.f32.mrb[0].mxu0
      %v1369 = vadd.f32 0.0, %v1368
      %v1370 = vpop.f32.mrb[0].mxu0
      %v1371 = vpop.f32.mrb[0].mxu0
      %v1372 = vadd.f32 0.0, %v1371
      %v1373 = vpop.f32.mrb[0].mxu0
      %1374 = vdwg.mxu0
      %v1375 = vadd.f32 %v1212, %v1313
      %v1376 = vadd.f32 %v1213, %v1316
      %v1377 = vadd.f32 %v1214, %v1321
      %v1378 = vadd.f32 %v1215, %v1324
      %v1379 = vadd.f32 %v1216, %v1329
      %v1380 = vadd.f32 %v1217, %v1332
      %v1381 = vadd.f32 %v1218, %v1337
      %v1382 = vadd.f32 %v1219, %v1340
      %v1383 = vadd.f32 %v1220, %v1345
      %v1384 = vadd.f32 %v1221, %v1348
      %v1385 = vadd.f32 %v1222, %v1353
      %v1386 = vadd.f32 %v1223, %v1356
      %v1387 = vadd.f32 %v1224, %v1361
      %v1388 = vadd.f32 %v1225, %v1364
      %v1389 = vadd.f32 %v1226, %v1369
      %v1390 = vadd.f32 %v1227, %v1372
      %v1391 = vld [vmem:[%s208 + $0x10] sm:$0xf]
      %v1392 = vld [vmem:[%s208 + $0x14] sm:$0xf]
      %v1393 = vld [vmem:[%s208 + $0x18] sm:$0xf]
      %v1394 = vld [vmem:[%s208 + $0x1c] sm:$0xf]
      %v1395 = vld [vmem:[%s208 + $0x20] sm:$0xf]
      %v1396 = vld [vmem:[%s208 + $0x24] sm:$0xf]
      %v1397 = vld [vmem:[%s208 + $0x28] sm:$0xf]
      %v1398 = vld [vmem:[%s208 + $0x2c] sm:$0xf]
      %v1399 = vld [vmem:[%s208 + $0x30] sm:$0xf]
      %v1400 = vld [vmem:[%s208 + $0x34] sm:$0xf]
      %v1401 = vld [vmem:[%s208 + $0x38] sm:$0xf]
      %v1402 = vld [vmem:[%s208 + $0x3c] sm:$0xf]
      %v1403 = vld [vmem:[%s208 + $0x40] sm:$0xf]
      %v1404 = vld [vmem:[%s208 + $0x44] sm:$0xf]
      %v1405 = vld [vmem:[%s208 + $0x48] sm:$0xf]
      %v1406 = vld [vmem:[%s208 + $0x4c] sm:$0xf]
      %s1407 = scalar_lea.vmem %s1, 24
      %v1408 = vld [vmem:[%s1407] sm:$0xf]
      %v1425 = vunpack.c.l.b16 %v1391
      %v1426 = vunpack.c.l.b16 %v1392
      %v1427 = vunpack.c.l.b16 %v1393
      %v1428 = vunpack.c.l.b16 %v1394
      %v1429 = vunpack.c.l.b16 %v1395
      %v1430 = vunpack.c.l.b16 %v1396
      %v1431 = vunpack.c.l.b16 %v1397
      %v1432 = vunpack.c.l.b16 %v1398
      %v1433 = vunpack.c.l.b16 %v1399
      %v1434 = vunpack.c.l.b16 %v1400
      %v1435 = vunpack.c.l.b16 %v1401
      %v1436 = vunpack.c.l.b16 %v1402
      %v1437 = vunpack.c.l.b16 %v1403
      %v1438 = vunpack.c.l.b16 %v1404
      %v1439 = vunpack.c.l.b16 %v1405
      %v1440 = vunpack.c.l.b16 %v1406
      %v1441 = vpack.c.b16 %v1426, %v1425
      %v1442 = vpack.c.b16 %v1428, %v1427
      %v1443 = vpack.c.b16 %v1430, %v1429
      %v1444 = vpack.c.b16 %v1432, %v1431
      %v1445 = vpack.c.b16 %v1434, %v1433
      %v1446 = vpack.c.b16 %v1436, %v1435
      %v1447 = vpack.c.b16 %v1438, %v1437
      %v1448 = vpack.c.b16 %v1440, %v1439
      %v1450 = vsel %vm354, %v1441, 0
      %v1453 = vsel %vm354, %v1442, 0
      %v1456 = vsel %vm354, %v1443, 0
      %v1459 = vsel %vm354, %v1444, 0
      %v1462 = vsel %vm354, %v1445, 0
      %v1465 = vsel %vm354, %v1446, 0
      %v1468 = vsel %vm354, %v1447, 0
      %v1471 = vsel %vm354, %v1448, 0
      %v1474 = vsel %vm379, %v1408, 0
      %1476 = vmatprep.subr.bf16.mxu0 0
      %1477 = vmatpush1.bf16.msra.mxu0 %v1474
      %1478 = vmatprep.subr.bf16.mxu0 0
      %1479 = vmatpush1.bf16.msra.mxu0 0
      %1480 = vmatprep.subr.bf16.mxu0 0
      %1481 = vmatpush1.bf16.msra.mxu0 0
      %1482 = vmatprep.subr.bf16.mxu0 0
      %1483 = vmatpush1.bf16.msra.mxu0 0
      %1484 = vmatprep.subr.bf16.mxu0 0
      %1485 = vmatpush1.bf16.msra.mxu0 0
      %1486 = vmatprep.subr.bf16.mxu0 0
      %1487 = vmatpush1.bf16.msra.mxu0 0
      %1488 = vmatprep.subr.bf16.mxu0 0
      %1489 = vmatpush1.bf16.msra.mxu0 0
      %1490 = vmatprep.subr.bf16.mxu0 0
      %1491 = vmatpush1.bf16.msra.mxu0 0
      %1492 = vmatprep.subr.bf16.mxu0 0
      %1493 = vmatpush1.bf16.msra.mxu0 0
      %1494 = vmatprep.subr.bf16.mxu0 0
      %1495 = vmatpush1.bf16.msra.mxu0 0
      %1496 = vmatprep.subr.bf16.mxu0 0
      %1497 = vmatpush1.bf16.msra.mxu0 0
      %1498 = vmatprep.subr.bf16.mxu0 0
      %1499 = vmatpush1.bf16.msra.mxu0 0
      %1500 = vmatprep.subr.bf16.mxu0 0
      %1501 = vmatpush1.bf16.msra.mxu0 0
      %1502 = vmatprep.subr.bf16.mxu0 0
      %1503 = vmatpush1.bf16.msra.mxu0 0
      %1504 = vmatprep.subr.bf16.mxu0 0
      %1505 = vmatpush1.bf16.msra.mxu0 0
      %1506 = vmatprep.subr.bf16.mxu0 0
      %1507 = vmatpush1.bf16.msra.mxu0 0
      %1508 = vmatprep.mubr.bf16.mxu0 0
      %1509 = vmatmul.mubr.bf16.gmra.mrb[0].mxu0 %v1450
      %v1510 = vpop.f32.mrb[0].mxu0
      %v1511 = vadd.f32 0.0, %v1510
      %v1512 = vpop.f32.mrb[0].mxu0
      %v1513 = vpop.f32.mrb[0].mxu0
      %v1514 = vadd.f32 0.0, %v1513
      %v1515 = vpop.f32.mrb[0].mxu0
      %1516 = vmatprep.mubr.bf16.mxu0 0
      %1517 = vmatmul.mubr.bf16.gmra.mrb[0].mxu0 %v1453
      %v1518 = vpop.f32.mrb[0].mxu0
      %v1519 = vadd.f32 0.0, %v1518
      %v1520 = vpop.f32.mrb[0].mxu0
      %v1521 = vpop.f32.mrb[0].mxu0
      %v1522 = vadd.f32 0.0, %v1521
      %v1523 = vpop.f32.mrb[0].mxu0
      %1524 = vmatprep.mubr.bf16.mxu0 0
      %1525 = vmatmul.mubr.bf16.gmra.mrb[0].mxu0 %v1456
      %v1526 = vpop.f32.mrb[0].mxu0
      %v1527 = vadd.f32 0.0, %v1526
      %v1528 = vpop.f32.mrb[0].mxu0
      %v1529 = vpop.f32.mrb[0].mxu0
      %v1530 = vadd.f32 0.0, %v1529
      %v1531 = vpop.f32.mrb[0].mxu0
      %1532 = vmatprep.mubr.bf16.mxu0 0
      %1533 = vmatmul.mubr.bf16.gmra.mrb[0].mxu0 %v1459
      %v1534 = vpop.f32.mrb[0].mxu0
      %v1535 = vadd.f32 0.0, %v1534
      %v1536 = vpop.f32.mrb[0].mxu0
      %v1537 = vpop.f32.mrb[0].mxu0
      %v1538 = vadd.f32 0.0, %v1537
      %v1539 = vpop.f32.mrb[0].mxu0
      %1540 = vmatprep.mubr.bf16.mxu0 0
      %1541 = vmatmul.mubr.bf16.gmra.mrb[0].mxu0 %v1462
      %v1542 = vpop.f32.mrb[0].mxu0
      %v1543 = vadd.f32 0.0, %v1542
      %v1544 = vpop.f32.mrb[0].mxu0
      %v1545 = vpop.f32.mrb[0].mxu0
      %v1546 = vadd.f32 0.0, %v1545
      %v1547 = vpop.f32.mrb[0].mxu0
      %1548 = vmatprep.mubr.bf16.mxu0 0
      %1549 = vmatmul.mubr.bf16.gmra.mrb[0].mxu0 %v1465
      %v1550 = vpop.f32.mrb[0].mxu0
      %v1551 = vadd.f32 0.0, %v1550
      %v1552 = vpop.f32.mrb[0].mxu0
      %v1553 = vpop.f32.mrb[0].mxu0
      %v1554 = vadd.f32 0.0, %v1553
      %v1555 = vpop.f32.mrb[0].mxu0
      %1556 = vmatprep.mubr.bf16.mxu0 0
      %1557 = vmatmul.mubr.bf16.gmra.mrb[0].mxu0 %v1468
      %v1558 = vpop.f32.mrb[0].mxu0
      %v1559 = vadd.f32 0.0, %v1558
      %v1560 = vpop.f32.mrb[0].mxu0
      %v1561 = vpop.f32.mrb[0].mxu0
      %v1562 = vadd.f32 0.0, %v1561
      %v1563 = vpop.f32.mrb[0].mxu0
      %1564 = vmatprep.mubr.bf16.mxu0 0
      %1565 = vmatmul.mubr.bf16.gmra.mrb[0].mxu0 %v1471
      %v1566 = vpop.f32.mrb[0].mxu0
      %v1567 = vadd.f32 0.0, %v1566
      %v1568 = vpop.f32.mrb[0].mxu0
      %v1569 = vpop.f32.mrb[0].mxu0
      %v1570 = vadd.f32 0.0, %v1569
      %v1571 = vpop.f32.mrb[0].mxu0
      %1572 = vdwg.mxu0
      %v1573 = vadd.f32 %v1375, %v1511
      %v1574 = vadd.f32 %v1376, %v1514
      %v1575 = vadd.f32 %v1377, %v1519
      %v1576 = vadd.f32 %v1378, %v1522
      %v1577 = vadd.f32 %v1379, %v1527
      %v1578 = vadd.f32 %v1380, %v1530
      %v1579 = vadd.f32 %v1381, %v1535
      %v1580 = vadd.f32 %v1382, %v1538
      %v1581 = vadd.f32 %v1383, %v1543
      %v1582 = vadd.f32 %v1384, %v1546
      %v1583 = vadd.f32 %v1385, %v1551
      %v1584 = vadd.f32 %v1386, %v1554
      %v1585 = vadd.f32 %v1387, %v1559
      %v1586 = vadd.f32 %v1388, %v1562
      %v1587 = vadd.f32 %v1389, %v1567
      %v1588 = vadd.f32 %v1390, %v1570
      %v1589 = vld [vmem:[%s208 + $0x10] sm:$0xf]
      %v1590 = vld [vmem:[%s208 + $0x14] sm:$0xf]
      %v1591 = vld [vmem:[%s208 + $0x18] sm:$0xf]
      %v1592 = vld [vmem:[%s208 + $0x1c] sm:$0xf]
      %v1593 = vld [vmem:[%s208 + $0x20] sm:$0xf]
      %v1594 = vld [vmem:[%s208 + $0x24] sm:$0xf]
      %v1595 = vld [vmem:[%s208 + $0x28] sm:$0xf]
      %v1596 = vld [vmem:[%s208 + $0x2c] sm:$0xf]
      %v1597 = vld [vmem:[%s208 + $0x30] sm:$0xf]
      %v1598 = vld [vmem:[%s208 + $0x34] sm:$0xf]
      %v1599 = vld [vmem:[%s208 + $0x38] sm:$0xf]
      %v1600 = vld [vmem:[%s208 + $0x3c] sm:$0xf]
      %v1601 = vld [vmem:[%s208 + $0x40] sm:$0xf]
      %v1602 = vld [vmem:[%s208 + $0x44] sm:$0xf]
      %v1603 = vld [vmem:[%s208 + $0x48] sm:$0xf]
      %v1604 = vld [vmem:[%s208 + $0x4c] sm:$0xf]
      %v1605 = vld [vmem:[%s208 + $0x50] sm:$0x1]
      %s1606 = scalar_lea.vmem %s1, 28
      %v1607 = vld [vmem:[%s1606] sm:$0xf]
      %v1625 = vunpack.c.l.b16 %v1589
      %v1626 = vunpack.c.l.b16 %v1590
      %v1627 = vunpack.c.l.b16 %v1591
      %v1628 = vunpack.c.l.b16 %v1592
      %v1629 = vunpack.c.l.b16 %v1593
      %v1630 = vunpack.c.l.b16 %v1594
      %v1631 = vunpack.c.l.b16 %v1595
      %v1632 = vunpack.c.l.b16 %v1596
      %v1633 = vunpack.c.l.b16 %v1597
      %v1634 = vunpack.c.l.b16 %v1598
      %v1635 = vunpack.c.l.b16 %v1599
      %v1636 = vunpack.c.l.b16 %v1600
      %v1637 = vunpack.c.l.b16 %v1601
      %v1638 = vunpack.c.l.b16 %v1602
      %v1639 = vunpack.c.l.b16 %v1603
      %v1640 = vunpack.c.l.b16 %v1604
      %v1641 = vunpack.c.l.b16 %v1605
      %v1642 = vpack.c.b16 %v1626, %v1625
      %v1643 = vpack.c.b16 %v1628, %v1627
      %v1644 = vpack.c.b16 %v1630, %v1629
      %v1645 = vpack.c.b16 %v1632, %v1631
      %v1646 = vpack.c.b16 %v1634, %v1633
      %v1647 = vpack.c.b16 %v1636, %v1635
      %v1648 = vpack.c.b16 %v1638, %v1637
      %v1649 = vpack.c.b16 %v1640, %v1639
      %v1650 = vpack.c.b16 %v1641, %v1641
      %v1652 = vshrl.u32 %v1642, 16
      %v1654 = vshll.u32 %v1642, 16
      %v1656 = vrot.slane %v1654, 1
      %v1657 = vor.u32 %v1652, %v1656
      %v1659 = vshll.u32 %v1643, 16
      %v1661 = vrot.slane %v1659, 1
      %v1662 = vsel %vm285, %v1657, %v1661
      %v1663 = vshrl.u32 %v1643, 16
      %v1665 = vor.u32 %v1663, %v1661
      %v1667 = vshll.u32 %v1644, 16
      %v1669 = vrot.slane %v1667, 1
      %v1670 = vsel %vm285, %v1665, %v1669
      %v1671 = vshrl.u32 %v1644, 16
      %v1673 = vor.u32 %v1671, %v1669
      %v1675 = vshll.u32 %v1645, 16
      %v1677 = vrot.slane %v1675, 1
      %v1678 = vsel %vm285, %v1673, %v1677
      %v1679 = vshrl.u32 %v1645, 16
      %v1681 = vor.u32 %v1679, %v1677
      %v1683 = vshll.u32 %v1646, 16
      %v1685 = vrot.slane %v1683, 1
      %v1686 = vsel %vm285, %v1681, %v1685
      %v1687 = vshrl.u32 %v1646, 16
      %v1689 = vor.u32 %v1687, %v1685
      %v1691 = vshll.u32 %v1647, 16
      %v1693 = vrot.slane %v1691, 1
      %v1694 = vsel %vm285, %v1689, %v1693
      %v1695 = vshrl.u32 %v1647, 16
      %v1697 = vor.u32 %v1695, %v1693
      %v1699 = vshll.u32 %v1648, 16
      %v1701 = vrot.slane %v1699, 1
      %v1702 = vsel %vm285, %v1697, %v1701
      %v1703 = vshrl.u32 %v1648, 16
      %v1705 = vor.u32 %v1703, %v1701
      %v1707 = vshll.u32 %v1649, 16
      %v1709 = vrot.slane %v1707, 1
      %v1710 = vsel %vm285, %v1705, %v1709
      %v1711 = vshrl.u32 %v1649, 16
      %v1713 = vor.u32 %v1711, %v1709
      %v1715 = vshll.u32 %v1650, 16
      %v1717 = vrot.slane %v1715, 1
      %v1718 = vsel %vm285, %v1713, %v1717
      %v1720 = vsel %vm354, %v1662, 0
      %v1723 = vsel %vm354, %v1670, 0
      %v1726 = vsel %vm354, %v1678, 0
      %v1729 = vsel %vm354, %v1686, 0
      %v1732 = vsel %vm354, %v1694, 0
      %v1735 = vsel %vm354, %v1702, 0
      %v1738 = vsel %vm354, %v1710, 0
      %v1741 = vsel %vm354, %v1718, 0
      %v1744 = vsel %vm379, %v1607, 0
      %1746 = vmatprep.subr.bf16.mxu0 0
      %1747 = vmatpush1.bf16.msra.mxu0 %v1744
      %1748 = vmatprep.subr.bf16.mxu0 0
      %1749 = vmatpush1.bf16.msra.mxu0 0
      %1750 = vmatprep.subr.bf16.mxu0 0
      %1751 = vmatpush1.bf16.msra.mxu0 0
      %1752 = vmatprep.subr.bf16.mxu0 0
      %1753 = vmatpush1.bf16.msra.mxu0 0
      %1754 = vmatprep.subr.bf16.mxu0 0
      %1755 = vmatpush1.bf16.msra.mxu0 0
      %1756 = vmatprep.subr.bf16.mxu0 0
      %1757 = vmatpush1.bf16.msra.mxu0 0
      %1758 = vmatprep.subr.bf16.mxu0 0
      %1759 = vmatpush1.bf16.msra.mxu0 0
      %1760 = vmatprep.subr.bf16.mxu0 0
      %1761 = vmatpush1.bf16.msra.mxu0 0
      %1762 = vmatprep.subr.bf16.mxu0 0
      %1763 = vmatpush1.bf16.msra.mxu0 0
      %1764 = vmatprep.subr.bf16.mxu0 0
      %1765 = vmatpush1.bf16.msra.mxu0 0
      %1766 = vmatprep.subr.bf16.mxu0 0
      %1767 = vmatpush1.bf16.msra.mxu0 0
      %1768 = vmatprep.subr.bf16.mxu0 0
      %1769 = vmatpush1.bf16.msra.mxu0 0
      %1770 = vmatprep.subr.bf16.mxu0 0
      %1771 = vmatpush1.bf16.msra.mxu0 0
      %1772 = vmatprep.subr.bf16.mxu0 0
      %1773 = vmatpush1.bf16.msra.mxu0 0
      %1774 = vmatprep.subr.bf16.mxu0 0
      %1775 = vmatpush1.bf16.msra.mxu0 0
      %1776 = vmatprep.subr.bf16.mxu0 0
      %1777 = vmatpush1.bf16.msra.mxu0 0
      %1778 = vmatprep.mubr.bf16.mxu0 0
      %1779 = vmatmul.mubr.bf16.gmra.mrb[0].mxu0 %v1720
      %v1780 = vpop.f32.mrb[0].mxu0
      %v1781 = vadd.f32 0.0, %v1780
      %v1782 = vpop.f32.mrb[0].mxu0
      %v1783 = vpop.f32.mrb[0].mxu0
      %v1784 = vadd.f32 0.0, %v1783
      %v1785 = vpop.f32.mrb[0].mxu0
      %1786 = vmatprep.mubr.bf16.mxu0 0
      %1787 = vmatmul.mubr.bf16.gmra.mrb[0].mxu0 %v1723
      %v1788 = vpop.f32.mrb[0].mxu0
      %v1789 = vadd.f32 0.0, %v1788
      %v1790 = vpop.f32.mrb[0].mxu0
      %v1791 = vpop.f32.mrb[0].mxu0
      %v1792 = vadd.f32 0.0, %v1791
      %v1793 = vpop.f32.mrb[0].mxu0
      %1794 = vmatprep.mubr.bf16.mxu0 0
      %1795 = vmatmul.mubr.bf16.gmra.mrb[0].mxu0 %v1726
      %v1796 = vpop.f32.mrb[0].mxu0
      %v1797 = vadd.f32 0.0, %v1796
      %v1798 = vpop.f32.mrb[0].mxu0
      %v1799 = vpop.f32.mrb[0].mxu0
      %v1800 = vadd.f32 0.0, %v1799
      %v1801 = vpop.f32.mrb[0].mxu0
      %1802 = vmatprep.mubr.bf16.mxu0 0
      %1803 = vmatmul.mubr.bf16.gmra.mrb[0].mxu0 %v1729
      %v1804 = vpop.f32.mrb[0].mxu0
      %v1805 = vadd.f32 0.0, %v1804
      %v1806 = vpop.f32.mrb[0].mxu0
      %v1807 = vpop.f32.mrb[0].mxu0
      %v1808 = vadd.f32 0.0, %v1807
      %v1809 = vpop.f32.mrb[0].mxu0
      %1810 = vmatprep.mubr.bf16.mxu0 0
      %1811 = vmatmul.mubr.bf16.gmra.mrb[0].mxu0 %v1732
      %v1812 = vpop.f32.mrb[0].mxu0
      %v1813 = vadd.f32 0.0, %v1812
      %v1814 = vpop.f32.mrb[0].mxu0
      %v1815 = vpop.f32.mrb[0].mxu0
      %v1816 = vadd.f32 0.0, %v1815
      %v1817 = vpop.f32.mrb[0].mxu0
      %1818 = vmatprep.mubr.bf16.mxu0 0
      %1819 = vmatmul.mubr.bf16.gmra.mrb[0].mxu0 %v1735
      %v1820 = vpop.f32.mrb[0].mxu0
      %v1821 = vadd.f32 0.0, %v1820
      %v1822 = vpop.f32.mrb[0].mxu0
      %v1823 = vpop.f32.mrb[0].mxu0
      %v1824 = vadd.f32 0.0, %v1823
      %v1825 = vpop.f32.mrb[0].mxu0
      %1826 = vmatprep.mubr.bf16.mxu0 0
      %1827 = vmatmul.mubr.bf16.gmra.mrb[0].mxu0 %v1738
      %v1828 = vpop.f32.mrb[0].mxu0
      %v1829 = vadd.f32 0.0, %v1828
      %v1830 = vpop.f32.mrb[0].mxu0
      %v1831 = vpop.f32.mrb[0].mxu0
      %v1832 = vadd.f32 0.0, %v1831
      %v1833 = vpop.f32.mrb[0].mxu0
      %1834 = vmatprep.mubr.bf16.mxu0 0
      %1835 = vmatmul.mubr.bf16.gmra.mrb[0].mxu0 %v1741
      %v1836 = vpop.f32.mrb[0].mxu0
      %v1837 = vadd.f32 0.0, %v1836
      %v1838 = vpop.f32.mrb[0].mxu0
      %v1839 = vpop.f32.mrb[0].mxu0
      %v1840 = vadd.f32 0.0, %v1839
      %v1841 = vpop.f32.mrb[0].mxu0
      %1842 = vdwg.mxu0
      %v1843 = vadd.f32 %v1573, %v1781
      %v1844 = vadd.f32 %v1574, %v1784
      %v1845 = vadd.f32 %v1575, %v1789
      %v1846 = vadd.f32 %v1576, %v1792
      %v1847 = vadd.f32 %v1577, %v1797
      %v1848 = vadd.f32 %v1578, %v1800
      %v1849 = vadd.f32 %v1579, %v1805
      %v1850 = vadd.f32 %v1580, %v1808
      %v1851 = vadd.f32 %v1581, %v1813
      %v1852 = vadd.f32 %v1582, %v1816
      %v1853 = vadd.f32 %v1583, %v1821
      %v1854 = vadd.f32 %v1584, %v1824
      %v1855 = vadd.f32 %v1585, %v1829
      %v1856 = vadd.f32 %v1586, %v1832
      %v1857 = vadd.f32 %v1587, %v1837
      %v1858 = vadd.f32 %v1588, %v1840
      %v1859 = vld [vmem:[%s208 + $0x10] sm:$0xe]
      %s1860 = scalar_lea.vmem %s1, 32
      %v1861 = vld [vmem:[%s1860] sm:$0xf]
      %v1863 = vunpack.c.l.b16 %v1859
      %v1864 = vpack.c.b16 %v1626, %v1863
      %v1865 = vrot.slane %v1864, 1
      %v1866 = vrot.slane %v1643, 1
      %v1867 = vsel %vm602, %v1865, %v1866
      %v1868 = vrot.slane %v1644, 1
      %v1869 = vsel %vm602, %v1866, %v1868
      %v1870 = vrot.slane %v1645, 1
      %v1871 = vsel %vm602, %v1868, %v1870
      %v1872 = vrot.slane %v1646, 1
      %v1873 = vsel %vm602, %v1870, %v1872
      %v1874 = vrot.slane %v1647, 1
      %v1875 = vsel %vm602, %v1872, %v1874
      %v1876 = vrot.slane %v1648, 1
      %v1877 = vsel %vm602, %v1874, %v1876
      %v1878 = vrot.slane %v1649, 1
      %v1879 = vsel %vm602, %v1876, %v1878
      %v1880 = vrot.slane %v1650, 1
      %v1881 = vsel %vm602, %v1878, %v1880
      %v1883 = vsel %vm354, %v1867, 0
      %v1886 = vsel %vm354, %v1869, 0
      %v1889 = vsel %vm354, %v1871, 0
      %v1892 = vsel %vm354, %v1873, 0
      %v1895 = vsel %vm354, %v1875, 0
      %v1898 = vsel %vm354, %v1877, 0
      %v1901 = vsel %vm354, %v1879, 0
      %v1904 = vsel %vm354, %v1881, 0
      %v1907 = vsel %vm379, %v1861, 0
      %1909 = vmatprep.subr.bf16.mxu0 0
      %1910 = vmatpush1.bf16.msra.mxu0 %v1907
      %1911 = vmatprep.subr.bf16.mxu0 0
      %1912 = vmatpush1.bf16.msra.mxu0 0
      %1913 = vmatprep.subr.bf16.mxu0 0
      %1914 = vmatpush1.bf16.msra.mxu0 0
      %1915 = vmatprep.subr.bf16.mxu0 0
      %1916 = vmatpush1.bf16.msra.mxu0 0
      %1917 = vmatprep.subr.bf16.mxu0 0
      %1918 = vmatpush1.bf16.msra.mxu0 0
      %1919 = vmatprep.subr.bf16.mxu0 0
      %1920 = vmatpush1.bf16.msra.mxu0 0
      %1921 = vmatprep.subr.bf16.mxu0 0
      %1922 = vmatpush1.bf16.msra.mxu0 0
      %1923 = vmatprep.subr.bf16.mxu0 0
      %1924 = vmatpush1.bf16.msra.mxu0 0
      %1925 = vmatprep.subr.bf16.mxu0 0
      %1926 = vmatpush1.bf16.msra.mxu0 0
      %1927 = vmatprep.subr.bf16.mxu0 0
      %1928 = vmatpush1.bf16.msra.mxu0 0
      %1929 = vmatprep.subr.bf16.mxu0 0
      %1930 = vmatpush1.bf16.msra.mxu0 0
      %1931 = vmatprep.subr.bf16.mxu0 0
      %1932 = vmatpush1.bf16.msra.mxu0 0
      %1933 = vmatprep.subr.bf16.mxu0 0
      %1934 = vmatpush1.bf16.msra.mxu0 0
      %1935 = vmatprep.subr.bf16.mxu0 0
      %1936 = vmatpush1.bf16.msra.mxu0 0
      %1937 = vmatprep.subr.bf16.mxu0 0
      %1938 = vmatpush1.bf16.msra.mxu0 0
      %1939 = vmatprep.subr.bf16.mxu0 0
      %1940 = vmatpush1.bf16.msra.mxu0 0
      %1941 = vmatprep.mubr.bf16.mxu0 0
      %1942 = vmatmul.mubr.bf16.gmra.mrb[0].mxu0 %v1883
      %v1943 = vpop.f32.mrb[0].mxu0
      %v1944 = vadd.f32 0.0, %v1943
      %v1945 = vpop.f32.mrb[0].mxu0
      %v1946 = vpop.f32.mrb[0].mxu0
      %v1947 = vadd.f32 0.0, %v1946
      %v1948 = vpop.f32.mrb[0].mxu0
      %1949 = vmatprep.mubr.bf16.mxu0 0
      %1950 = vmatmul.mubr.bf16.gmra.mrb[0].mxu0 %v1886
      %v1951 = vpop.f32.mrb[0].mxu0
      %v1952 = vadd.f32 0.0, %v1951
      %v1953 = vpop.f32.mrb[0].mxu0
      %v1954 = vpop.f32.mrb[0].mxu0
      %v1955 = vadd.f32 0.0, %v1954
      %v1956 = vpop.f32.mrb[0].mxu0
      %1957 = vmatprep.mubr.bf16.mxu0 0
      %1958 = vmatmul.mubr.bf16.gmra.mrb[0].mxu0 %v1889
      %v1959 = vpop.f32.mrb[0].mxu0
      %v1960 = vadd.f32 0.0, %v1959
      %v1961 = vpop.f32.mrb[0].mxu0
      %v1962 = vpop.f32.mrb[0].mxu0
      %v1963 = vadd.f32 0.0, %v1962
      %v1964 = vpop.f32.mrb[0].mxu0
      %1965 = vmatprep.mubr.bf16.mxu0 0
      %1966 = vmatmul.mubr.bf16.gmra.mrb[0].mxu0 %v1892
      %v1967 = vpop.f32.mrb[0].mxu0
      %v1968 = vadd.f32 0.0, %v1967
      %v1969 = vpop.f32.mrb[0].mxu0
      %v1970 = vpop.f32.mrb[0].mxu0
      %v1971 = vadd.f32 0.0, %v1970
      %v1972 = vpop.f32.mrb[0].mxu0
      %1973 = vmatprep.mubr.bf16.mxu0 0
      %1974 = vmatmul.mubr.bf16.gmra.mrb[0].mxu0 %v1895
      %v1975 = vpop.f32.mrb[0].mxu0
      %v1976 = vadd.f32 0.0, %v1975
      %v1977 = vpop.f32.mrb[0].mxu0
      %v1978 = vpop.f32.mrb[0].mxu0
      %v1979 = vadd.f32 0.0, %v1978
      %v1980 = vpop.f32.mrb[0].mxu0
      %1981 = vmatprep.mubr.bf16.mxu0 0
      %1982 = vmatmul.mubr.bf16.gmra.mrb[0].mxu0 %v1898
      %v1983 = vpop.f32.mrb[0].mxu0
      %v1984 = vadd.f32 0.0, %v1983
      %v1985 = vpop.f32.mrb[0].mxu0
      %v1986 = vpop.f32.mrb[0].mxu0
      %v1987 = vadd.f32 0.0, %v1986
      %v1988 = vpop.f32.mrb[0].mxu0
      %1989 = vmatprep.mubr.bf16.mxu0 0
      %1990 = vmatmul.mubr.bf16.gmra.mrb[0].mxu0 %v1901
      %v1991 = vpop.f32.mrb[0].mxu0
      %v1992 = vadd.f32 0.0, %v1991
      %v1993 = vpop.f32.mrb[0].mxu0
      %v1994 = vpop.f32.mrb[0].mxu0
      %v1995 = vadd.f32 0.0, %v1994
      %v1996 = vpop.f32.mrb[0].mxu0
      %1997 = vmatprep.mubr.bf16.mxu0 0
      %1998 = vmatmul.mubr.bf16.gmra.mrb[0].mxu0 %v1904
      %v1999 = vpop.f32.mrb[0].mxu0
      %v2000 = vadd.f32 0.0, %v1999
      %v2001 = vpop.f32.mrb[0].mxu0
      %v2002 = vpop.f32.mrb[0].mxu0
      %v2003 = vadd.f32 0.0, %v2002
      %v2004 = vpop.f32.mrb[0].mxu0
      %2005 = vdwg.mxu0
      %v2006 = vadd.f32 %v1843, %v1944
      %v2007 = vadd.f32 %v1844, %v1947
      %v2008 = vadd.f32 %v1845, %v1952
      %v2009 = vadd.f32 %v1846, %v1955
      %v2010 = vadd.f32 %v1847, %v1960
      %v2011 = vadd.f32 %v1848, %v1963
      %v2012 = vadd.f32 %v1849, %v1968
      %v2013 = vadd.f32 %v1850, %v1971
      %v2014 = vadd.f32 %v1851, %v1976
      %v2015 = vadd.f32 %v1852, %v1979
      %v2016 = vadd.f32 %v1853, %v1984
      %v2017 = vadd.f32 %v1854, %v1987
      %v2018 = vadd.f32 %v1855, %v1992
      %v2019 = vadd.f32 %v1856, %v1995
      %v2020 = vadd.f32 %v1857, %v2000
      %v2021 = vadd.f32 %v1858, %v2003
      %v2022 = vld [vmem:[%s2] sm:$0x1]
      %v2024 = vlaneseq
      %v2025 = vshrl.u32 %v2024, 7
      %v2026 = vsub.s32 0, %v2025
      %v2027 = vrot.slane %v2022, %v2026
      %v2029 = vadd.f32 %v2006, %v2027
      %v2030 = vadd.f32 %v2007, %v2027
      %v2031 = vadd.f32 %v2008, %v2027
      %v2032 = vadd.f32 %v2009, %v2027
      %v2033 = vadd.f32 %v2010, %v2027
      %v2034 = vadd.f32 %v2011, %v2027
      %v2035 = vadd.f32 %v2012, %v2027
      %v2036 = vadd.f32 %v2013, %v2027
      %v2037 = vadd.f32 %v2014, %v2027
      %v2038 = vadd.f32 %v2015, %v2027
      %v2039 = vadd.f32 %v2016, %v2027
      %v2040 = vadd.f32 %v2017, %v2027
      %v2041 = vadd.f32 %v2018, %v2027
      %v2042 = vadd.f32 %v2019, %v2027
      %v2043 = vadd.f32 %v2020, %v2027
      %v2044 = vadd.f32 %v2021, %v2027
      %v2045 = vld [vmem:[%s213] sm:$0xff]
      %v2046 = vld [vmem:[%s213 + $0x8] sm:$0xff]
      %v2047 = vld [vmem:[%s213 + $0x10] sm:$0xff]
      %v2048 = vld [vmem:[%s213 + $0x18] sm:$0xff]
      %v2049 = vld [vmem:[%s213 + $0x20] sm:$0xff]
      %v2050 = vld [vmem:[%s213 + $0x28] sm:$0xff]
      %v2051 = vld [vmem:[%s213 + $0x30] sm:$0xff]
      %v2052 = vld [vmem:[%s213 + $0x38] sm:$0xff]
      %v2053 = vld [vmem:[%s213 + $0x40] sm:$0xff]
      %v2054 = vld [vmem:[%s213 + $0x48] sm:$0xff]
      %v2055 = vld [vmem:[%s213 + $0x50] sm:$0xff]
      %v2056 = vld [vmem:[%s213 + $0x58] sm:$0xff]
      %v2057 = vld [vmem:[%s213 + $0x60] sm:$0xff]
      %v2058 = vld [vmem:[%s213 + $0x68] sm:$0xff]
      %v2059 = vld [vmem:[%s213 + $0x70] sm:$0xff]
      %v2060 = vld [vmem:[%s213 + $0x78] sm:$0xff]
      %v2061 = vadd.f32 %v2029, %v2045
      %v2062 = vadd.f32 %v2030, %v2046
      %v2063 = vadd.f32 %v2031, %v2047
      %v2064 = vadd.f32 %v2032, %v2048
      %v2065 = vadd.f32 %v2033, %v2049
      %v2066 = vadd.f32 %v2034, %v2050
      %v2067 = vadd.f32 %v2035, %v2051
      %v2068 = vadd.f32 %v2036, %v2052
      %v2069 = vadd.f32 %v2037, %v2053
      %v2070 = vadd.f32 %v2038, %v2054
      %v2071 = vadd.f32 %v2039, %v2055
      %v2072 = vadd.f32 %v2040, %v2056
      %v2073 = vadd.f32 %v2041, %v2057
      %v2074 = vadd.f32 %v2042, %v2058
      %v2075 = vadd.f32 %v2043, %v2059
      %v2076 = vadd.f32 %v2044, %v2060
      %v2077 = vmax.f32 %v2061, 0.0
      %v2078 = vmax.f32 %v2062, 0.0
      %v2079 = vmax.f32 %v2063, 0.0
      %v2080 = vmax.f32 %v2064, 0.0
      %v2081 = vmax.f32 %v2065, 0.0
      %v2082 = vmax.f32 %v2066, 0.0
      %v2083 = vmax.f32 %v2067, 0.0
      %v2084 = vmax.f32 %v2068, 0.0
      %v2085 = vmax.f32 %v2069, 0.0
      %v2086 = vmax.f32 %v2070, 0.0
      %v2087 = vmax.f32 %v2071, 0.0
      %v2088 = vmax.f32 %v2072, 0.0
      %v2089 = vmax.f32 %v2073, 0.0
      %v2090 = vmax.f32 %v2074, 0.0
      %v2091 = vmax.f32 %v2075, 0.0
      %v2092 = vmax.f32 %v2076, 0.0
      %2093 = vst [vmem:[%s219] sm:$0xff] %v2077
      %2094 = vst [vmem:[%s219 + $0x8] sm:$0xff] %v2078
      %2095 = vst [vmem:[%s219 + $0x10] sm:$0xff] %v2079
      %2096 = vst [vmem:[%s219 + $0x18] sm:$0xff] %v2080
      %2097 = vst [vmem:[%s219 + $0x20] sm:$0xff] %v2081
      %2098 = vst [vmem:[%s219 + $0x28] sm:$0xff] %v2082
      %2099 = vst [vmem:[%s219 + $0x30] sm:$0xff] %v2083
      %2100 = vst [vmem:[%s219 + $0x38] sm:$0xff] %v2084
      %2101 = vst [vmem:[%s219 + $0x40] sm:$0xff] %v2085
      %2102 = vst [vmem:[%s219 + $0x48] sm:$0xff] %v2086
      %2103 = vst [vmem:[%s219 + $0x50] sm:$0xff] %v2087
      %2104 = vst [vmem:[%s219 + $0x58] sm:$0xff] %v2088
      %2105 = vst [vmem:[%s219 + $0x60] sm:$0xff] %v2089
      %2106 = vst [vmem:[%s219 + $0x68] sm:$0xff] %v2090
      %2107 = vst [vmem:[%s219 + $0x70] sm:$0xff] %v2091
      %2108 = vst [vmem:[%s219 + $0x78] sm:$0xff] %v2092
      %s2109 = smul.u32 16, %s15
      %p2110 = scmp.lt.s32.totalorder %s2109, 31
      %s2111 = scalar_select %p2110, %s2109, 31
      %s2112 = smul.addr %s2111, 8
      %s2113 = scalar_lea.vmem %s4, %s2112
      // Predicated region
      $region37: #{basic_block_forward.5} parent=35 // pred_check
        %p2114 = pneg %p127
      $region38: #{basic_block_forward.5} parent=35 // pred_check_branch
        %2116 = sbr.rel (%p2114) target = $region40
      $region39: #{basic_block_forward.5} parent=35 // pred_region
        %s2117 = smul.u32 16, %s15
      $region40: #{basic_block_forward.5} parent=35 // pred_fallthru
        _
    $region36: #{basic_block_forward.5} parent=5 // pred_fallthru
      _
    %p2118 = scmp.le.s32.totalorder 2, %s10
    // Predicated region
    $region41: #{basic_block_forward.5} parent=5 // pred_check
      %p2119 = pneg %p2118
    $region42: #{basic_block_forward.5} parent=5 // pred_check_branch
      %2121 = sbr.rel (%p2119) target = $region44
    $region43: #{basic_block_forward.5} parent=5 // pred_region
      %s2122 = ssub.s32 %s10, 2
      // Predicated region
      $region45: #{basic_block_forward.5} parent=43 // pred_check
        %p2123 = pneg %p133
      $region46: #{basic_block_forward.5} parent=43 // pred_check_branch
        %2125 = sbr.rel (%p2123) target = $region48
      $region47: #{basic_block_forward.5} parent=43 // pred_region
        %s2126 = smul.u32 16, %s16
        %p2127 = scmp.lt.s32.totalorder %s2126, 31
        %s2128 = scalar_select %p2127, %s2126, 31
        %s2129 = smul.addr %s2128, 8
        %s2130 = scalar_lea.vmem %s4, %s2129
      $region48: #{basic_block_forward.5} parent=43 // pred_fallthru
        _
    $region44: #{basic_block_forward.5} parent=5 // pred_fallthru
      _
  $region6: #{basic_block_forward.5} parent=0 // loop_footer
    %s14 = sadd.s32 1, %s10
  $region7: #{basic_block_forward.5} parent=0 // loop_footer_branch
    %9 = sbr.rel target = $region3
  $region8: #{basic_block_forward.5} parent=0 // loop_exit
    _

</llo_original>
